<compile_context>
chip_gen: v6e
topology: v6e:2x2x1
jax: 0.10.0
libtpu: 0.0.40
codegen_flags: <defaults>
</compile_context>

<pallas_src>
import jax
import jax.numpy as jnp
from jax.experimental import pallas as pl
from jax.experimental.pallas import tpu as pltpu


# ---------------------------------------------------------------------------
# Packed-weight slab layout.  Row offsets are multiples of 16 so every slice of
# the bf16 slab is native-tile aligned.  (name, rows, cols) in a (ROWS, 256) slab.
# ---------------------------------------------------------------------------
_SLAB_PIECES = (
    ("w1",  160, 168),   # conv1, kh folded into K: (5*32, 28*6)
    ("w2",  640, 160),   # conv2, kh folded into K, per-tap K padded 84 -> 128
    ("sh1",  32,  28),   # pool1 row selector (rows 0:14 even, 16:30 odd)
    ("sw1", 168, 256),   # pool1 lane selector (lanes 0:84 even, 128:212 odd)
    ("sh2",  16,  10),   # pool2 row selector (rows 0:5 even, 8:13 odd)
    ("sw2", 160, 256),   # pool2 lane selector (lanes 0:80 even, 128:208 odd)
    ("fw1", 640, 128),   # fc1, kernel (h,w,c) order, K padded per h 80->128, N 120->128
    ("fw2", 128, 128),   # fc2, K 120->128, N 84->128
    ("fw3", 128, 128),   # fc3, K 84->128,  N 10->128
)


def _slab_layout():
    layout, off = {}, 0
    for name, rows, cols in _SLAB_PIECES:
        layout[name] = (off, rows, cols)
        off += ((rows + 15) // 16) * 16          # keep every offset bf16-tile aligned
    return layout, off


_SLAB_LAYOUT, _SLAB_ROWS = _slab_layout()


# ---------------------------------------------------------------------------
# Fused kernel
# ---------------------------------------------------------------------------
def _lenet_fused_kernel(x_ref, w_ref, b_ref, out_ref, flat_ref):
    """x_ref: (B,28,160) f32   conv1 LHS with the 5 kh taps folded into lanes
    w_ref:  (_SLAB_ROWS,256) bf16   packed weights / selectors
    b_ref:  (8,256) f32   packed biases (rows: b1, b2, fb1, fb2, fb3)
    out_ref:(B,128) f32   lane-dense logits (cols 10.. are 0)
    flat_ref:(B,640) f32  VMEM scratch holding the flattened fc1 input."""
    f32, bf16 = jnp.float32, jnp.bfloat16
    batch = x_ref.shape[0]

    def piece(name):                 # static, tile-aligned view into the weight slab
        off, rows, cols = _SLAB_LAYOUT[name]
        return w_ref[off:off + rows, 0:cols]

    def mm(a, w):                    # bf16 MXU operands, f32 accumulation
        return jnp.dot(a.astype(bf16), w.astype(bf16), preferred_element_type=f32)

    # Hoisted bias broadcasts (JAX does not CSE broadcast_in_dim across the unroll).
    b1 = jnp.broadcast_to(b_ref[0:1, 0:168], (28, 168))
    b2 = jnp.broadcast_to(b_ref[1:2, 0:160], (10, 160))
    fb1 = jnp.broadcast_to(b_ref[2:3, 0:128], (batch, 128))
    fb2 = jnp.broadcast_to(b_ref[3:4, 0:128], (batch, 128))
    fb3 = jnp.broadcast_to(b_ref[4:5, 0:128], (batch, 128))

    for b in range(batch):           # static unroll over the tiny batch
        # conv1 + bias + ReLU: ONE GEMM (kh already folded into K by the wrapper).
        h1 = jnp.maximum(mm(x_ref[b], piece("w1")) + b1, 0.0)                 # (28,168)

        # pool1: row pairs via one stacked 0/1 GEMM, W pairs via one padded 0/1 GEMM.
        r1 = mm(piece("sh1"), h1)                                             # (32,168)
        v1 = jnp.maximum(r1[0:14, :], r1[16:30, :])                           # (14,168)
        c1 = mm(v1, piece("sw1"))                                             # (14,256)
        p1 = jnp.maximum(c1[:, 0:128], c1[:, 128:256])                        # (14,128); lanes 84.. = 0

        # conv2 + bias + ReLU: ONE GEMM.  LHS = 5 row-shifted copies of p1
        # concatenated along lanes (128-wide, 128-aligned pieces).
        l2 = jnp.concatenate([p1[k:k + 10, :] for k in range(5)], axis=-1)    # (10,640)
        h2 = jnp.maximum(mm(l2, piece("w2")) + b2, 0.0)                       # (10,160)

        # pool2 (same merged-selector trick).
        r2 = mm(piece("sh2"), h2)                                             # (16,160)
        v2 = jnp.maximum(r2[0:5, :], r2[8:13, :])                             # (5,160)
        c2 = mm(v2, piece("sw2"))                                             # (5,256)
        p2 = jnp.maximum(c2[:, 0:128], c2[:, 128:256])                        # (5,128); lanes 80.. = 0

        # Lane-flatten (h, w, c) into one dense 640-lane row of the fc scratch
        # (single-row stores at 128-aligned lane offsets).
        for h in range(5):
            flat_ref[b:b + 1, 128 * h:128 * (h + 1)] = p2[h:h + 1, :]

    # Batched fully-connected tail: 3 GEMMs for the whole batch.
    flat = flat_ref[...]                                                      # (B,640)
    f1 = jnp.maximum(mm(flat, piece("fw1")) + fb1, 0.0)                       # (B,128)
    f2 = jnp.maximum(mm(f1, piece("fw2")) + fb2, 0.0)                         # (B,128)
    out_ref[...] = mm(f2, piece("fw3")) + fb3                                 # (B,128)


# ---------------------------------------------------------------------------
# One-time parameter re-layout (outside the jitted forward path)
# ---------------------------------------------------------------------------
def preprocess_params(params):
    f32 = jnp.float32

    def conv_band(w, w_in, w_out):
        # (Co,Ci,5,5) -> (5, w_in*Ci, w_out*Co): per kh a banded matrix with
        # M[jin*Ci+ci, j*Co+co] = w[co,ci,kh,jin-j] for 0 <= jin-j < 5.
        co, ci, k, _ = w.shape
        wk = jnp.transpose(w.astype(f32), (2, 3, 1, 0))                       # (kh,kw,Ci,Co)
        band = (jnp.arange(w_in)[None, :, None]
                == jnp.arange(w_out)[None, None, :] + jnp.arange(k)[:, None, None]
                ).astype(f32)                                                 # (kw,w_in,w_out)
        big = jnp.einsum("wJj,hwab->hJajb", band, wk)                         # (kh,w_in,Ci,w_out,Co)
        return big.reshape(k, w_in * ci, w_out * co)

    def pool_row_selector(h_in, rows_pad):
        hp = h_in // 2
        cols = jnp.arange(h_in)[None, :]
        even = (cols == 2 * jnp.arange(hp)[:, None]).astype(f32)
        odd = (cols == 2 * jnp.arange(hp)[:, None] + 1).astype(f32)
        sel = jnp.zeros((rows_pad, h_in), f32)
        return sel.at[:hp].set(even).at[rows_pad // 2:rows_pad // 2 + hp].set(odd)

    def pool_lane_selector(w_in, c):
        wp = w_in // 2
        rows = jnp.arange(w_in)[:, None]
        even = (rows == 2 * jnp.arange(wp)[None, :]).astype(f32)              # (w_in,wp)
        odd = (rows == 2 * jnp.arange(wp)[None, :] + 1).astype(f32)
        eye_c = jnp.eye(c, dtype=f32)
        sel = jnp.zeros((w_in * c, 256), f32)
        sel = sel.at[:, :wp * c].set(jnp.kron(even, eye_c))
        return sel.at[:, 128:128 + wp * c].set(jnp.kron(odd, eye_c))

    # conv1: (5,32,168) -> (160,168); conv2: (5,84,160) padded per tap to 128
    # K rows -> (640,160), matching the 128-lane-padded pool1 output.
    w1 = conv_band(params["conv1_w"], 32, 28).reshape(160, 168)
    w2 = jnp.zeros((5, 128, 160), f32).at[:, :84, :].set(
        conv_band(params["conv2_w"], 14, 10)).reshape(640, 160)

    # fc1: torch flatten order is (c,h,w); kernel lane order is h*128 + w*16 + c.
    fw1 = params["fc1_w"].astype(f32).reshape(120, 16, 5, 5).transpose(2, 3, 1, 0)
    fw1 = jnp.zeros((5, 128, 128), f32).at[:, :80, :120].set(
        fw1.reshape(5, 80, 120)).reshape(640, 128)
    fw2 = jnp.zeros((128, 128), f32).at[:120, :84].set(params["fc2_w"].astype(f32).T)
    fw3 = jnp.zeros((128, 128), f32).at[:84, :10].set(params["fc3_w"].astype(f32).T)

    pieces = {
        "w1": w1, "w2": w2,
        "sh1": pool_row_selector(28, 32), "sw1": pool_lane_selector(28, 6),
        "sh2": pool_row_selector(10, 16), "sw2": pool_lane_selector(10, 16),
        "fw1": fw1, "fw2": fw2, "fw3": fw3,
    }
    wslab = jnp.zeros((_SLAB_ROWS, 256), f32)
    for name, (off, rows, cols) in _SLAB_LAYOUT.items():
        wslab = wslab.at[off:off + rows, :cols].set(pieces[name])

    bslab = jnp.zeros((8, 256), f32)
    bslab = bslab.at[0, :168].set(jnp.tile(params["conv1_b"].astype(f32), 28))
    bslab = bslab.at[1, :160].set(jnp.tile(params["conv2_b"].astype(f32), 10))
    bslab = bslab.at[2, :120].set(params["fc1_b"].astype(f32))
    bslab = bslab.at[3, :84].set(params["fc2_b"].astype(f32))
    bslab = bslab.at[4, :10].set(params["fc3_b"].astype(f32))

    # Weights/selectors in bf16 (MXU operands); biases stay f32.
    return {"wslab": wslab.astype(jnp.bfloat16), "bslab": bslab}


# ---------------------------------------------------------------------------
# Forward wrapper: one fused pallas_call, no grid, whole-array VMEM blocks
# ---------------------------------------------------------------------------
def net_forward(prep, x):
    """x: (B, 1, 32, 32) NCHW -> logits (B, 10)."""
    batch = x.shape[0]
    assert x.shape[1:] == (1, 32, 32), "LeNet geometry requires (B, 1, 32, 32) input"
    x3 = x.astype(jnp.float32).reshape(batch, 32, 32)
    # Fold the 5 conv1 row taps into the contraction dim here (tiny fused XLA
    # concat, ~18 KiB) so conv1 is a single lane-dense GEMM inside the kernel.
    x_lhs = jnp.concatenate([x3[:, k:k + 28, :] for k in range(5)], axis=-1)  # (B,28,160)

    out = pl.pallas_call(
        _lenet_fused_kernel,
        out_shape=jax.ShapeDtypeStruct((batch, 128), jnp.float32),
        in_specs=[pl.BlockSpec(memory_space=pltpu.MemorySpace.VMEM)] * 3,
        out_specs=pl.BlockSpec(memory_space=pltpu.MemorySpace.VMEM),
        scratch_shapes=[pltpu.VMEM((batch, 640), jnp.float32)],   # flattened fc1 input
    )(x_lhs, prep["wslab"], prep["bslab"])
    return out[:, :10]


# ---------------------------------------------------------------------------
# Pure-JAX reference (validation only) and parameter init
# ---------------------------------------------------------------------------
def reference_forward(params, x):
    dn = ("NCHW", "OIHW", "NCHW")
    y = jax.lax.conv_general_dilated(x, params["conv1_w"], (1, 1), "VALID",
                                     dimension_numbers=dn)
    y = jax.nn.relu(y + params["conv1_b"][None, :, None, None])
    y = jax.lax.reduce_window(y, -jnp.inf, jax.lax.max, (1, 1, 2, 2), (1, 1, 2, 2), "VALID")
    y = jax.lax.conv_general_dilated(y, params["conv2_w"], (1, 1), "VALID",
                                     dimension_numbers=dn)
    y = jax.nn.relu(y + params["conv2_b"][None, :, None, None])
    y = jax.lax.reduce_window(y, -jnp.inf, jax.lax.max, (1, 1, 2, 2), (1, 1, 2, 2), "VALID")
    y = y.reshape(y.shape[0], -1)
    y = jax.nn.relu(y @ params["fc1_w"].T + params["fc1_b"])
    y = jax.nn.relu(y @ params["fc2_w"].T + params["fc2_b"])
    return y @ params["fc3_w"].T + params["fc3_b"]


def init_params(key):
    ks = jax.random.split(key, 10)

    def u(k, shape, fan_in):
        bound = 1.0 / jnp.sqrt(fan_in)
        return jax.random.uniform(k, shape, jnp.float32, -bound, bound)

    return {
        "conv1_w": u(ks[0], (6, 1, 5, 5), 1 * 5 * 5),
        "conv1_b": u(ks[1], (6,), 1 * 5 * 5),
        "conv2_w": u(ks[2], (16, 6, 5, 5), 6 * 5 * 5),
        "conv2_b": u(ks[3], (16,), 6 * 5 * 5),
        "fc1_w": u(ks[4], (120, 400), 400),
        "fc1_b": u(ks[5], (120,), 400),
        "fc2_w": u(ks[6], (84, 120), 120),
        "fc2_b": u(ks[7], (84,), 120),
        "fc3_w": u(ks[8], (10, 84), 84),
        "fc3_b": u(ks[9], (10,), 84),
    }


if __name__ == "__main__":
    key = jax.random.PRNGKey(0)
    pkey, xkey = jax.random.split(key)
    params = init_params(pkey)
    # LeNet geometry requires 32x32 single-channel input (16*5*5 flatten).
    x = jax.random.normal(xkey, (2, 1, 32, 32), jnp.float32)

    prep = preprocess_params(params)          # one-time weight re-layout / packing
    fwd = jax.jit(net_forward)
    out = jax.block_until_ready(fwd(prep, x))
    assert out.shape == (2, 10) and out.dtype == jnp.float32

    # Sanity check against a pure-JAX (XLA, f32) reference of the same module.
    ref = jax.block_until_ready(jax.jit(reference_forward)(params, x))
    max_err = float(jnp.max(jnp.abs(out - ref)))
    # bf16 MXU operands: expected max abs err ~1e-3 on O(0.1) logits.
    assert max_err < 5e-2, f"kernel/reference mismatch: max abs err = {max_err}"
    print("KERNEL_OK")
</pallas_src>

<mosaic_0001>
module attributes {stable_mosaic.version = 11 : i64} {
  func.func @_lenet_fused_kernel(%arg0: memref<2x28x160xf32, #tpu.memory_space<vmem>>, %arg1: memref<2080x256xbf16, #tpu.memory_space<vmem>>, %arg2: memref<8x256xf32, #tpu.memory_space<vmem>>, %arg3: memref<2x128xf32, #tpu.memory_space<vmem>>, %arg4: memref<2x640xf32, #tpu.memory_space<vmem>>) attributes {dimension_semantics = [], scalar_prefetch = 0 : i64, scratch_operands = 1 : i64, tpu.core_type = #tpu.core_type<tc>} {
    %c0 = arith.constant 0 : index
    %c0_0 = arith.constant 0 : index
    %0 = vector.load %arg2[%c0, %c0_0] : memref<8x256xf32, #tpu.memory_space<vmem>>, vector<1x168xf32>
    %1 = vector.shape_cast %0 : vector<1x168xf32> to vector<1x168xf32>
    %2 = vector.broadcast %1 : vector<1x168xf32> to vector<28x168xf32>
    %c1 = arith.constant 1 : index
    %c0_1 = arith.constant 0 : index
    %3 = vector.load %arg2[%c1, %c0_1] : memref<8x256xf32, #tpu.memory_space<vmem>>, vector<1x160xf32>
    %4 = vector.shape_cast %3 : vector<1x160xf32> to vector<1x160xf32>
    %5 = vector.broadcast %4 : vector<1x160xf32> to vector<10x160xf32>
    %c2 = arith.constant 2 : index
    %c0_2 = arith.constant 0 : index
    %6 = vector.load %arg2[%c2, %c0_2] : memref<8x256xf32, #tpu.memory_space<vmem>>, vector<1x128xf32>
    %7 = vector.shape_cast %6 : vector<1x128xf32> to vector<1x128xf32>
    %8 = vector.broadcast %7 : vector<1x128xf32> to vector<2x128xf32>
    %c3 = arith.constant 3 : index
    %c0_3 = arith.constant 0 : index
    %9 = vector.load %arg2[%c3, %c0_3] : memref<8x256xf32, #tpu.memory_space<vmem>>, vector<1x128xf32>
    %10 = vector.shape_cast %9 : vector<1x128xf32> to vector<1x128xf32>
    %11 = vector.broadcast %10 : vector<1x128xf32> to vector<2x128xf32>
    %c4 = arith.constant 4 : index
    %c0_4 = arith.constant 0 : index
    %12 = vector.load %arg2[%c4, %c0_4] : memref<8x256xf32, #tpu.memory_space<vmem>>, vector<1x128xf32>
    %13 = vector.shape_cast %12 : vector<1x128xf32> to vector<1x128xf32>
    %14 = vector.broadcast %13 : vector<1x128xf32> to vector<2x128xf32>
    %c0_5 = arith.constant 0 : index
    %c0_6 = arith.constant 0 : index
    %c0_7 = arith.constant 0 : index
    %15 = vector.load %arg0[%c0_5, %c0_6, %c0_7] : memref<2x28x160xf32, #tpu.memory_space<vmem>>, vector<1x28x160xf32>
    %16 = vector.shape_cast %15 : vector<1x28x160xf32> to vector<28x160xf32>
    %c0_8 = arith.constant 0 : index
    %c0_9 = arith.constant 0 : index
    %17 = vector.load %arg1[%c0_8, %c0_9] : memref<2080x256xbf16, #tpu.memory_space<vmem>>, vector<160x168xbf16>
    %18 = arith.truncf %16 : vector<28x160xf32> to vector<28x160xbf16>
    %cst = arith.constant dense<0.000000e+00> : vector<28x168xf32>
    %19 = tpu.matmul %18, %17, %cst {dimension_numbers = #tpu.dot_dimension_numbers<[1], [0], [0], [1], [0, 0, 1, 1], [], []>} : vector<28x160xbf16>, vector<160x168xbf16>, vector<28x168xf32> -> vector<28x168xf32>
    %20 = arith.addf %19, %2 : vector<28x168xf32>
    %cst_10 = arith.constant 0.000000e+00 : f32
    %21 = vector.broadcast %cst_10 : f32 to vector<28x168xf32>
    %22 = arith.maximumf %20, %21 : vector<28x168xf32>
    %c800 = arith.constant 800 : index
    %c0_11 = arith.constant 0 : index
    %23 = vector.load %arg1[%c800, %c0_11] : memref<2080x256xbf16, #tpu.memory_space<vmem>>, vector<32x28xbf16>
    %24 = arith.truncf %22 : vector<28x168xf32> to vector<28x168xbf16>
    %cst_12 = arith.constant dense<0.000000e+00> : vector<32x168xf32>
    %25 = tpu.matmul %23, %24, %cst_12 {dimension_numbers = #tpu.dot_dimension_numbers<[1], [0], [0], [1], [0, 0, 1, 1], [], []>} : vector<32x28xbf16>, vector<28x168xbf16>, vector<32x168xf32> -> vector<32x168xf32>
    %26 = vector.extract_strided_slice %25 {offsets = [0, 0], sizes = [14, 168], strides = [1, 1]} : vector<32x168xf32> to vector<14x168xf32>
    %27 = vector.extract_strided_slice %25 {offsets = [16, 0], sizes = [14, 168], strides = [1, 1]} : vector<32x168xf32> to vector<14x168xf32>
    %28 = arith.maximumf %26, %27 : vector<14x168xf32>
    %c832 = arith.constant 832 : index
    %c0_13 = arith.constant 0 : index
    %29 = vector.load %arg1[%c832, %c0_13] : memref<2080x256xbf16, #tpu.memory_space<vmem>>, vector<168x256xbf16>
    %30 = arith.truncf %28 : vector<14x168xf32> to vector<14x168xbf16>
    %cst_14 = arith.constant dense<0.000000e+00> : vector<14x256xf32>
    %31 = tpu.matmul %30, %29, %cst_14 {dimension_numbers = #tpu.dot_dimension_numbers<[1], [0], [0], [1], [0, 0, 1, 1], [], []>} : vector<14x168xbf16>, vector<168x256xbf16>, vector<14x256xf32> -> vector<14x256xf32>
    %32 = vector.extract_strided_slice %31 {offsets = [0, 0], sizes = [14, 128], strides = [1, 1]} : vector<14x256xf32> to vector<14x128xf32>
    %33 = vector.extract_strided_slice %31 {offsets = [0, 128], sizes = [14, 128], strides = [1, 1]} : vector<14x256xf32> to vector<14x128xf32>
    %34 = arith.maximumf %32, %33 : vector<14x128xf32>
    %35 = vector.extract_strided_slice %34 {offsets = [0, 0], sizes = [10, 128], strides = [1, 1]} : vector<14x128xf32> to vector<10x128xf32>
    %36 = vector.extract_strided_slice %34 {offsets = [1, 0], sizes = [10, 128], strides = [1, 1]} : vector<14x128xf32> to vector<10x128xf32>
    %37 = vector.extract_strided_slice %34 {offsets = [2, 0], sizes = [10, 128], strides = [1, 1]} : vector<14x128xf32> to vector<10x128xf32>
    %38 = vector.extract_strided_slice %34 {offsets = [3, 0], sizes = [10, 128], strides = [1, 1]} : vector<14x128xf32> to vector<10x128xf32>
    %39 = vector.extract_strided_slice %34 {offsets = [4, 0], sizes = [10, 128], strides = [1, 1]} : vector<14x128xf32> to vector<10x128xf32>
    %40 = tpu.concatenate %35, %36, %37, %38, %39 in 1 : vector<10x128xf32>, vector<10x128xf32>, vector<10x128xf32>, vector<10x128xf32>, vector<10x128xf32> -> vector<10x640xf32>
    %c160 = arith.constant 160 : index
    %c0_15 = arith.constant 0 : index
    %41 = vector.load %arg1[%c160, %c0_15] : memref<2080x256xbf16, #tpu.memory_space<vmem>>, vector<640x160xbf16>
    %42 = arith.truncf %40 : vector<10x640xf32> to vector<10x640xbf16>
    %cst_16 = arith.constant dense<0.000000e+00> : vector<10x160xf32>
    %43 = tpu.matmul %42, %41, %cst_16 {dimension_numbers = #tpu.dot_dimension_numbers<[1], [0], [0], [1], [0, 0, 1, 1], [], []>} : vector<10x640xbf16>, vector<640x160xbf16>, vector<10x160xf32> -> vector<10x160xf32>
    %44 = arith.addf %43, %5 : vector<10x160xf32>
    %cst_17 = arith.constant 0.000000e+00 : f32
    %45 = vector.broadcast %cst_17 : f32 to vector<10x160xf32>
    %46 = arith.maximumf %44, %45 : vector<10x160xf32>
    %c1008 = arith.constant 1008 : index
    %c0_18 = arith.constant 0 : index
    %47 = vector.load %arg1[%c1008, %c0_18] : memref<2080x256xbf16, #tpu.memory_space<vmem>>, vector<16x10xbf16>
    %48 = arith.truncf %46 : vector<10x160xf32> to vector<10x160xbf16>
    %cst_19 = arith.constant dense<0.000000e+00> : vector<16x160xf32>
    %49 = tpu.matmul %47, %48, %cst_19 {dimension_numbers = #tpu.dot_dimension_numbers<[1], [0], [0], [1], [0, 0, 1, 1], [], []>} : vector<16x10xbf16>, vector<10x160xbf16>, vector<16x160xf32> -> vector<16x160xf32>
    %50 = vector.extract_strided_slice %49 {offsets = [0, 0], sizes = [5, 160], strides = [1, 1]} : vector<16x160xf32> to vector<5x160xf32>
    %51 = vector.extract_strided_slice %49 {offsets = [8, 0], sizes = [5, 160], strides = [1, 1]} : vector<16x160xf32> to vector<5x160xf32>
    %52 = arith.maximumf %50, %51 : vector<5x160xf32>
    %c1024 = arith.constant 1024 : index
    %c0_20 = arith.constant 0 : index
    %53 = vector.load %arg1[%c1024, %c0_20] : memref<2080x256xbf16, #tpu.memory_space<vmem>>, vector<160x256xbf16>
    %54 = arith.truncf %52 : vector<5x160xf32> to vector<5x160xbf16>
    %cst_21 = arith.constant dense<0.000000e+00> : vector<5x256xf32>
    %55 = tpu.matmul %54, %53, %cst_21 {dimension_numbers = #tpu.dot_dimension_numbers<[1], [0], [0], [1], [0, 0, 1, 1], [], []>} : vector<5x160xbf16>, vector<160x256xbf16>, vector<5x256xf32> -> vector<5x256xf32>
    %56 = vector.extract_strided_slice %55 {offsets = [0, 0], sizes = [5, 128], strides = [1, 1]} : vector<5x256xf32> to vector<5x128xf32>
    %57 = vector.extract_strided_slice %55 {offsets = [0, 128], sizes = [5, 128], strides = [1, 1]} : vector<5x256xf32> to vector<5x128xf32>
    %58 = arith.maximumf %56, %57 : vector<5x128xf32>
    %59 = vector.extract_strided_slice %58 {offsets = [0, 0], sizes = [1, 128], strides = [1, 1]} : vector<5x128xf32> to vector<1x128xf32>
    %c0_22 = arith.constant 0 : index
    %c0_23 = arith.constant 0 : index
    %60 = vector.load %arg4[%c0_22, %c0_23] : memref<2x640xf32, #tpu.memory_space<vmem>>, vector<1x128xf32>
    tpu.vector_store %arg4[%c0_22, %c0_23], %59 {strides = array<i32>} : memref<2x640xf32, #tpu.memory_space<vmem>>, vector<1x128xf32>,
    %61 = vector.extract_strided_slice %58 {offsets = [1, 0], sizes = [1, 128], strides = [1, 1]} : vector<5x128xf32> to vector<1x128xf32>
    %c0_24 = arith.constant 0 : index
    %c128 = arith.constant 128 : index
    %62 = vector.load %arg4[%c0_24, %c128] : memref<2x640xf32, #tpu.memory_space<vmem>>, vector<1x128xf32>
    tpu.vector_store %arg4[%c0_24, %c128], %61 {strides = array<i32>} : memref<2x640xf32, #tpu.memory_space<vmem>>, vector<1x128xf32>,
    %63 = vector.extract_strided_slice %58 {offsets = [2, 0], sizes = [1, 128], strides = [1, 1]} : vector<5x128xf32> to vector<1x128xf32>
    %c0_25 = arith.constant 0 : index
    %c256 = arith.constant 256 : index
    %64 = vector.load %arg4[%c0_25, %c256] : memref<2x640xf32, #tpu.memory_space<vmem>>, vector<1x128xf32>
    tpu.vector_store %arg4[%c0_25, %c256], %63 {strides = array<i32>} : memref<2x640xf32, #tpu.memory_space<vmem>>, vector<1x128xf32>,
    %65 = vector.extract_strided_slice %58 {offsets = [3, 0], sizes = [1, 128], strides = [1, 1]} : vector<5x128xf32> to vector<1x128xf32>
    %c0_26 = arith.constant 0 : index
    %c384 = arith.constant 384 : index
    %66 = vector.load %arg4[%c0_26, %c384] : memref<2x640xf32, #tpu.memory_space<vmem>>, vector<1x128xf32>
    tpu.vector_store %arg4[%c0_26, %c384], %65 {strides = array<i32>} : memref<2x640xf32, #tpu.memory_space<vmem>>, vector<1x128xf32>,
    %67 = vector.extract_strided_slice %58 {offsets = [4, 0], sizes = [1, 128], strides = [1, 1]} : vector<5x128xf32> to vector<1x128xf32>
    %c0_27 = arith.constant 0 : index
    %c512 = arith.constant 512 : index
    %68 = vector.load %arg4[%c0_27, %c512] : memref<2x640xf32, #tpu.memory_space<vmem>>, vector<1x128xf32>
    tpu.vector_store %arg4[%c0_27, %c512], %67 {strides = array<i32>} : memref<2x640xf32, #tpu.memory_space<vmem>>, vector<1x128xf32>,
    %c1_28 = arith.constant 1 : index
    %c0_29 = arith.constant 0 : index
    %c0_30 = arith.constant 0 : index
    %69 = vector.load %arg0[%c1_28, %c0_29, %c0_30] : memref<2x28x160xf32, #tpu.memory_space<vmem>>, vector<1x28x160xf32>
    %70 = vector.shape_cast %69 : vector<1x28x160xf32> to vector<28x160xf32>
    %c0_31 = arith.constant 0 : index
    %c0_32 = arith.constant 0 : index
    %71 = vector.load %arg1[%c0_31, %c0_32] : memref<2080x256xbf16, #tpu.memory_space<vmem>>, vector<160x168xbf16>
    %72 = arith.truncf %70 : vector<28x160xf32> to vector<28x160xbf16>
    %cst_33 = arith.constant dense<0.000000e+00> : vector<28x168xf32>
    %73 = tpu.matmul %72, %71, %cst_33 {dimension_numbers = #tpu.dot_dimension_numbers<[1], [0], [0], [1], [0, 0, 1, 1], [], []>} : vector<28x160xbf16>, vector<160x168xbf16>, vector<28x168xf32> -> vector<28x168xf32>
    %74 = arith.addf %73, %2 : vector<28x168xf32>
    %cst_34 = arith.constant 0.000000e+00 : f32
    %75 = vector.broadcast %cst_34 : f32 to vector<28x168xf32>
    %76 = arith.maximumf %74, %75 : vector<28x168xf32>
    %c800_35 = arith.constant 800 : index
    %c0_36 = arith.constant 0 : index
    %77 = vector.load %arg1[%c800_35, %c0_36] : memref<2080x256xbf16, #tpu.memory_space<vmem>>, vector<32x28xbf16>
    %78 = arith.truncf %76 : vector<28x168xf32> to vector<28x168xbf16>
    %cst_37 = arith.constant dense<0.000000e+00> : vector<32x168xf32>
    %79 = tpu.matmul %77, %78, %cst_37 {dimension_numbers = #tpu.dot_dimension_numbers<[1], [0], [0], [1], [0, 0, 1, 1], [], []>} : vector<32x28xbf16>, vector<28x168xbf16>, vector<32x168xf32> -> vector<32x168xf32>
    %80 = vector.extract_strided_slice %79 {offsets = [0, 0], sizes = [14, 168], strides = [1, 1]} : vector<32x168xf32> to vector<14x168xf32>
    %81 = vector.extract_strided_slice %79 {offsets = [16, 0], sizes = [14, 168], strides = [1, 1]} : vector<32x168xf32> to vector<14x168xf32>
    %82 = arith.maximumf %80, %81 : vector<14x168xf32>
    %c832_38 = arith.constant 832 : index
    %c0_39 = arith.constant 0 : index
    %83 = vector.load %arg1[%c832_38, %c0_39] : memref<2080x256xbf16, #tpu.memory_space<vmem>>, vector<168x256xbf16>
    %84 = arith.truncf %82 : vector<14x168xf32> to vector<14x168xbf16>
    %cst_40 = arith.constant dense<0.000000e+00> : vector<14x256xf32>
    %85 = tpu.matmul %84, %83, %cst_40 {dimension_numbers = #tpu.dot_dimension_numbers<[1], [0], [0], [1], [0, 0, 1, 1], [], []>} : vector<14x168xbf16>, vector<168x256xbf16>, vector<14x256xf32> -> vector<14x256xf32>
    %86 = vector.extract_strided_slice %85 {offsets = [0, 0], sizes = [14, 128], strides = [1, 1]} : vector<14x256xf32> to vector<14x128xf32>
    %87 = vector.extract_strided_slice %85 {offsets = [0, 128], sizes = [14, 128], strides = [1, 1]} : vector<14x256xf32> to vector<14x128xf32>
    %88 = arith.maximumf %86, %87 : vector<14x128xf32>
    %89 = vector.extract_strided_slice %88 {offsets = [0, 0], sizes = [10, 128], strides = [1, 1]} : vector<14x128xf32> to vector<10x128xf32>
    %90 = vector.extract_strided_slice %88 {offsets = [1, 0], sizes = [10, 128], strides = [1, 1]} : vector<14x128xf32> to vector<10x128xf32>
    %91 = vector.extract_strided_slice %88 {offsets = [2, 0], sizes = [10, 128], strides = [1, 1]} : vector<14x128xf32> to vector<10x128xf32>
    %92 = vector.extract_strided_slice %88 {offsets = [3, 0], sizes = [10, 128], strides = [1, 1]} : vector<14x128xf32> to vector<10x128xf32>
    %93 = vector.extract_strided_slice %88 {offsets = [4, 0], sizes = [10, 128], strides = [1, 1]} : vector<14x128xf32> to vector<10x128xf32>
    %94 = tpu.concatenate %89, %90, %91, %92, %93 in 1 : vector<10x128xf32>, vector<10x128xf32>, vector<10x128xf32>, vector<10x128xf32>, vector<10x128xf32> -> vector<10x640xf32>
    %c160_41 = arith.constant 160 : index
    %c0_42 = arith.constant 0 : index
    %95 = vector.load %arg1[%c160_41, %c0_42] : memref<2080x256xbf16, #tpu.memory_space<vmem>>, vector<640x160xbf16>
    %96 = arith.truncf %94 : vector<10x640xf32> to vector<10x640xbf16>
    %cst_43 = arith.constant dense<0.000000e+00> : vector<10x160xf32>
    %97 = tpu.matmul %96, %95, %cst_43 {dimension_numbers = #tpu.dot_dimension_numbers<[1], [0], [0], [1], [0, 0, 1, 1], [], []>} : vector<10x640xbf16>, vector<640x160xbf16>, vector<10x160xf32> -> vector<10x160xf32>
    %98 = arith.addf %97, %5 : vector<10x160xf32>
    %cst_44 = arith.constant 0.000000e+00 : f32
    %99 = vector.broadcast %cst_44 : f32 to vector<10x160xf32>
    %100 = arith.maximumf %98, %99 : vector<10x160xf32>
    %c1008_45 = arith.constant 1008 : index
    %c0_46 = arith.constant 0 : index
    %101 = vector.load %arg1[%c1008_45, %c0_46] : memref<2080x256xbf16, #tpu.memory_space<vmem>>, vector<16x10xbf16>
    %102 = arith.truncf %100 : vector<10x160xf32> to vector<10x160xbf16>
    %cst_47 = arith.constant dense<0.000000e+00> : vector<16x160xf32>
    %103 = tpu.matmul %101, %102, %cst_47 {dimension_numbers = #tpu.dot_dimension_numbers<[1], [0], [0], [1], [0, 0, 1, 1], [], []>} : vector<16x10xbf16>, vector<10x160xbf16>, vector<16x160xf32> -> vector<16x160xf32>
    %104 = vector.extract_strided_slice %103 {offsets = [0, 0], sizes = [5, 160], strides = [1, 1]} : vector<16x160xf32> to vector<5x160xf32>
    %105 = vector.extract_strided_slice %103 {offsets = [8, 0], sizes = [5, 160], strides = [1, 1]} : vector<16x160xf32> to vector<5x160xf32>
    %106 = arith.maximumf %104, %105 : vector<5x160xf32>
    %c1024_48 = arith.constant 1024 : index
    %c0_49 = arith.constant 0 : index
    %107 = vector.load %arg1[%c1024_48, %c0_49] : memref<2080x256xbf16, #tpu.memory_space<vmem>>, vector<160x256xbf16>
    %108 = arith.truncf %106 : vector<5x160xf32> to vector<5x160xbf16>
    %cst_50 = arith.constant dense<0.000000e+00> : vector<5x256xf32>
    %109 = tpu.matmul %108, %107, %cst_50 {dimension_numbers = #tpu.dot_dimension_numbers<[1], [0], [0], [1], [0, 0, 1, 1], [], []>} : vector<5x160xbf16>, vector<160x256xbf16>, vector<5x256xf32> -> vector<5x256xf32>
    %110 = vector.extract_strided_slice %109 {offsets = [0, 0], sizes = [5, 128], strides = [1, 1]} : vector<5x256xf32> to vector<5x128xf32>
    %111 = vector.extract_strided_slice %109 {offsets = [0, 128], sizes = [5, 128], strides = [1, 1]} : vector<5x256xf32> to vector<5x128xf32>
    %112 = arith.maximumf %110, %111 : vector<5x128xf32>
    %113 = vector.extract_strided_slice %112 {offsets = [0, 0], sizes = [1, 128], strides = [1, 1]} : vector<5x128xf32> to vector<1x128xf32>
    %c1_51 = arith.constant 1 : index
    %c0_52 = arith.constant 0 : index
    %114 = vector.load %arg4[%c1_51, %c0_52] : memref<2x640xf32, #tpu.memory_space<vmem>>, vector<1x128xf32>
    tpu.vector_store %arg4[%c1_51, %c0_52], %113 {strides = array<i32>} : memref<2x640xf32, #tpu.memory_space<vmem>>, vector<1x128xf32>,
    %115 = vector.extract_strided_slice %112 {offsets = [1, 0], sizes = [1, 128], strides = [1, 1]} : vector<5x128xf32> to vector<1x128xf32>
    %c1_53 = arith.constant 1 : index
    %c128_54 = arith.constant 128 : index
    %116 = vector.load %arg4[%c1_53, %c128_54] : memref<2x640xf32, #tpu.memory_space<vmem>>, vector<1x128xf32>
    tpu.vector_store %arg4[%c1_53, %c128_54], %115 {strides = array<i32>} : memref<2x640xf32, #tpu.memory_space<vmem>>, vector<1x128xf32>,
    %117 = vector.extract_strided_slice %112 {offsets = [2, 0], sizes = [1, 128], strides = [1, 1]} : vector<5x128xf32> to vector<1x128xf32>
    %c1_55 = arith.constant 1 : index
    %c256_56 = arith.constant 256 : index
    %118 = vector.load %arg4[%c1_55, %c256_56] : memref<2x640xf32, #tpu.memory_space<vmem>>, vector<1x128xf32>
    tpu.vector_store %arg4[%c1_55, %c256_56], %117 {strides = array<i32>} : memref<2x640xf32, #tpu.memory_space<vmem>>, vector<1x128xf32>,
    %119 = vector.extract_strided_slice %112 {offsets = [3, 0], sizes = [1, 128], strides = [1, 1]} : vector<5x128xf32> to vector<1x128xf32>
    %c1_57 = arith.constant 1 : index
    %c384_58 = arith.constant 384 : index
    %120 = vector.load %arg4[%c1_57, %c384_58] : memref<2x640xf32, #tpu.memory_space<vmem>>, vector<1x128xf32>
    tpu.vector_store %arg4[%c1_57, %c384_58], %119 {strides = array<i32>} : memref<2x640xf32, #tpu.memory_space<vmem>>, vector<1x128xf32>,
    %121 = vector.extract_strided_slice %112 {offsets = [4, 0], sizes = [1, 128], strides = [1, 1]} : vector<5x128xf32> to vector<1x128xf32>
    %c1_59 = arith.constant 1 : index
    %c512_60 = arith.constant 512 : index
    %122 = vector.load %arg4[%c1_59, %c512_60] : memref<2x640xf32, #tpu.memory_space<vmem>>, vector<1x128xf32>
    tpu.vector_store %arg4[%c1_59, %c512_60], %121 {strides = array<i32>} : memref<2x640xf32, #tpu.memory_space<vmem>>, vector<1x128xf32>,
    %c0_61 = arith.constant 0 : index
    %c0_62 = arith.constant 0 : index
    %123 = vector.load %arg4[%c0_61, %c0_62] : memref<2x640xf32, #tpu.memory_space<vmem>>, vector<2x640xf32>
    %c1184 = arith.constant 1184 : index
    %c0_63 = arith.constant 0 : index
    %124 = vector.load %arg1[%c1184, %c0_63] : memref<2080x256xbf16, #tpu.memory_space<vmem>>, vector<640x128xbf16>
    %125 = arith.truncf %123 : vector<2x640xf32> to vector<2x640xbf16>
    %cst_64 = arith.constant dense<0.000000e+00> : vector<2x128xf32>
    %126 = tpu.matmul %125, %124, %cst_64 {dimension_numbers = #tpu.dot_dimension_numbers<[1], [0], [0], [1], [0, 0, 1, 1], [], []>} : vector<2x640xbf16>, vector<640x128xbf16>, vector<2x128xf32> -> vector<2x128xf32>
    %127 = arith.addf %126, %8 : vector<2x128xf32>
    %cst_65 = arith.constant 0.000000e+00 : f32
    %128 = vector.broadcast %cst_65 : f32 to vector<2x128xf32>
    %129 = arith.maximumf %127, %128 : vector<2x128xf32>
    %c1824 = arith.constant 1824 : index
    %c0_66 = arith.constant 0 : index
    %130 = vector.load %arg1[%c1824, %c0_66] : memref<2080x256xbf16, #tpu.memory_space<vmem>>, vector<128x128xbf16>
    %131 = arith.truncf %129 : vector<2x128xf32> to vector<2x128xbf16>
    %cst_67 = arith.constant dense<0.000000e+00> : vector<2x128xf32>
    %132 = tpu.matmul %131, %130, %cst_67 {dimension_numbers = #tpu.dot_dimension_numbers<[1], [0], [0], [1], [0, 0, 1, 1], [], []>} : vector<2x128xbf16>, vector<128x128xbf16>, vector<2x128xf32> -> vector<2x128xf32>
    %133 = arith.addf %132, %11 : vector<2x128xf32>
    %cst_68 = arith.constant 0.000000e+00 : f32
    %134 = vector.broadcast %cst_68 : f32 to vector<2x128xf32>
    %135 = arith.maximumf %133, %134 : vector<2x128xf32>
    %c1952 = arith.constant 1952 : index
    %c0_69 = arith.constant 0 : index
    %136 = vector.load %arg1[%c1952, %c0_69] : memref<2080x256xbf16, #tpu.memory_space<vmem>>, vector<128x128xbf16>
    %137 = arith.truncf %135 : vector<2x128xf32> to vector<2x128xbf16>
    %cst_70 = arith.constant dense<0.000000e+00> : vector<2x128xf32>
    %138 = tpu.matmul %137, %136, %cst_70 {dimension_numbers = #tpu.dot_dimension_numbers<[1], [0], [0], [1], [0, 0, 1, 1], [], []>} : vector<2x128xbf16>, vector<128x128xbf16>, vector<2x128xf32> -> vector<2x128xf32>
    %139 = arith.addf %138, %14 : vector<2x128xf32>
    %c0_71 = arith.constant 0 : index
    %c0_72 = arith.constant 0 : index
    %140 = vector.load %arg3[%c0_71, %c0_72] : memref<2x128xf32, #tpu.memory_space<vmem>>, vector<2x128xf32>
    tpu.vector_store %arg3[%c0_71, %c0_72], %139 {strides = array<i32>} : memref<2x128xf32, #tpu.memory_space<vmem>>, vector<2x128xf32>,
    return
  }
}

</mosaic_0001>

<llo_original>
// kernel: net_forward.1
$region0: #{net_forward.1}
  #allocation0 [shape = 'u32[]', space=smem, size = 0x4, offset = 0x4, fixed_abs, tag = 'smem constant byte address 0x4 - core index']
  #allocation1 [shape = 'u32[144,128]{1,0:T(1,128)}', space=vmem, size = 0x12000, scoped, tag = 'internal scratch']
  #allocation2 [shape = 'f32[2,640]{1,0:T(2,128)}', space=vmem, size = 0x1400, scoped, tag = 'scratch operand']
  %s0 = inlined_call_operand.vmem [shape: f32[2,28,160], index: 0, kind: input, shape index: {}]
  %s1 = inlined_call_operand.hbm [shape: bf16[2080,256], index: 1, kind: input, shape index: {}]
  %s2 = inlined_call_operand.hbm [shape: f32[8,256], index: 2, kind: input, shape index: {}]
  %s3 = inlined_call_operand.hbm [shape: f32[2,128], index: 3, kind: output, shape index: {}]
  %s4 = sld [smem:[#allocation0]]
  $region30: #{net_forward.1} parent=0
    _
  %s6 = ssub.s32 1, %s4
  %s7 = scalar_select 0, %s6, %s4
  $region1: #{net_forward.1} parent=0
    #allocation3 [shape = 'u8[1064960]{0}', space=vmem, size = 0x104000, scoped, tag = 'input window, operand 1, single buffered']
    #allocation4 [shape = 's32[1]{0}', space=sflag, size = 0x4, scoped, tag = 'scoped memory for net_forward.1']
    #allocation5 [shape = 's32[1]{0}', space=sflag, size = 0x4, scoped, tag = 'scoped memory for net_forward.1']
    #allocation6 [shape = 'u8[8192]{0}', space=vmem, size = 0x2000, scoped, tag = 'input window, operand 2, single buffered']
    #allocation7 [shape = 's32[1]{0}', space=sflag, size = 0x4, scoped, tag = 'scoped memory for net_forward.1']
    #allocation8 [shape = 'u8[1024]{0}', space=vmem, size = 0x400, scoped, tag = 'output window, operand 0, single buffered']
    %8 = vsyncpa [#allocation4], 0
    %9 = vsyncpa [#allocation7], 0
    %10 = vsyncpa [#allocation5], 0
    // Predicated region
    $region2: #{net_forward.1} parent=1 // pred_check
      _
    $region3: #{net_forward.1} parent=1 // pred_check_branch
      %12 = sbr.rel (0) target = $region5
    $region4: #{net_forward.1} parent=1 // pred_region
      _
    $region5: #{net_forward.1} parent=1 // pred_fallthru
      _
    // Predicated region
    $region6: #{net_forward.1} parent=1 // pred_check
      _
    $region7: #{net_forward.1} parent=1 // pred_check_branch
      %14 = sbr.rel (0) target = $region9
    $region8: #{net_forward.1} parent=1 // pred_region
      %s16 = ssub.s32 33280, 33280
      %17 = vsyncadd [#allocation4], %s16
      %s18 = sshll.u32 [#allocation3], 4
      %s19 = int_to_ptr.vmem [resolvable:$true] %s18
      %24 = dma.hbm_to_vmem [thread:$0]  %s1, 33280, %s19, [#allocation4], 128, 128, 8
    $region9: #{net_forward.1} parent=1 // pred_fallthru
      _
    // Predicated region
    $region10: #{net_forward.1} parent=1 // pred_check
      _
    $region11: #{net_forward.1} parent=1 // pred_check_branch
      %26 = sbr.rel (0) target = $region13
    $region12: #{net_forward.1} parent=1 // pred_region
      %s28 = ssub.s32 256, 256
      %29 = vsyncadd [#allocation7], %s28
      %s31 = sshll.u32 [#allocation6], 4
      %s32 = int_to_ptr.vmem [resolvable:$true] %s31
      %34 = dma.hbm_to_vmem [thread:$0]  %s2, 256, %s32, [#allocation7]
    $region13: #{net_forward.1} parent=1 // pred_fallthru
      _
    // Predicated region
    $region14: #{net_forward.1} parent=1 // pred_check
      _
    $region15: #{net_forward.1} parent=1 // pred_check_branch
      %36 = sbr.rel (0) target = $region17
    $region16: #{net_forward.1} parent=1 // pred_region
      %37 = dma.done [#allocation4], 33280
    $region17: #{net_forward.1} parent=1 // pred_fallthru
      _
    // Predicated region
    $region18: #{net_forward.1} parent=1 // pred_check
      _
    $region19: #{net_forward.1} parent=1 // pred_check_branch
      %39 = sbr.rel (0) target = $region21
    $region20: #{net_forward.1} parent=1 // pred_region
      %40 = dma.done [#allocation7], 256
    $region21: #{net_forward.1} parent=1 // pred_fallthru
      _
    %v42 = vld [vmem:[#allocation6] ss:$8 sm:$0x3]
    %v44 = vlaneseq
    %v45 = vshrl.u32 %v44, 7
    %v46 = vsub.s32 0, %v45
    %v47 = vrot.slane %v42, %v46
    %v48 = vlaneseq
    %v49 = vshrl.u32 %v48, 7
    %v50 = vsub.s32 1, %v49
    %v51 = vrot.slane %v42, %v50
    %s54 = scalar_lea.vmem [#allocation6], 1
    %v55 = vld [vmem:[%s54] ss:$8 sm:$0x3]
    %v57 = vlaneseq
    %v58 = vshrl.u32 %v57, 7
    %v59 = vsub.s32 0, %v58
    %v60 = vrot.slane %v55, %v59
    %v61 = vlaneseq
    %v62 = vshrl.u32 %v61, 7
    %v63 = vsub.s32 1, %v62
    %v64 = vrot.slane %v55, %v63
    %v67 = vld [vmem:[#allocation6 + $0x2] ss:$0 sm:$0xff]
    %v68 = vld [vmem:[#allocation6 + $0x3] ss:$0 sm:$0xff]
    %v69 = vld [vmem:[#allocation6 + $0x4] ss:$0 sm:$0xff]
    %v70 = vld [vmem:[%s0] sm:$0xff]
    %v71 = vld [vmem:[%s0 + $0x8] sm:$0xff]
    %v72 = vld [vmem:[%s0 + $0x10] sm:$0xff]
    %v73 = vld [vmem:[%s0 + $0x18] sm:$0xff]
    %v74 = vld [vmem:[%s0 + $0x20] sm:$0xff]
    %v75 = vld [vmem:[%s0 + $0x28] sm:$0xff]
    %v76 = vld [vmem:[%s0 + $0x30] sm:$0xf]
    %v77 = vld [vmem:[%s0 + $0x38] sm:$0xf]
    %v78 = vld [vmem:[#allocation3] sm:$0xff]
    %v79 = vld [vmem:[#allocation3 + $0x8] sm:$0xff]
    %v80 = vld [vmem:[#allocation3 + $0x10] sm:$0xff]
    %v81 = vld [vmem:[#allocation3 + $0x18] sm:$0xff]
    %v82 = vld [vmem:[#allocation3 + $0x20] sm:$0xff]
    %v83 = vld [vmem:[#allocation3 + $0x28] sm:$0xff]
    %v84 = vld [vmem:[#allocation3 + $0x30] sm:$0xff]
    %v85 = vld [vmem:[#allocation3 + $0x38] sm:$0xff]
    %v86 = vld [vmem:[#allocation3 + $0x40] sm:$0xff]
    %v87 = vld [vmem:[#allocation3 + $0x48] sm:$0xff]
    %v88 = vld [vmem:[#allocation3 + $0x50] sm:$0xff]
    %v89 = vld [vmem:[#allocation3 + $0x58] sm:$0xff]
    %v90 = vld [vmem:[#allocation3 + $0x60] sm:$0xff]
    %v91 = vld [vmem:[#allocation3 + $0x68] sm:$0xff]
    %v92 = vld [vmem:[#allocation3 + $0x70] sm:$0xff]
    %v93 = vld [vmem:[#allocation3 + $0x78] sm:$0xff]
    %v94 = vld [vmem:[#allocation3 + $0x80] sm:$0xff]
    %v95 = vld [vmem:[#allocation3 + $0x88] sm:$0xff]
    %v96 = vld [vmem:[#allocation3 + $0x90] sm:$0xff]
    %v97 = vld [vmem:[#allocation3 + $0x98] sm:$0xff]
    %v98 = vpack.c.bf16 %v72, %v70
    %v99 = vpack.c.bf16 %v73, %v71
    %v100 = vpack.c.bf16 %v76, %v74
    %v101 = vpack.c.bf16 %v77, %v75
    %v122 = vunpack.c.l.b16 %v78
    %v123 = vunpack.c.h.b16 %v78
    %v124 = vunpack.c.l.b16 %v79
    %v125 = vunpack.c.h.b16 %v79
    %v126 = vunpack.c.l.b16 %v80
    %v127 = vunpack.c.h.b16 %v80
    %v128 = vunpack.c.l.b16 %v81
    %v129 = vunpack.c.h.b16 %v81
    %v130 = vunpack.c.l.b16 %v82
    %v131 = vunpack.c.h.b16 %v82
    %v132 = vunpack.c.l.b16 %v83
    %v133 = vunpack.c.h.b16 %v83
    %v134 = vunpack.c.l.b16 %v84
    %v135 = vunpack.c.h.b16 %v84
    %v136 = vunpack.c.l.b16 %v85
    %v137 = vunpack.c.h.b16 %v85
    %v138 = vunpack.c.l.b16 %v86
    %v139 = vunpack.c.h.b16 %v86
    %v140 = vunpack.c.l.b16 %v87
    %v141 = vunpack.c.h.b16 %v87
    %v142 = vunpack.c.l.b16 %v88
    %v143 = vunpack.c.h.b16 %v88
    %v144 = vunpack.c.l.b16 %v89
    %v145 = vunpack.c.h.b16 %v89
    %v146 = vunpack.c.l.b16 %v90
    %v147 = vunpack.c.h.b16 %v90
    %v148 = vunpack.c.l.b16 %v91
    %v149 = vunpack.c.h.b16 %v91
    %v150 = vunpack.c.l.b16 %v92
    %v151 = vunpack.c.h.b16 %v92
    %v152 = vunpack.c.l.b16 %v93
    %v153 = vunpack.c.h.b16 %v93
    %v154 = vunpack.c.l.b16 %v94
    %v155 = vunpack.c.h.b16 %v94
    %v156 = vunpack.c.l.b16 %v95
    %v157 = vunpack.c.h.b16 %v95
    %v158 = vunpack.c.l.b16 %v96
    %v159 = vunpack.c.h.b16 %v96
    %v160 = vunpack.c.l.b16 %v97
    %v161 = vunpack.c.h.b16 %v97
    %v162 = vpack.c.b16 %v124, %v122
    %v163 = vpack.c.b16 %v125, %v123
    %v164 = vpack.c.b16 %v128, %v126
    %v165 = vpack.c.b16 %v129, %v127
    %v166 = vpack.c.b16 %v132, %v130
    %v167 = vpack.c.b16 %v133, %v131
    %v168 = vpack.c.b16 %v136, %v134
    %v169 = vpack.c.b16 %v137, %v135
    %v170 = vpack.c.b16 %v140, %v138
    %v171 = vpack.c.b16 %v141, %v139
    %v172 = vpack.c.b16 %v144, %v142
    %v173 = vpack.c.b16 %v145, %v143
    %v174 = vpack.c.b16 %v148, %v146
    %v175 = vpack.c.b16 %v149, %v147
    %v176 = vpack.c.b16 %v152, %v150
    %v177 = vpack.c.b16 %v153, %v151
    %v178 = vpack.c.b16 %v156, %v154
    %v179 = vpack.c.b16 %v157, %v155
    %v180 = vpack.c.b16 %v160, %v158
    %v181 = vpack.c.b16 %v161, %v159
    %vm202 = vcmask 261120
    %v204 = vsel %vm202, %v99, 0
    %v207 = vsel %vm202, %v101, 0
    %209 = vmatprep.subr.bf16.mxu0 %v177
    %210 = vmatpush1.bf16.msra.mxu0 %v176
    %211 = vmatprep.subr.bf16.mxu0 %v175
    %212 = vmatpush1.bf16.msra.mxu0 %v174
    %213 = vmatprep.subr.bf16.mxu0 %v173
    %214 = vmatpush1.bf16.msra.mxu0 %v172
    %215 = vmatprep.subr.bf16.mxu0 %v171
    %216 = vmatpush1.bf16.msra.mxu0 %v170
    %217 = vmatprep.subr.bf16.mxu0 %v169
    %218 = vmatpush1.bf16.msra.mxu0 %v168
    %219 = vmatprep.subr.bf16.mxu0 %v167
    %220 = vmatpush1.bf16.msra.mxu0 %v166
    %221 = vmatprep.subr.bf16.mxu0 %v165
    %222 = vmatpush1.bf16.msra.mxu0 %v164
    %223 = vmatprep.subr.bf16.mxu0 %v163
    %224 = vmatpush1.bf16.msra.mxu0 %v162
    %225 = vmatprep.subr.bf16.mxu0 0
    %226 = vmatpush2.bf16.msra.mxu0 0
    %227 = vmatprep.subr.bf16.mxu0 0
    %228 = vmatpush2.bf16.msra.mxu0 0
    %229 = vmatprep.subr.bf16.mxu0 0
    %230 = vmatpush2.bf16.msra.mxu0 0
    %231 = vmatprep.subr.bf16.mxu0 0
    %232 = vmatpush2.bf16.msra.mxu0 0
    %233 = vmatprep.subr.bf16.mxu0 0
    %234 = vmatpush2.bf16.msra.mxu0 0
    %235 = vmatprep.subr.bf16.mxu0 0
    %236 = vmatpush2.bf16.msra.mxu0 0
    %237 = vmatprep.subr.bf16.mxu0 %v181
    %238 = vmatpush2.bf16.msra.mxu0 %v180
    %239 = vmatprep.subr.bf16.mxu0 %v179
    %240 = vmatpush2.bf16.msra.mxu0 %v178
    %241 = vmatprep.mubr.bf16.mxu0 %v204
    %242 = vmatmul.mubr.bf16.gmra.mxu0 %v98
    %v243 = vpop.f32.mrf.mxu0
    %v244 = vadd.f32 %v47, %v243
    %v245 = vpop.f32.mrf.mxu0
    %v246 = vadd.f32 %v51, %v245
    %v247 = vpop.f32.mrf.mxu0
    %v248 = vadd.f32 %v47, %v247
    %v249 = vpop.f32.mrf.mxu0
    %v250 = vadd.f32 %v51, %v249
    %251 = vmatprep.mubr.bf16.mxu0 %v207
    %252 = vmatmul.mubr.bf16.gmra.mxu0 %v100
    %v253 = vpop.f32.mrf.mxu0
    %v254 = vadd.f32 %v47, %v253
    %v255 = vpop.f32.mrf.mxu0
    %v256 = vadd.f32 %v51, %v255
    %v257 = vpop.f32.mrf.mxu0
    %v258 = vadd.f32 %v47, %v257
    %v259 = vpop.f32.mrf.mxu0
    %v260 = vadd.f32 %v51, %v259
    %261 = vdwg.mxu0
    %v262 = vmax.f32 %v244, 0.0
    %v263 = vmax.f32 %v246, 0.0
    %v264 = vmax.f32 %v248, 0.0
    %v265 = vmax.f32 %v250, 0.0
    %v266 = vmax.f32 %v254, 0.0
    %v267 = vmax.f32 %v256, 0.0
    %v268 = vmax.f32 %v258, 0.0
    %v269 = vmax.f32 %v260, 0.0
    %v270 = vld [vmem:[#allocation3 + $0x320] sm:$0xf]
    %v271 = vld [vmem:[#allocation3 + $0x328] sm:$0xf]
    %v272 = vld [vmem:[#allocation3 + $0x330] sm:$0xf]
    %v273 = vld [vmem:[#allocation3 + $0x338] sm:$0xf]
    %v274 = vpack.c.bf16 %v264, %v262
    %v275 = vpack.c.bf16 %v265, %v263
    %v276 = vpack.c.bf16 %v268, %v266
    %v277 = vpack.c.bf16 %v269, %v267
    %v282 = vunpack.c.l.b16 %v270
    %v283 = vunpack.c.l.b16 %v271
    %v284 = vunpack.c.l.b16 %v272
    %v285 = vunpack.c.l.b16 %v273
    %v286 = vpack.c.b16 %v283, %v282
    %v287 = vpack.c.b16 %v285, %v284
    %vm288 = vcmask 228352
    %v290 = vsel %vm288, %v286, 0
    %v293 = vsel %vm288, %v287, 0
    %vm295 = vcmask 1045504
    %v297 = vsel %vm295, %v276, 0
    %v300 = vsel %vm295, %v277, 0
    %302 = vmatprep.subr.bf16.mxu0 0
    %303 = vmatpush1.bf16.msra.mxu0 0
    %304 = vmatprep.subr.bf16.mxu0 0
    %305 = vmatpush1.bf16.msra.mxu0 0
    %306 = vmatprep.subr.bf16.mxu0 0
    %307 = vmatpush1.bf16.msra.mxu0 0
    %308 = vmatprep.subr.bf16.mxu0 0
    %309 = vmatpush1.bf16.msra.mxu0 0
    %310 = vmatprep.subr.bf16.mxu0 0
    %311 = vmatpush1.bf16.msra.mxu0 0
    %312 = vmatprep.subr.bf16.mxu0 0
    %313 = vmatpush1.bf16.msra.mxu0 0
    %314 = vmatprep.subr.bf16.mxu0 %v300
    %315 = vmatpush1.bf16.msra.mxu0 %v297
    %316 = vmatprep.subr.bf16.mxu0 %v275
    %317 = vmatpush1.bf16.msra.mxu0 %v274
    %318 = vmatprep.subr.bf16.mxu0 0
    %319 = vmatpush2.bf16.msra.mxu0 0
    %320 = vmatprep.subr.bf16.mxu0 0
    %321 = vmatpush2.bf16.msra.mxu0 0
    %322 = vmatprep.subr.bf16.mxu0 0
    %323 = vmatpush2.bf16.msra.mxu0 0
    %324 = vmatprep.subr.bf16.mxu0 0
    %325 = vmatpush2.bf16.msra.mxu0 0
    %326 = vmatprep.subr.bf16.mxu0 0
    %327 = vmatpush2.bf16.msra.mxu0 0
    %328 = vmatprep.subr.bf16.mxu0 0
    %329 = vmatpush2.bf16.msra.mxu0 0
    %330 = vmatprep.subr.bf16.mxu0 0
    %331 = vmatpush2.bf16.msra.mxu0 0
    %332 = vmatprep.subr.bf16.mxu0 0
    %333 = vmatpush2.bf16.msra.mxu0 0
    %334 = vmatprep.mubr.bf16.mxu0 0
    %335 = vmatmul.mubr.bf16.gmra.mxu0 %v290
    %v336 = vpop.f32.mrf.mxu0
    %v337 = vadd.f32 0.0, %v336
    %v338 = vpop.f32.mrf.mxu0
    %v339 = vadd.f32 0.0, %v338
    %v340 = vpop.f32.mrf.mxu0
    %v341 = vadd.f32 0.0, %v340
    %v342 = vpop.f32.mrf.mxu0
    %v343 = vadd.f32 0.0, %v342
    %344 = vmatprep.mubr.bf16.mxu0 0
    %345 = vmatmul.mubr.bf16.gmra.mxu0 %v293
    %v346 = vpop.f32.mrf.mxu0
    %v347 = vadd.f32 0.0, %v346
    %v348 = vpop.f32.mrf.mxu0
    %v349 = vadd.f32 0.0, %v348
    %v350 = vpop.f32.mrf.mxu0
    %v351 = vadd.f32 0.0, %v350
    %v352 = vpop.f32.mrf.mxu0
    %v353 = vadd.f32 0.0, %v352
    %354 = vdwg.mxu0
    %v355 = vmax.f32 %v337, %v347
    %v356 = vmax.f32 %v339, %v349
    %v357 = vmax.f32 %v341, %v351
    %v358 = vmax.f32 %v343, %v353
    %v359 = vld [vmem:[#allocation3 + $0x340] sm:$0xff]
    %v360 = vld [vmem:[#allocation3 + $0x348] sm:$0xff]
    %v361 = vld [vmem:[#allocation3 + $0x350] sm:$0xff]
    %v362 = vld [vmem:[#allocation3 + $0x358] sm:$0xff]
    %v363 = vld [vmem:[#allocation3 + $0x360] sm:$0xff]
    %v364 = vld [vmem:[#allocation3 + $0x368] sm:$0xff]
    %v365 = vld [vmem:[#allocation3 + $0x370] sm:$0xff]
    %v366 = vld [vmem:[#allocation3 + $0x378] sm:$0xff]
    %v367 = vld [vmem:[#allocation3 + $0x380] sm:$0xff]
    %v368 = vld [vmem:[#allocation3 + $0x388] sm:$0xff]
    %v369 = vld [vmem:[#allocation3 + $0x390] sm:$0xff]
    %v370 = vld [vmem:[#allocation3 + $0x398] sm:$0xff]
    %v371 = vld [vmem:[#allocation3 + $0x3a0] sm:$0xff]
    %v372 = vld [vmem:[#allocation3 + $0x3a8] sm:$0xff]
    %v373 = vld [vmem:[#allocation3 + $0x3b0] sm:$0xff]
    %v374 = vld [vmem:[#allocation3 + $0x3b8] sm:$0xff]
    %v375 = vld [vmem:[#allocation3 + $0x3c0] sm:$0xff]
    %v376 = vld [vmem:[#allocation3 + $0x3c8] sm:$0xff]
    %v377 = vld [vmem:[#allocation3 + $0x3d0] sm:$0xff]
    %v378 = vld [vmem:[#allocation3 + $0x3d8] sm:$0xff]
    %v379 = vld [vmem:[#allocation3 + $0x3e0] sm:$0xff]
    %v380 = vpack.c.bf16 %v357, %v355
    %v381 = vpack.c.bf16 %v358, %v356
    %v403 = vunpack.c.l.b16 %v359
    %v404 = vunpack.c.h.b16 %v359
    %v405 = vunpack.c.l.b16 %v360
    %v406 = vunpack.c.h.b16 %v360
    %v407 = vunpack.c.l.b16 %v361
    %v408 = vunpack.c.h.b16 %v361
    %v409 = vunpack.c.l.b16 %v362
    %v410 = vunpack.c.h.b16 %v362
    %v411 = vunpack.c.l.b16 %v363
    %v412 = vunpack.c.h.b16 %v363
    %v413 = vunpack.c.l.b16 %v364
    %v414 = vunpack.c.h.b16 %v364
    %v415 = vunpack.c.l.b16 %v365
    %v416 = vunpack.c.h.b16 %v365
    %v417 = vunpack.c.l.b16 %v366
    %v418 = vunpack.c.h.b16 %v366
    %v419 = vunpack.c.l.b16 %v367
    %v420 = vunpack.c.h.b16 %v367
    %v421 = vunpack.c.l.b16 %v368
    %v422 = vunpack.c.h.b16 %v368
    %v423 = vunpack.c.l.b16 %v369
    %v424 = vunpack.c.h.b16 %v369
    %v425 = vunpack.c.l.b16 %v370
    %v426 = vunpack.c.h.b16 %v370
    %v427 = vunpack.c.l.b16 %v371
    %v428 = vunpack.c.h.b16 %v371
    %v429 = vunpack.c.l.b16 %v372
    %v430 = vunpack.c.h.b16 %v372
    %v431 = vunpack.c.l.b16 %v373
    %v432 = vunpack.c.h.b16 %v373
    %v433 = vunpack.c.l.b16 %v374
    %v434 = vunpack.c.h.b16 %v374
    %v435 = vunpack.c.l.b16 %v375
    %v436 = vunpack.c.h.b16 %v375
    %v437 = vunpack.c.l.b16 %v376
    %v438 = vunpack.c.h.b16 %v376
    %v439 = vunpack.c.l.b16 %v377
    %v440 = vunpack.c.h.b16 %v377
    %v441 = vunpack.c.l.b16 %v378
    %v442 = vunpack.c.h.b16 %v378
    %v443 = vunpack.c.l.b16 %v379
    %v444 = vunpack.c.h.b16 %v379
    %v445 = vpack.c.b16 %v405, %v403
    %v446 = vpack.c.b16 %v406, %v404
    %v447 = vpack.c.b16 %v409, %v407
    %v448 = vpack.c.b16 %v410, %v408
    %v449 = vpack.c.b16 %v413, %v411
    %v450 = vpack.c.b16 %v414, %v412
    %v451 = vpack.c.b16 %v417, %v415
    %v452 = vpack.c.b16 %v418, %v416
    %v453 = vpack.c.b16 %v421, %v419
    %v454 = vpack.c.b16 %v422, %v420
    %v455 = vpack.c.b16 %v425, %v423
    %v456 = vpack.c.b16 %v426, %v424
    %v457 = vpack.c.b16 %v429, %v427
    %v458 = vpack.c.b16 %v430, %v428
    %v459 = vpack.c.b16 %v433, %v431
    %v460 = vpack.c.b16 %v434, %v432
    %v461 = vpack.c.b16 %v437, %v435
    %v462 = vpack.c.b16 %v438, %v436
    %v463 = vpack.c.b16 %v441, %v439
    %v464 = vpack.c.b16 %v442, %v440
    %v465 = vpack.c.b16 %v443, %v443
    %v466 = vpack.c.b16 %v444, %v444
    %vm487 = vcmask 326656
    %v489 = vsel %vm487, %v381, 0
    %vm491 = vcmask 1043456
    %v493 = vsel %vm491, %v465, 0
    %v496 = vsel %vm491, %v466, 0
    %498 = vmatprep.subr.bf16.mxu0 %v460
    %499 = vmatpush1.bf16.msra.mxu0 %v459
    %500 = vmatprep.subr.bf16.mxu0 %v458
    %501 = vmatpush1.bf16.msra.mxu0 %v457
    %502 = vmatprep.subr.bf16.mxu0 %v456
    %503 = vmatpush1.bf16.msra.mxu0 %v455
    %504 = vmatprep.subr.bf16.mxu0 %v454
    %505 = vmatpush1.bf16.msra.mxu0 %v453
    %506 = vmatprep.subr.bf16.mxu0 %v452
    %507 = vmatpush1.bf16.msra.mxu0 %v451
    %508 = vmatprep.subr.bf16.mxu0 %v450
    %509 = vmatpush1.bf16.msra.mxu0 %v449
    %510 = vmatprep.subr.bf16.mxu0 %v448
    %511 = vmatpush1.bf16.msra.mxu0 %v447
    %512 = vmatprep.subr.bf16.mxu0 %v446
    %513 = vmatpush1.bf16.msra.mxu0 %v445
    %514 = vmatprep.subr.bf16.mxu0 0
    %515 = vmatpush2.bf16.msra.mxu0 0
    %516 = vmatprep.subr.bf16.mxu0 0
    %517 = vmatpush2.bf16.msra.mxu0 0
    %518 = vmatprep.subr.bf16.mxu0 0
    %519 = vmatpush2.bf16.msra.mxu0 0
    %520 = vmatprep.subr.bf16.mxu0 0
    %521 = vmatpush2.bf16.msra.mxu0 0
    %522 = vmatprep.subr.bf16.mxu0 0
    %523 = vmatpush2.bf16.msra.mxu0 0
    %524 = vmatprep.subr.bf16.mxu0 %v496
    %525 = vmatpush2.bf16.msra.mxu0 %v493
    %526 = vmatprep.subr.bf16.mxu0 %v464
    %527 = vmatpush2.bf16.msra.mxu0 %v463
    %528 = vmatprep.subr.bf16.mxu0 %v462
    %529 = vmatpush2.bf16.msra.mxu0 %v461
    %530 = vmatprep.mubr.bf16.mxu0 %v489
    %531 = vmatmul.mubr.bf16.gmra.mxu0 %v380
    %v532 = vpop.f32.mrf.mxu0
    %v533 = vadd.f32 0.0, %v532
    %v534 = vpop.f32.mrf.mxu0
    %v535 = vadd.f32 0.0, %v534
    %v536 = vpop.f32.mrf.mxu0
    %v537 = vadd.f32 0.0, %v536
    %v538 = vpop.f32.mrf.mxu0
    %v539 = vadd.f32 0.0, %v538
    %540 = vdwg.mxu0
    %v541 = vmax.f32 %v533, %v535
    %v542 = vmax.f32 %v537, %v539
    %vm545 = vcmask 1046528
    %v546 = vrot.slane %v541, 1
    %v547 = vrot.slane %v542, 1
    %v548 = vsel %vm545, %v546, %v547
    %v551 = vrot.slane %v541, 2
    %v552 = vrot.slane %v542, 2
    %v553 = vsel %vm295, %v551, %v552
    %vm556 = vcmask 1044480
    %v557 = vrot.slane %v541, 3
    %v558 = vrot.slane %v542, 3
    %v559 = vsel %vm556, %v557, %v558
    %v562 = vrot.slane %v541, 4
    %v563 = vrot.slane %v542, 4
    %v564 = vsel %vm491, %v562, %v563
    %v567 = vld [vmem:[#allocation3 + $0xa0] sm:$0xff]
    %v568 = vld [vmem:[#allocation3 + $0xa8] sm:$0xff]
    %v569 = vld [vmem:[#allocation3 + $0xb0] sm:$0xff]
    %v570 = vld [vmem:[#allocation3 + $0xb8] sm:$0xff]
    %v571 = vld [vmem:[#allocation3 + $0xc0] sm:$0xff]
    %v572 = vld [vmem:[#allocation3 + $0xc8] sm:$0xff]
    %v573 = vld [vmem:[#allocation3 + $0xd0] sm:$0xff]
    %v574 = vld [vmem:[#allocation3 + $0xd8] sm:$0xff]
    %v575 = vld [vmem:[#allocation3 + $0xe0] sm:$0xff]
    %v576 = vld [vmem:[#allocation3 + $0xe8] sm:$0xff]
    %v577 = vld [vmem:[#allocation3 + $0xf0] sm:$0xff]
    %v578 = vld [vmem:[#allocation3 + $0xf8] sm:$0xff]
    %v579 = vld [vmem:[#allocation3 + $0x100] sm:$0xff]
    %v580 = vld [vmem:[#allocation3 + $0x108] sm:$0xff]
    %v581 = vld [vmem:[#allocation3 + $0x110] sm:$0xff]
    %v582 = vld [vmem:[#allocation3 + $0x118] sm:$0xff]
    %v583 = vld [vmem:[#allocation3 + $0x120] sm:$0xff]
    %v584 = vld [vmem:[#allocation3 + $0x128] sm:$0xff]
    %v585 = vld [vmem:[#allocation3 + $0x130] sm:$0xff]
    %v586 = vld [vmem:[#allocation3 + $0x138] sm:$0xff]
    %v587 = vld [vmem:[#allocation3 + $0x140] sm:$0xff]
    %v588 = vld [vmem:[#allocation3 + $0x148] sm:$0xff]
    %v589 = vld [vmem:[#allocation3 + $0x150] sm:$0xff]
    %v590 = vld [vmem:[#allocation3 + $0x158] sm:$0xff]
    %v591 = vld [vmem:[#allocation3 + $0x160] sm:$0xff]
    %v592 = vld [vmem:[#allocation3 + $0x168] sm:$0xff]
    %v593 = vld [vmem:[#allocation3 + $0x170] sm:$0xff]
    %v594 = vld [vmem:[#allocation3 + $0x178] sm:$0xff]
    %v595 = vld [vmem:[#allocation3 + $0x180] sm:$0xff]
    %v596 = vld [vmem:[#allocation3 + $0x188] sm:$0xff]
    %v597 = vld [vmem:[#allocation3 + $0x190] sm:$0xff]
    %v598 = vld [vmem:[#allocation3 + $0x198] sm:$0xff]
    %v599 = vld [vmem:[#allocation3 + $0x1a0] sm:$0xff]
    %v600 = vld [vmem:[#allocation3 + $0x1a8] sm:$0xff]
    %v601 = vld [vmem:[#allocation3 + $0x1b0] sm:$0xff]
    %v602 = vld [vmem:[#allocation3 + $0x1b8] sm:$0xff]
    %v603 = vld [vmem:[#allocation3 + $0x1c0] sm:$0xff]
    %v604 = vld [vmem:[#allocation3 + $0x1c8] sm:$0xff]
    %v605 = vld [vmem:[#allocation3 + $0x1d0] sm:$0xff]
    %v606 = vld [vmem:[#allocation3 + $0x1d8] sm:$0xff]
    %v607 = vld [vmem:[#allocation3 + $0x1e0] sm:$0xff]
    %v608 = vld [vmem:[#allocation3 + $0x1e8] sm:$0xff]
    %v609 = vld [vmem:[#allocation3 + $0x1f0] sm:$0xff]
    %v610 = vld [vmem:[#allocation3 + $0x1f8] sm:$0xff]
    %v611 = vld [vmem:[#allocation3 + $0x200] sm:$0xff]
    %v612 = vld [vmem:[#allocation3 + $0x208] sm:$0xff]
    %v613 = vld [vmem:[#allocation3 + $0x210] sm:$0xff]
    %v614 = vld [vmem:[#allocation3 + $0x218] sm:$0xff]
    %v615 = vld [vmem:[#allocation3 + $0x220] sm:$0xff]
    %v616 = vld [vmem:[#allocation3 + $0x228] sm:$0xff]
    %v617 = vld [vmem:[#allocation3 + $0x230] sm:$0xff]
    %v618 = vld [vmem:[#allocation3 + $0x238] sm:$0xff]
    %v619 = vld [vmem:[#allocation3 + $0x240] sm:$0xff]
    %v620 = vld [vmem:[#allocation3 + $0x248] sm:$0xff]
    %v621 = vld [vmem:[#allocation3 + $0x250] sm:$0xff]
    %v622 = vld [vmem:[#allocation3 + $0x258] sm:$0xff]
    %v623 = vld [vmem:[#allocation3 + $0x260] sm:$0xff]
    %v624 = vld [vmem:[#allocation3 + $0x268] sm:$0xff]
    %v625 = vld [vmem:[#allocation3 + $0x270] sm:$0xff]
    %v626 = vld [vmem:[#allocation3 + $0x278] sm:$0xff]
    %v627 = vld [vmem:[#allocation3 + $0x280] sm:$0xff]
    %v628 = vld [vmem:[#allocation3 + $0x288] sm:$0xff]
    %v629 = vld [vmem:[#allocation3 + $0x290] sm:$0xff]
    %v630 = vld [vmem:[#allocation3 + $0x298] sm:$0xff]
    %v631 = vld [vmem:[#allocation3 + $0x2a0] sm:$0xff]
    %v632 = vld [vmem:[#allocation3 + $0x2a8] sm:$0xff]
    %v633 = vld [vmem:[#allocation3 + $0x2b0] sm:$0xff]
    %v634 = vld [vmem:[#allocation3 + $0x2b8] sm:$0xff]
    %v635 = vld [vmem:[#allocation3 + $0x2c0] sm:$0xff]
    %v636 = vld [vmem:[#allocation3 + $0x2c8] sm:$0xff]
    %v637 = vld [vmem:[#allocation3 + $0x2d0] sm:$0xff]
    %v638 = vld [vmem:[#allocation3 + $0x2d8] sm:$0xff]
    %v639 = vld [vmem:[#allocation3 + $0x2e0] sm:$0xff]
    %v640 = vld [vmem:[#allocation3 + $0x2e8] sm:$0xff]
    %v641 = vld [vmem:[#allocation3 + $0x2f0] sm:$0xff]
    %v642 = vld [vmem:[#allocation3 + $0x2f8] sm:$0xff]
    %v643 = vld [vmem:[#allocation3 + $0x300] sm:$0xff]
    %v644 = vld [vmem:[#allocation3 + $0x308] sm:$0xff]
    %v645 = vld [vmem:[#allocation3 + $0x310] sm:$0xff]
    %v646 = vld [vmem:[#allocation3 + $0x318] sm:$0xff]
    %v647 = vpack.c.bf16 %v542, %v541
    %v648 = vpack.c.bf16 %v547, %v548
    %v649 = vpack.c.bf16 %v552, %v553
    %v650 = vpack.c.bf16 %v558, %v559
    %v651 = vpack.c.bf16 %v563, %v564
    %v732 = vunpack.c.l.b16 %v567
    %v733 = vunpack.c.h.b16 %v567
    %v734 = vunpack.c.l.b16 %v568
    %v735 = vunpack.c.h.b16 %v568
    %v736 = vunpack.c.l.b16 %v569
    %v737 = vunpack.c.h.b16 %v569
    %v738 = vunpack.c.l.b16 %v570
    %v739 = vunpack.c.h.b16 %v570
    %v740 = vunpack.c.l.b16 %v571
    %v741 = vunpack.c.h.b16 %v571
    %v742 = vunpack.c.l.b16 %v572
    %v743 = vunpack.c.h.b16 %v572
    %v744 = vunpack.c.l.b16 %v573
    %v745 = vunpack.c.h.b16 %v573
    %v746 = vunpack.c.l.b16 %v574
    %v747 = vunpack.c.h.b16 %v574
    %v748 = vunpack.c.l.b16 %v575
    %v749 = vunpack.c.h.b16 %v575
    %v750 = vunpack.c.l.b16 %v576
    %v751 = vunpack.c.h.b16 %v576
    %v752 = vunpack.c.l.b16 %v577
    %v753 = vunpack.c.h.b16 %v577
    %v754 = vunpack.c.l.b16 %v578
    %v755 = vunpack.c.h.b16 %v578
    %v756 = vunpack.c.l.b16 %v579
    %v757 = vunpack.c.h.b16 %v579
    %v758 = vunpack.c.l.b16 %v580
    %v759 = vunpack.c.h.b16 %v580
    %v760 = vunpack.c.l.b16 %v581
    %v761 = vunpack.c.h.b16 %v581
    %v762 = vunpack.c.l.b16 %v582
    %v763 = vunpack.c.h.b16 %v582
    %v764 = vunpack.c.l.b16 %v583
    %v765 = vunpack.c.h.b16 %v583
    %v766 = vunpack.c.l.b16 %v584
    %v767 = vunpack.c.h.b16 %v584
    %v768 = vunpack.c.l.b16 %v585
    %v769 = vunpack.c.h.b16 %v585
    %v770 = vunpack.c.l.b16 %v586
    %v771 = vunpack.c.h.b16 %v586
    %v772 = vunpack.c.l.b16 %v587
    %v773 = vunpack.c.h.b16 %v587
    %v774 = vunpack.c.l.b16 %v588
    %v775 = vunpack.c.h.b16 %v588
    %v776 = vunpack.c.l.b16 %v589
    %v777 = vunpack.c.h.b16 %v589
    %v778 = vunpack.c.l.b16 %v590
    %v779 = vunpack.c.h.b16 %v590
    %v780 = vunpack.c.l.b16 %v591
    %v781 = vunpack.c.h.b16 %v591
    %v782 = vunpack.c.l.b16 %v592
    %v783 = vunpack.c.h.b16 %v592
    %v784 = vunpack.c.l.b16 %v593
    %v785 = vunpack.c.h.b16 %v593
    %v786 = vunpack.c.l.b16 %v594
    %v787 = vunpack.c.h.b16 %v594
    %v788 = vunpack.c.l.b16 %v595
    %v789 = vunpack.c.h.b16 %v595
    %v790 = vunpack.c.l.b16 %v596
    %v791 = vunpack.c.h.b16 %v596
    %v792 = vunpack.c.l.b16 %v597
    %v793 = vunpack.c.h.b16 %v597
    %v794 = vunpack.c.l.b16 %v598
    %v795 = vunpack.c.h.b16 %v598
    %v796 = vunpack.c.l.b16 %v599
    %v797 = vunpack.c.h.b16 %v599
    %v798 = vunpack.c.l.b16 %v600
    %v799 = vunpack.c.h.b16 %v600
    %v800 = vunpack.c.l.b16 %v601
    %v801 = vunpack.c.h.b16 %v601
    %v802 = vunpack.c.l.b16 %v602
    %v803 = vunpack.c.h.b16 %v602
    %v804 = vunpack.c.l.b16 %v603
    %v805 = vunpack.c.h.b16 %v603
    %v806 = vunpack.c.l.b16 %v604
    %v807 = vunpack.c.h.b16 %v604
    %v808 = vunpack.c.l.b16 %v605
    %v809 = vunpack.c.h.b16 %v605
    %v810 = vunpack.c.l.b16 %v606
    %v811 = vunpack.c.h.b16 %v606
    %v812 = vunpack.c.l.b16 %v607
    %v813 = vunpack.c.h.b16 %v607
    %v814 = vunpack.c.l.b16 %v608
    %v815 = vunpack.c.h.b16 %v608
    %v816 = vunpack.c.l.b16 %v609
    %v817 = vunpack.c.h.b16 %v609
    %v818 = vunpack.c.l.b16 %v610
    %v819 = vunpack.c.h.b16 %v610
    %v820 = vunpack.c.l.b16 %v611
    %v821 = vunpack.c.h.b16 %v611
    %v822 = vunpack.c.l.b16 %v612
    %v823 = vunpack.c.h.b16 %v612
    %v824 = vunpack.c.l.b16 %v613
    %v825 = vunpack.c.h.b16 %v613
    %v826 = vunpack.c.l.b16 %v614
    %v827 = vunpack.c.h.b16 %v614
    %v828 = vunpack.c.l.b16 %v615
    %v829 = vunpack.c.h.b16 %v615
    %v830 = vunpack.c.l.b16 %v616
    %v831 = vunpack.c.h.b16 %v616
    %v832 = vunpack.c.l.b16 %v617
    %v833 = vunpack.c.h.b16 %v617
    %v834 = vunpack.c.l.b16 %v618
    %v835 = vunpack.c.h.b16 %v618
    %v836 = vunpack.c.l.b16 %v619
    %v837 = vunpack.c.h.b16 %v619
    %v838 = vunpack.c.l.b16 %v620
    %v839 = vunpack.c.h.b16 %v620
    %v840 = vunpack.c.l.b16 %v621
    %v841 = vunpack.c.h.b16 %v621
    %v842 = vunpack.c.l.b16 %v622
    %v843 = vunpack.c.h.b16 %v622
    %v844 = vunpack.c.l.b16 %v623
    %v845 = vunpack.c.h.b16 %v623
    %v846 = vunpack.c.l.b16 %v624
    %v847 = vunpack.c.h.b16 %v624
    %v848 = vunpack.c.l.b16 %v625
    %v849 = vunpack.c.h.b16 %v625
    %v850 = vunpack.c.l.b16 %v626
    %v851 = vunpack.c.h.b16 %v626
    %v852 = vunpack.c.l.b16 %v627
    %v853 = vunpack.c.h.b16 %v627
    %v854 = vunpack.c.l.b16 %v628
    %v855 = vunpack.c.h.b16 %v628
    %v856 = vunpack.c.l.b16 %v629
    %v857 = vunpack.c.h.b16 %v629
    %v858 = vunpack.c.l.b16 %v630
    %v859 = vunpack.c.h.b16 %v630
    %v860 = vunpack.c.l.b16 %v631
    %v861 = vunpack.c.h.b16 %v631
    %v862 = vunpack.c.l.b16 %v632
    %v863 = vunpack.c.h.b16 %v632
    %v864 = vunpack.c.l.b16 %v633
    %v865 = vunpack.c.h.b16 %v633
    %v866 = vunpack.c.l.b16 %v634
    %v867 = vunpack.c.h.b16 %v634
    %v868 = vunpack.c.l.b16 %v635
    %v869 = vunpack.c.h.b16 %v635
    %v870 = vunpack.c.l.b16 %v636
    %v871 = vunpack.c.h.b16 %v636
    %v872 = vunpack.c.l.b16 %v637
    %v873 = vunpack.c.h.b16 %v637
    %v874 = vunpack.c.l.b16 %v638
    %v875 = vunpack.c.h.b16 %v638
    %v876 = vunpack.c.l.b16 %v639
    %v877 = vunpack.c.h.b16 %v639
    %v878 = vunpack.c.l.b16 %v640
    %v879 = vunpack.c.h.b16 %v640
    %v880 = vunpack.c.l.b16 %v641
    %v881 = vunpack.c.h.b16 %v641
    %v882 = vunpack.c.l.b16 %v642
    %v883 = vunpack.c.h.b16 %v642
    %v884 = vunpack.c.l.b16 %v643
    %v885 = vunpack.c.h.b16 %v643
    %v886 = vunpack.c.l.b16 %v644
    %v887 = vunpack.c.h.b16 %v644
    %v888 = vunpack.c.l.b16 %v645
    %v889 = vunpack.c.h.b16 %v645
    %v890 = vunpack.c.l.b16 %v646
    %v891 = vunpack.c.h.b16 %v646
    %v892 = vpack.c.b16 %v734, %v732
    %v893 = vpack.c.b16 %v735, %v733
    %v894 = vpack.c.b16 %v738, %v736
    %v895 = vpack.c.b16 %v739, %v737
    %v896 = vpack.c.b16 %v742, %v740
    %v897 = vpack.c.b16 %v743, %v741
    %v898 = vpack.c.b16 %v746, %v744
    %v899 = vpack.c.b16 %v747, %v745
    %v900 = vpack.c.b16 %v750, %v748
    %v901 = vpack.c.b16 %v751, %v749
    %v902 = vpack.c.b16 %v754, %v752
    %v903 = vpack.c.b16 %v755, %v753
    %v904 = vpack.c.b16 %v758, %v756
    %v905 = vpack.c.b16 %v759, %v757
    %v906 = vpack.c.b16 %v762, %v760
    %v907 = vpack.c.b16 %v763, %v761
    %v908 = vpack.c.b16 %v766, %v764
    %v909 = vpack.c.b16 %v767, %v765
    %v910 = vpack.c.b16 %v770, %v768
    %v911 = vpack.c.b16 %v771, %v769
    %v912 = vpack.c.b16 %v774, %v772
    %v913 = vpack.c.b16 %v775, %v773
    %v914 = vpack.c.b16 %v778, %v776
    %v915 = vpack.c.b16 %v779, %v777
    %v916 = vpack.c.b16 %v782, %v780
    %v917 = vpack.c.b16 %v783, %v781
    %v918 = vpack.c.b16 %v786, %v784
    %v919 = vpack.c.b16 %v787, %v785
    %v920 = vpack.c.b16 %v790, %v788
    %v921 = vpack.c.b16 %v791, %v789
    %v922 = vpack.c.b16 %v794, %v792
    %v923 = vpack.c.b16 %v795, %v793
    %v924 = vpack.c.b16 %v798, %v796
    %v925 = vpack.c.b16 %v799, %v797
    %v926 = vpack.c.b16 %v802, %v800
    %v927 = vpack.c.b16 %v803, %v801
    %v928 = vpack.c.b16 %v806, %v804
    %v929 = vpack.c.b16 %v807, %v805
    %v930 = vpack.c.b16 %v810, %v808
    %v931 = vpack.c.b16 %v811, %v809
    %v932 = vpack.c.b16 %v814, %v812
    %v933 = vpack.c.b16 %v815, %v813
    %v934 = vpack.c.b16 %v818, %v816
    %v935 = vpack.c.b16 %v819, %v817
    %v936 = vpack.c.b16 %v822, %v820
    %v937 = vpack.c.b16 %v823, %v821
    %v938 = vpack.c.b16 %v826, %v824
    %v939 = vpack.c.b16 %v827, %v825
    %v940 = vpack.c.b16 %v830, %v828
    %v941 = vpack.c.b16 %v831, %v829
    %v942 = vpack.c.b16 %v834, %v832
    %v943 = vpack.c.b16 %v835, %v833
    %v944 = vpack.c.b16 %v838, %v836
    %v945 = vpack.c.b16 %v839, %v837
    %v946 = vpack.c.b16 %v842, %v840
    %v947 = vpack.c.b16 %v843, %v841
    %v948 = vpack.c.b16 %v846, %v844
    %v949 = vpack.c.b16 %v847, %v845
    %v950 = vpack.c.b16 %v850, %v848
    %v951 = vpack.c.b16 %v851, %v849
    %v952 = vpack.c.b16 %v854, %v852
    %v953 = vpack.c.b16 %v855, %v853
    %v954 = vpack.c.b16 %v858, %v856
    %v955 = vpack.c.b16 %v859, %v857
    %v956 = vpack.c.b16 %v862, %v860
    %v957 = vpack.c.b16 %v863, %v861
    %v958 = vpack.c.b16 %v866, %v864
    %v959 = vpack.c.b16 %v867, %v865
    %v960 = vpack.c.b16 %v870, %v868
    %v961 = vpack.c.b16 %v871, %v869
    %v962 = vpack.c.b16 %v874, %v872
    %v963 = vpack.c.b16 %v875, %v873
    %v964 = vpack.c.b16 %v878, %v876
    %v965 = vpack.c.b16 %v879, %v877
    %v966 = vpack.c.b16 %v882, %v880
    %v967 = vpack.c.b16 %v883, %v881
    %v968 = vpack.c.b16 %v886, %v884
    %v969 = vpack.c.b16 %v887, %v885
    %v970 = vpack.c.b16 %v890, %v888
    %v971 = vpack.c.b16 %v891, %v889
    %1052 = vmatprep.subr.bf16.mxu0 %v907
    %1053 = vmatpush1.bf16.msra.mxu0 %v906
    %1054 = vmatprep.subr.bf16.mxu0 %v905
    %1055 = vmatpush1.bf16.msra.mxu0 %v904
    %1056 = vmatprep.subr.bf16.mxu0 %v903
    %1057 = vmatpush1.bf16.msra.mxu0 %v902
    %1058 = vmatprep.subr.bf16.mxu0 %v901
    %1059 = vmatpush1.bf16.msra.mxu0 %v900
    %1060 = vmatprep.subr.bf16.mxu0 %v899
    %1061 = vmatpush1.bf16.msra.mxu0 %v898
    %1062 = vmatprep.subr.bf16.mxu0 %v897
    %1063 = vmatpush1.bf16.msra.mxu0 %v896
    %1064 = vmatprep.subr.bf16.mxu0 %v895
    %1065 = vmatpush1.bf16.msra.mxu0 %v894
    %1066 = vmatprep.subr.bf16.mxu0 %v893
    %1067 = vmatpush1.bf16.msra.mxu0 %v892
    %1068 = vmatprep.subr.bf16.mxu0 %v923
    %1069 = vmatpush2.bf16.msra.mxu0 %v922
    %1070 = vmatprep.subr.bf16.mxu0 %v921
    %1071 = vmatpush2.bf16.msra.mxu0 %v920
    %1072 = vmatprep.subr.bf16.mxu0 %v919
    %1073 = vmatpush2.bf16.msra.mxu0 %v918
    %1074 = vmatprep.subr.bf16.mxu0 %v917
    %1075 = vmatpush2.bf16.msra.mxu0 %v916
    %1076 = vmatprep.subr.bf16.mxu0 %v915
    %1077 = vmatpush2.bf16.msra.mxu0 %v914
    %1078 = vmatprep.subr.bf16.mxu0 %v913
    %1079 = vmatpush2.bf16.msra.mxu0 %v912
    %1080 = vmatprep.subr.bf16.mxu0 %v911
    %1081 = vmatpush2.bf16.msra.mxu0 %v910
    %1082 = vmatprep.subr.bf16.mxu0 %v909
    %1083 = vmatpush2.bf16.msra.mxu0 %v908
    %1084 = vmatprep.mubr.bf16.mxu0 %v648
    %1085 = vmatmul.mubr.bf16.gmra.mxu0 %v647
    %v1086 = vpop.f32.mrf.mxu0
    %v1087 = vadd.f32 %v60, %v1086
    %v1088 = vpop.f32.mrf.mxu0
    %v1089 = vadd.f32 %v64, %v1088
    %v1090 = vpop.f32.mrf.mxu0
    %v1091 = vadd.f32 %v60, %v1090
    %v1092 = vpop.f32.mrf.mxu0
    %v1093 = vadd.f32 %v64, %v1092
    %1094 = vdwg.mxu0
    %1095 = vmatprep.subr.bf16.mxu0 %v939
    %1096 = vmatpush1.bf16.msra.mxu0 %v938
    %1097 = vmatprep.subr.bf16.mxu0 %v937
    %1098 = vmatpush1.bf16.msra.mxu0 %v936
    %1099 = vmatprep.subr.bf16.mxu0 %v935
    %1100 = vmatpush1.bf16.msra.mxu0 %v934
    %1101 = vmatprep.subr.bf16.mxu0 %v933
    %1102 = vmatpush1.bf16.msra.mxu0 %v932
    %1103 = vmatprep.subr.bf16.mxu0 %v931
    %1104 = vmatpush1.bf16.msra.mxu0 %v930
    %1105 = vmatprep.subr.bf16.mxu0 %v929
    %1106 = vmatpush1.bf16.msra.mxu0 %v928
    %1107 = vmatprep.subr.bf16.mxu0 %v927
    %1108 = vmatpush1.bf16.msra.mxu0 %v926
    %1109 = vmatprep.subr.bf16.mxu0 %v925
    %1110 = vmatpush1.bf16.msra.mxu0 %v924
    %1111 = vmatprep.subr.bf16.mxu0 %v955
    %1112 = vmatpush2.bf16.msra.mxu0 %v954
    %1113 = vmatprep.subr.bf16.mxu0 %v953
    %1114 = vmatpush2.bf16.msra.mxu0 %v952
    %1115 = vmatprep.subr.bf16.mxu0 %v951
    %1116 = vmatpush2.bf16.msra.mxu0 %v950
    %1117 = vmatprep.subr.bf16.mxu0 %v949
    %1118 = vmatpush2.bf16.msra.mxu0 %v948
    %1119 = vmatprep.subr.bf16.mxu0 %v947
    %1120 = vmatpush2.bf16.msra.mxu0 %v946
    %1121 = vmatprep.subr.bf16.mxu0 %v945
    %1122 = vmatpush2.bf16.msra.mxu0 %v944
    %1123 = vmatprep.subr.bf16.mxu0 %v943
    %1124 = vmatpush2.bf16.msra.mxu0 %v942
    %1125 = vmatprep.subr.bf16.mxu0 %v941
    %1126 = vmatpush2.bf16.msra.mxu0 %v940
    %1127 = vmatprep.mubr.bf16.mxu0 %v650
    %1128 = vmatmul.mubr.bf16.gmra.mxu0 %v649
    %v1129 = vpop.f32.mrf.mxu0
    %v1130 = vadd.f32 %v1087, %v1129
    %v1131 = vpop.f32.mrf.mxu0
    %v1132 = vadd.f32 %v1089, %v1131
    %v1133 = vpop.f32.mrf.mxu0
    %v1134 = vadd.f32 %v1091, %v1133
    %v1135 = vpop.f32.mrf.mxu0
    %v1136 = vadd.f32 %v1093, %v1135
    %1137 = vdwg.mxu0
    %1138 = vmatprep.subr.bf16.mxu0 %v971
    %1139 = vmatpush1.bf16.msra.mxu0 %v970
    %1140 = vmatprep.subr.bf16.mxu0 %v969
    %1141 = vmatpush1.bf16.msra.mxu0 %v968
    %1142 = vmatprep.subr.bf16.mxu0 %v967
    %1143 = vmatpush1.bf16.msra.mxu0 %v966
    %1144 = vmatprep.subr.bf16.mxu0 %v965
    %1145 = vmatpush1.bf16.msra.mxu0 %v964
    %1146 = vmatprep.subr.bf16.mxu0 %v963
    %1147 = vmatpush1.bf16.msra.mxu0 %v962
    %1148 = vmatprep.subr.bf16.mxu0 %v961
    %1149 = vmatpush1.bf16.msra.mxu0 %v960
    %1150 = vmatprep.subr.bf16.mxu0 %v959
    %1151 = vmatpush1.bf16.msra.mxu0 %v958
    %1152 = vmatprep.subr.bf16.mxu0 %v957
    %1153 = vmatpush1.bf16.msra.mxu0 %v956
    %1154 = vmatprep.subr.bf16.mxu0 0
    %1155 = vmatpush2.bf16.msra.mxu0 0
    %1156 = vmatprep.subr.bf16.mxu0 0
    %1157 = vmatpush2.bf16.msra.mxu0 0
    %1158 = vmatprep.subr.bf16.mxu0 0
    %1159 = vmatpush2.bf16.msra.mxu0 0
    %1160 = vmatprep.subr.bf16.mxu0 0
    %1161 = vmatpush2.bf16.msra.mxu0 0
    %1162 = vmatprep.subr.bf16.mxu0 0
    %1163 = vmatpush2.bf16.msra.mxu0 0
    %1164 = vmatprep.subr.bf16.mxu0 0
    %1165 = vmatpush2.bf16.msra.mxu0 0
    %1166 = vmatprep.subr.bf16.mxu0 0
    %1167 = vmatpush2.bf16.msra.mxu0 0
    %1168 = vmatprep.subr.bf16.mxu0 0
    %1169 = vmatpush2.bf16.msra.mxu0 0
    %1170 = vmatprep.mubr.bf16.mxu0 0
    %1171 = vmatmul.mubr.bf16.gmra.mxu0 %v651
    %v1172 = vpop.f32.mrf.mxu0
    %v1173 = vadd.f32 %v1130, %v1172
    %v1174 = vpop.f32.mrf.mxu0
    %v1175 = vadd.f32 %v1132, %v1174
    %v1176 = vpop.f32.mrf.mxu0
    %v1177 = vadd.f32 %v1134, %v1176
    %v1178 = vpop.f32.mrf.mxu0
    %v1179 = vadd.f32 %v1136, %v1178
    %1180 = vdwg.mxu0
    %v1181 = vmax.f32 %v1173, 0.0
    %v1182 = vmax.f32 %v1175, 0.0
    %v1183 = vmax.f32 %v1177, 0.0
    %v1184 = vmax.f32 %v1179, 0.0
    %v1185 = vld [vmem:[#allocation3 + $0x3f0] sm:$0xf]
    %v1186 = vld [vmem:[#allocation3 + $0x3f8] sm:$0xf]
    %v1187 = vpack.c.bf16 %v1183, %v1181
    %v1188 = vpack.c.bf16 %v1184, %v1182
    %v1191 = vunpack.c.l.b16 %v1185
    %v1192 = vunpack.c.l.b16 %v1186
    %v1193 = vpack.c.b16 %v1192, %v1191
    %vm1194 = vcmask 80896
    %v1196 = vsel %vm1194, %v1193, 0
    %v1199 = vsel %vm556, %v1187, 0
    %v1202 = vsel %vm556, %v1188, 0
    %1204 = vmatprep.subr.bf16.mxu0 0
    %1205 = vmatpush1.bf16.msra.mxu0 0
    %1206 = vmatprep.subr.bf16.mxu0 0
    %1207 = vmatpush1.bf16.msra.mxu0 0
    %1208 = vmatprep.subr.bf16.mxu0 0
    %1209 = vmatpush1.bf16.msra.mxu0 0
    %1210 = vmatprep.subr.bf16.mxu0 0
    %1211 = vmatpush1.bf16.msra.mxu0 0
    %1212 = vmatprep.subr.bf16.mxu0 0
    %1213 = vmatpush1.bf16.msra.mxu0 0
    %1214 = vmatprep.subr.bf16.mxu0 0
    %1215 = vmatpush1.bf16.msra.mxu0 0
    %1216 = vmatprep.subr.bf16.mxu0 0
    %1217 = vmatpush1.bf16.msra.mxu0 0
    %1218 = vmatprep.subr.bf16.mxu0 %v1202
    %1219 = vmatpush1.bf16.msra.mxu0 %v1199
    %1220 = vmatprep.subr.bf16.mxu0 0
    %1221 = vmatpush2.bf16.msra.mxu0 0
    %1222 = vmatprep.subr.bf16.mxu0 0
    %1223 = vmatpush2.bf16.msra.mxu0 0
    %1224 = vmatprep.subr.bf16.mxu0 0
    %1225 = vmatpush2.bf16.msra.mxu0 0
    %1226 = vmatprep.subr.bf16.mxu0 0
    %1227 = vmatpush2.bf16.msra.mxu0 0
    %1228 = vmatprep.subr.bf16.mxu0 0
    %1229 = vmatpush2.bf16.msra.mxu0 0
    %1230 = vmatprep.subr.bf16.mxu0 0
    %1231 = vmatpush2.bf16.msra.mxu0 0
    %1232 = vmatprep.subr.bf16.mxu0 0
    %1233 = vmatpush2.bf16.msra.mxu0 0
    %1234 = vmatprep.subr.bf16.mxu0 0
    %1235 = vmatpush2.bf16.msra.mxu0 0
    %1236 = vmatprep.mubr.bf16.mxu0 0
    %1237 = vmatmul.mubr.bf16.gmra.mxu0 %v1196
    %v1238 = vpop.f32.mrf.mxu0
    %v1239 = vadd.f32 0.0, %v1238
    %v1240 = vpop.f32.mrf.mxu0
    %v1241 = vadd.f32 0.0, %v1240
    %v1242 = vpop.f32.mrf.mxu0
    %v1243 = vadd.f32 0.0, %v1242
    %v1244 = vpop.f32.mrf.mxu0
    %v1245 = vadd.f32 0.0, %v1244
    %1246 = vdwg.mxu0
    %v1247 = vmax.f32 %v1239, %v1243
    %v1248 = vmax.f32 %v1241, %v1245
    %v1249 = vld [vmem:[#allocation3 + $0x400] sm:$0xff]
    %v1250 = vld [vmem:[#allocation3 + $0x408] sm:$0xff]
    %v1251 = vld [vmem:[#allocation3 + $0x410] sm:$0xff]
    %v1252 = vld [vmem:[#allocation3 + $0x418] sm:$0xff]
    %v1253 = vld [vmem:[#allocation3 + $0x420] sm:$0xff]
    %v1254 = vld [vmem:[#allocation3 + $0x428] sm:$0xff]
    %v1255 = vld [vmem:[#allocation3 + $0x430] sm:$0xff]
    %v1256 = vld [vmem:[#allocation3 + $0x438] sm:$0xff]
    %v1257 = vld [vmem:[#allocation3 + $0x440] sm:$0xff]
    %v1258 = vld [vmem:[#allocation3 + $0x448] sm:$0xff]
    %v1259 = vld [vmem:[#allocation3 + $0x450] sm:$0xff]
    %v1260 = vld [vmem:[#allocation3 + $0x458] sm:$0xff]
    %v1261 = vld [vmem:[#allocation3 + $0x460] sm:$0xff]
    %v1262 = vld [vmem:[#allocation3 + $0x468] sm:$0xff]
    %v1263 = vld [vmem:[#allocation3 + $0x470] sm:$0xff]
    %v1264 = vld [vmem:[#allocation3 + $0x478] sm:$0xff]
    %v1265 = vld [vmem:[#allocation3 + $0x480] sm:$0xff]
    %v1266 = vld [vmem:[#allocation3 + $0x488] sm:$0xff]
    %v1267 = vld [vmem:[#allocation3 + $0x490] sm:$0xff]
    %v1268 = vld [vmem:[#allocation3 + $0x498] sm:$0xff]
    %v1269 = vpack.c.bf16 %v1247, %v1247
    %v1270 = vpack.c.bf16 %v1248, %v1248
    %v1291 = vunpack.c.l.b16 %v1249
    %v1292 = vunpack.c.h.b16 %v1249
    %v1293 = vunpack.c.l.b16 %v1250
    %v1294 = vunpack.c.h.b16 %v1250
    %v1295 = vunpack.c.l.b16 %v1251
    %v1296 = vunpack.c.h.b16 %v1251
    %v1297 = vunpack.c.l.b16 %v1252
    %v1298 = vunpack.c.h.b16 %v1252
    %v1299 = vunpack.c.l.b16 %v1253
    %v1300 = vunpack.c.h.b16 %v1253
    %v1301 = vunpack.c.l.b16 %v1254
    %v1302 = vunpack.c.h.b16 %v1254
    %v1303 = vunpack.c.l.b16 %v1255
    %v1304 = vunpack.c.h.b16 %v1255
    %v1305 = vunpack.c.l.b16 %v1256
    %v1306 = vunpack.c.h.b16 %v1256
    %v1307 = vunpack.c.l.b16 %v1257
    %v1308 = vunpack.c.h.b16 %v1257
    %v1309 = vunpack.c.l.b16 %v1258
    %v1310 = vunpack.c.h.b16 %v1258
    %v1311 = vunpack.c.l.b16 %v1259
    %v1312 = vunpack.c.h.b16 %v1259
    %v1313 = vunpack.c.l.b16 %v1260
    %v1314 = vunpack.c.h.b16 %v1260
    %v1315 = vunpack.c.l.b16 %v1261
    %v1316 = vunpack.c.h.b16 %v1261
    %v1317 = vunpack.c.l.b16 %v1262
    %v1318 = vunpack.c.h.b16 %v1262
    %v1319 = vunpack.c.l.b16 %v1263
    %v1320 = vunpack.c.h.b16 %v1263
    %v1321 = vunpack.c.l.b16 %v1264
    %v1322 = vunpack.c.h.b16 %v1264
    %v1323 = vunpack.c.l.b16 %v1265
    %v1324 = vunpack.c.h.b16 %v1265
    %v1325 = vunpack.c.l.b16 %v1266
    %v1326 = vunpack.c.h.b16 %v1266
    %v1327 = vunpack.c.l.b16 %v1267
    %v1328 = vunpack.c.h.b16 %v1267
    %v1329 = vunpack.c.l.b16 %v1268
    %v1330 = vunpack.c.h.b16 %v1268
    %v1331 = vpack.c.b16 %v1293, %v1291
    %v1332 = vpack.c.b16 %v1294, %v1292
    %v1333 = vpack.c.b16 %v1297, %v1295
    %v1334 = vpack.c.b16 %v1298, %v1296
    %v1335 = vpack.c.b16 %v1301, %v1299
    %v1336 = vpack.c.b16 %v1302, %v1300
    %v1337 = vpack.c.b16 %v1305, %v1303
    %v1338 = vpack.c.b16 %v1306, %v1304
    %v1339 = vpack.c.b16 %v1309, %v1307
    %v1340 = vpack.c.b16 %v1310, %v1308
    %v1341 = vpack.c.b16 %v1313, %v1311
    %v1342 = vpack.c.b16 %v1314, %v1312
    %v1343 = vpack.c.b16 %v1317, %v1315
    %v1344 = vpack.c.b16 %v1318, %v1316
    %v1345 = vpack.c.b16 %v1321, %v1319
    %v1346 = vpack.c.b16 %v1322, %v1320
    %v1347 = vpack.c.b16 %v1325, %v1323
    %v1348 = vpack.c.b16 %v1326, %v1324
    %v1349 = vpack.c.b16 %v1329, %v1327
    %v1350 = vpack.c.b16 %v1330, %v1328
    %v1372 = vsel %vm202, %v1270, 0
    %1374 = vmatprep.subr.bf16.mxu0 %v1346
    %1375 = vmatpush1.bf16.msra.mxu0 %v1345
    %1376 = vmatprep.subr.bf16.mxu0 %v1344
    %1377 = vmatpush1.bf16.msra.mxu0 %v1343
    %1378 = vmatprep.subr.bf16.mxu0 %v1342
    %1379 = vmatpush1.bf16.msra.mxu0 %v1341
    %1380 = vmatprep.subr.bf16.mxu0 %v1340
    %1381 = vmatpush1.bf16.msra.mxu0 %v1339
    %1382 = vmatprep.subr.bf16.mxu0 %v1338
    %1383 = vmatpush1.bf16.msra.mxu0 %v1337
    %1384 = vmatprep.subr.bf16.mxu0 %v1336
    %1385 = vmatpush1.bf16.msra.mxu0 %v1335
    %1386 = vmatprep.subr.bf16.mxu0 %v1334
    %1387 = vmatpush1.bf16.msra.mxu0 %v1333
    %1388 = vmatprep.subr.bf16.mxu0 %v1332
    %1389 = vmatpush1.bf16.msra.mxu0 %v1331
    %1390 = vmatprep.subr.bf16.mxu0 0
    %1391 = vmatpush2.bf16.msra.mxu0 0
    %1392 = vmatprep.subr.bf16.mxu0 0
    %1393 = vmatpush2.bf16.msra.mxu0 0
    %1394 = vmatprep.subr.bf16.mxu0 0
    %1395 = vmatpush2.bf16.msra.mxu0 0
    %1396 = vmatprep.subr.bf16.mxu0 0
    %1397 = vmatpush2.bf16.msra.mxu0 0
    %1398 = vmatprep.subr.bf16.mxu0 0
    %1399 = vmatpush2.bf16.msra.mxu0 0
    %1400 = vmatprep.subr.bf16.mxu0 0
    %1401 = vmatpush2.bf16.msra.mxu0 0
    %1402 = vmatprep.subr.bf16.mxu0 %v1350
    %1403 = vmatpush2.bf16.msra.mxu0 %v1349
    %1404 = vmatprep.subr.bf16.mxu0 %v1348
    %1405 = vmatpush2.bf16.msra.mxu0 %v1347
    %1406 = vmatprep.mubr.bf16.mxu0 %v1372
    %1407 = vmatmul.mubr.bf16.gmra.mxu0 %v1269
    %v1408 = vpop.f32.mrf.mxu0
    %v1409 = vadd.f32 0.0, %v1408
    %v1410 = vpop.f32.mrf.mxu0
    %v1411 = vadd.f32 0.0, %v1410
    %v1412 = vpop.f32.mrf.mxu0
    %v1413 = vpop.f32.mrf.mxu0
    %1414 = vdwg.mxu0
    %v1415 = vmax.f32 %v1409, %v1411
    %1416 = vst [vmem:[#allocation2] sm:$0x1] %v1415
    %v1419 = vunpack.c.l.s4 1983009808
    %v1420 = vunpack.c.0.s8 %v1419
    %v1421 = vlaneseq
    %v1422 = vshrl.u32 %v1421, 7
    %v1423 = vsub.s32 %v1420, %v1422
    %v1424 = vrot.slane %v1415, %v1423
    %v1425 = vrot.slane %v1424, 7
    %v1426 = vrot.slane %v1425, 2
    %1428 = vst [vmem:[#allocation2 + $0x2] sm:$0x1] %v1426
    %v1429 = vcombine.high %v1424, %v1424
    %1431 = vst [vmem:[#allocation2 + $0x4] sm:$0x1] %v1429
    %v1432 = vrot.slane %v1429, 7
    %v1433 = vrot.slane %v1432, 2
    %1435 = vst [vmem:[#allocation2 + $0x6] sm:$0x1] %v1433
    %v1436 = vcombine.high %v1415, %v1415
    %v1438 = vunpack.c.l.s4 1983009808
    %v1439 = vunpack.c.0.s8 %v1438
    %v1440 = vlaneseq
    %v1441 = vshrl.u32 %v1440, 7
    %v1442 = vsub.s32 %v1439, %v1441
    %v1443 = vrot.slane %v1436, %v1442
    %1445 = vst [vmem:[#allocation2 + $0x8] sm:$0x1] %v1443
    %s1446 = scalar_lea.vmem %s0, 64
    %v1447 = vld [vmem:[%s1446] sm:$0xff]
    %v1448 = vld [vmem:[%s1446 + $0x8] sm:$0xff]
    %v1449 = vld [vmem:[%s1446 + $0x10] sm:$0xff]
    %v1450 = vld [vmem:[%s1446 + $0x18] sm:$0xff]
    %v1451 = vld [vmem:[%s1446 + $0x20] sm:$0xff]
    %v1452 = vld [vmem:[%s1446 + $0x28] sm:$0xff]
    %v1453 = vld [vmem:[%s1446 + $0x30] sm:$0xf]
    %v1454 = vld [vmem:[%s1446 + $0x38] sm:$0xf]
    %v1455 = vld [vmem:[#allocation3] sm:$0xff]
    %v1456 = vld [vmem:[#allocation3 + $0x8] sm:$0xff]
    %v1457 = vld [vmem:[#allocation3 + $0x10] sm:$0xff]
    %v1458 = vld [vmem:[#allocation3 + $0x18] sm:$0xff]
    %v1459 = vld [vmem:[#allocation3 + $0x20] sm:$0xff]
    %v1460 = vld [vmem:[#allocation3 + $0x28] sm:$0xff]
    %v1461 = vld [vmem:[#allocation3 + $0x30] sm:$0xff]
    %v1462 = vld [vmem:[#allocation3 + $0x38] sm:$0xff]
    %v1463 = vld [vmem:[#allocation3 + $0x40] sm:$0xff]
    %v1464 = vld [vmem:[#allocation3 + $0x48] sm:$0xff]
    %v1465 = vld [vmem:[#allocation3 + $0x50] sm:$0xff]
    %v1466 = vld [vmem:[#allocation3 + $0x58] sm:$0xff]
    %v1467 = vld [vmem:[#allocation3 + $0x60] sm:$0xff]
    %v1468 = vld [vmem:[#allocation3 + $0x68] sm:$0xff]
    %v1469 = vld [vmem:[#allocation3 + $0x70] sm:$0xff]
    %v1470 = vld [vmem:[#allocation3 + $0x78] sm:$0xff]
    %v1471 = vld [vmem:[#allocation3 + $0x80] sm:$0xff]
    %v1472 = vld [vmem:[#allocation3 + $0x88] sm:$0xff]
    %v1473 = vld [vmem:[#allocation3 + $0x90] sm:$0xff]
    %v1474 = vld [vmem:[#allocation3 + $0x98] sm:$0xff]
    %v1475 = vpack.c.bf16 %v1449, %v1447
    %v1476 = vpack.c.bf16 %v1450, %v1448
    %v1477 = vpack.c.bf16 %v1453, %v1451
    %v1478 = vpack.c.bf16 %v1454, %v1452
    %v1499 = vunpack.c.l.b16 %v1455
    %v1500 = vunpack.c.h.b16 %v1455
    %v1501 = vunpack.c.l.b16 %v1456
    %v1502 = vunpack.c.h.b16 %v1456
    %v1503 = vunpack.c.l.b16 %v1457
    %v1504 = vunpack.c.h.b16 %v1457
    %v1505 = vunpack.c.l.b16 %v1458
    %v1506 = vunpack.c.h.b16 %v1458
    %v1507 = vunpack.c.l.b16 %v1459
    %v1508 = vunpack.c.h.b16 %v1459
    %v1509 = vunpack.c.l.b16 %v1460
    %v1510 = vunpack.c.h.b16 %v1460
    %v1511 = vunpack.c.l.b16 %v1461
    %v1512 = vunpack.c.h.b16 %v1461
    %v1513 = vunpack.c.l.b16 %v1462
    %v1514 = vunpack.c.h.b16 %v1462
    %v1515 = vunpack.c.l.b16 %v1463
    %v1516 = vunpack.c.h.b16 %v1463
    %v1517 = vunpack.c.l.b16 %v1464
    %v1518 = vunpack.c.h.b16 %v1464
    %v1519 = vunpack.c.l.b16 %v1465
    %v1520 = vunpack.c.h.b16 %v1465
    %v1521 = vunpack.c.l.b16 %v1466
    %v1522 = vunpack.c.h.b16 %v1466
    %v1523 = vunpack.c.l.b16 %v1467
    %v1524 = vunpack.c.h.b16 %v1467
    %v1525 = vunpack.c.l.b16 %v1468
    %v1526 = vunpack.c.h.b16 %v1468
    %v1527 = vunpack.c.l.b16 %v1469
    %v1528 = vunpack.c.h.b16 %v1469
    %v1529 = vunpack.c.l.b16 %v1470
    %v1530 = vunpack.c.h.b16 %v1470
    %v1531 = vunpack.c.l.b16 %v1471
    %v1532 = vunpack.c.h.b16 %v1471
    %v1533 = vunpack.c.l.b16 %v1472
    %v1534 = vunpack.c.h.b16 %v1472
    %v1535 = vunpack.c.l.b16 %v1473
    %v1536 = vunpack.c.h.b16 %v1473
    %v1537 = vunpack.c.l.b16 %v1474
    %v1538 = vunpack.c.h.b16 %v1474
    %v1539 = vpack.c.b16 %v1501, %v1499
    %v1540 = vpack.c.b16 %v1502, %v1500
    %v1541 = vpack.c.b16 %v1505, %v1503
    %v1542 = vpack.c.b16 %v1506, %v1504
    %v1543 = vpack.c.b16 %v1509, %v1507
    %v1544 = vpack.c.b16 %v1510, %v1508
    %v1545 = vpack.c.b16 %v1513, %v1511
    %v1546 = vpack.c.b16 %v1514, %v1512
    %v1547 = vpack.c.b16 %v1517, %v1515
    %v1548 = vpack.c.b16 %v1518, %v1516
    %v1549 = vpack.c.b16 %v1521, %v1519
    %v1550 = vpack.c.b16 %v1522, %v1520
    %v1551 = vpack.c.b16 %v1525, %v1523
    %v1552 = vpack.c.b16 %v1526, %v1524
    %v1553 = vpack.c.b16 %v1529, %v1527
    %v1554 = vpack.c.b16 %v1530, %v1528
    %v1555 = vpack.c.b16 %v1533, %v1531
    %v1556 = vpack.c.b16 %v1534, %v1532
    %v1557 = vpack.c.b16 %v1537, %v1535
    %v1558 = vpack.c.b16 %v1538, %v1536
    %v1580 = vsel %vm202, %v1476, 0
    %v1583 = vsel %vm202, %v1478, 0
    %1585 = vmatprep.subr.bf16.mxu0 %v1554
    %1586 = vmatpush1.bf16.msra.mxu0 %v1553
    %1587 = vmatprep.subr.bf16.mxu0 %v1552
    %1588 = vmatpush1.bf16.msra.mxu0 %v1551
    %1589 = vmatprep.subr.bf16.mxu0 %v1550
    %1590 = vmatpush1.bf16.msra.mxu0 %v1549
    %1591 = vmatprep.subr.bf16.mxu0 %v1548
    %1592 = vmatpush1.bf16.msra.mxu0 %v1547
    %1593 = vmatprep.subr.bf16.mxu0 %v1546
    %1594 = vmatpush1.bf16.msra.mxu0 %v1545
    %1595 = vmatprep.subr.bf16.mxu0 %v1544
    %1596 = vmatpush1.bf16.msra.mxu0 %v1543
    %1597 = vmatprep.subr.bf16.mxu0 %v1542
    %1598 = vmatpush1.bf16.msra.mxu0 %v1541
    %1599 = vmatprep.subr.bf16.mxu0 %v1540
    %1600 = vmatpush1.bf16.msra.mxu0 %v1539
    %1601 = vmatprep.subr.bf16.mxu0 0
    %1602 = vmatpush2.bf16.msra.mxu0 0
    %1603 = vmatprep.subr.bf16.mxu0 0
    %1604 = vmatpush2.bf16.msra.mxu0 0
    %1605 = vmatprep.subr.bf16.mxu0 0
    %1606 = vmatpush2.bf16.msra.mxu0 0
    %1607 = vmatprep.subr.bf16.mxu0 0
    %1608 = vmatpush2.bf16.msra.mxu0 0
    %1609 = vmatprep.subr.bf16.mxu0 0
    %1610 = vmatpush2.bf16.msra.mxu0 0
    %1611 = vmatprep.subr.bf16.mxu0 0
    %1612 = vmatpush2.bf16.msra.mxu0 0
    %1613 = vmatprep.subr.bf16.mxu0 %v1558
    %1614 = vmatpush2.bf16.msra.mxu0 %v1557
    %1615 = vmatprep.subr.bf16.mxu0 %v1556
    %1616 = vmatpush2.bf16.msra.mxu0 %v1555
    %1617 = vmatprep.mubr.bf16.mxu0 %v1580
    %1618 = vmatmul.mubr.bf16.gmra.mxu0 %v1475
    %v1619 = vpop.f32.mrf.mxu0
    %v1620 = vadd.f32 %v47, %v1619
    %v1621 = vpop.f32.mrf.mxu0
    %v1622 = vadd.f32 %v51, %v1621
    %v1623 = vpop.f32.mrf.mxu0
    %v1624 = vadd.f32 %v47, %v1623
    %v1625 = vpop.f32.mrf.mxu0
    %v1626 = vadd.f32 %v51, %v1625
    %1627 = vmatprep.mubr.bf16.mxu0 %v1583
    %1628 = vmatmul.mubr.bf16.gmra.mxu0 %v1477
    %v1629 = vpop.f32.mrf.mxu0
    %v1630 = vadd.f32 %v47, %v1629
    %v1631 = vpop.f32.mrf.mxu0
    %v1632 = vadd.f32 %v51, %v1631
    %v1633 = vpop.f32.mrf.mxu0
    %v1634 = vadd.f32 %v47, %v1633
    %v1635 = vpop.f32.mrf.mxu0
    %v1636 = vadd.f32 %v51, %v1635
    %1637 = vdwg.mxu0
    %v1638 = vmax.f32 %v1620, 0.0
    %v1639 = vmax.f32 %v1622, 0.0
    %v1640 = vmax.f32 %v1624, 0.0
    %v1641 = vmax.f32 %v1626, 0.0
    %v1642 = vmax.f32 %v1630, 0.0
    %v1643 = vmax.f32 %v1632, 0.0
    %v1644 = vmax.f32 %v1634, 0.0
    %v1645 = vmax.f32 %v1636, 0.0
    %v1646 = vld [vmem:[#allocation3 + $0x320] sm:$0xf]
    %v1647 = vld [vmem:[#allocation3 + $0x328] sm:$0xf]
    %v1648 = vld [vmem:[#allocation3 + $0x330] sm:$0xf]
    %v1649 = vld [vmem:[#allocation3 + $0x338] sm:$0xf]
    %v1650 = vpack.c.bf16 %v1640, %v1638
    %v1651 = vpack.c.bf16 %v1641, %v1639
    %v1652 = vpack.c.bf16 %v1644, %v1642
    %v1653 = vpack.c.bf16 %v1645, %v1643
    %v1658 = vunpack.c.l.b16 %v1646
    %v1659 = vunpack.c.l.b16 %v1647
    %v1660 = vunpack.c.l.b16 %v1648
    %v1661 = vunpack.c.l.b16 %v1649
    %v1662 = vpack.c.b16 %v1659, %v1658
    %v1663 = vpack.c.b16 %v1661, %v1660
    %v1665 = vsel %vm288, %v1662, 0
    %v1668 = vsel %vm288, %v1663, 0
    %v1671 = vsel %vm295, %v1652, 0
    %v1674 = vsel %vm295, %v1653, 0
    %1676 = vmatprep.subr.bf16.mxu0 0
    %1677 = vmatpush1.bf16.msra.mxu0 0
    %1678 = vmatprep.subr.bf16.mxu0 0
    %1679 = vmatpush1.bf16.msra.mxu0 0
    %1680 = vmatprep.subr.bf16.mxu0 0
    %1681 = vmatpush1.bf16.msra.mxu0 0
    %1682 = vmatprep.subr.bf16.mxu0 0
    %1683 = vmatpush1.bf16.msra.mxu0 0
    %1684 = vmatprep.subr.bf16.mxu0 0
    %1685 = vmatpush1.bf16.msra.mxu0 0
    %1686 = vmatprep.subr.bf16.mxu0 0
    %1687 = vmatpush1.bf16.msra.mxu0 0
    %1688 = vmatprep.subr.bf16.mxu0 %v1674
    %1689 = vmatpush1.bf16.msra.mxu0 %v1671
    %1690 = vmatprep.subr.bf16.mxu0 %v1651
    %1691 = vmatpush1.bf16.msra.mxu0 %v1650
    %1692 = vmatprep.subr.bf16.mxu0 0
    %1693 = vmatpush2.bf16.msra.mxu0 0
    %1694 = vmatprep.subr.bf16.mxu0 0
    %1695 = vmatpush2.bf16.msra.mxu0 0
    %1696 = vmatprep.subr.bf16.mxu0 0
    %1697 = vmatpush2.bf16.msra.mxu0 0
    %1698 = vmatprep.subr.bf16.mxu0 0
    %1699 = vmatpush2.bf16.msra.mxu0 0
    %1700 = vmatprep.subr.bf16.mxu0 0
    %1701 = vmatpush2.bf16.msra.mxu0 0
    %1702 = vmatprep.subr.bf16.mxu0 0
    %1703 = vmatpush2.bf16.msra.mxu0 0
    %1704 = vmatprep.subr.bf16.mxu0 0
    %1705 = vmatpush2.bf16.msra.mxu0 0
    %1706 = vmatprep.subr.bf16.mxu0 0
    %1707 = vmatpush2.bf16.msra.mxu0 0
    %1708 = vmatprep.mubr.bf16.mxu0 0
    %1709 = vmatmul.mubr.bf16.gmra.mxu0 %v1665
    %v1710 = vpop.f32.mrf.mxu0
    %v1711 = vadd.f32 0.0, %v1710
    %v1712 = vpop.f32.mrf.mxu0
    %v1713 = vadd.f32 0.0, %v1712
    %v1714 = vpop.f32.mrf.mxu0
    %v1715 = vadd.f32 0.0, %v1714
    %v1716 = vpop.f32.mrf.mxu0
    %v1717 = vadd.f32 0.0, %v1716
    %1718 = vmatprep.mubr.bf16.mxu0 0
    %1719 = vmatmul.mubr.bf16.gmra.mxu0 %v1668
    %v1720 = vpop.f32.mrf.mxu0
    %v1721 = vadd.f32 0.0, %v1720
    %v1722 = vpop.f32.mrf.mxu0
    %v1723 = vadd.f32 0.0, %v1722
    %v1724 = vpop.f32.mrf.mxu0
    %v1725 = vadd.f32 0.0, %v1724
    %v1726 = vpop.f32.mrf.mxu0
    %v1727 = vadd.f32 0.0, %v1726
    %1728 = vdwg.mxu0
    %v1729 = vmax.f32 %v1711, %v1721
    %v1730 = vmax.f32 %v1713, %v1723
    %v1731 = vmax.f32 %v1715, %v1725
    %v1732 = vmax.f32 %v1717, %v1727
    %v1733 = vld [vmem:[#allocation3 + $0x340] sm:$0xff]
    %v1734 = vld [vmem:[#allocation3 + $0x348] sm:$0xff]
    %v1735 = vld [vmem:[#allocation3 + $0x350] sm:$0xff]
    %v1736 = vld [vmem:[#allocation3 + $0x358] sm:$0xff]
    %v1737 = vld [vmem:[#allocation3 + $0x360] sm:$0xff]
    %v1738 = vld [vmem:[#allocation3 + $0x368] sm:$0xff]
    %v1739 = vld [vmem:[#allocation3 + $0x370] sm:$0xff]
    %v1740 = vld [vmem:[#allocation3 + $0x378] sm:$0xff]
    %v1741 = vld [vmem:[#allocation3 + $0x380] sm:$0xff]
    %v1742 = vld [vmem:[#allocation3 + $0x388] sm:$0xff]
    %v1743 = vld [vmem:[#allocation3 + $0x390] sm:$0xff]
    %v1744 = vld [vmem:[#allocation3 + $0x398] sm:$0xff]
    %v1745 = vld [vmem:[#allocation3 + $0x3a0] sm:$0xff]
    %v1746 = vld [vmem:[#allocation3 + $0x3a8] sm:$0xff]
    %v1747 = vld [vmem:[#allocation3 + $0x3b0] sm:$0xff]
    %v1748 = vld [vmem:[#allocation3 + $0x3b8] sm:$0xff]
    %v1749 = vld [vmem:[#allocation3 + $0x3c0] sm:$0xff]
    %v1750 = vld [vmem:[#allocation3 + $0x3c8] sm:$0xff]
    %v1751 = vld [vmem:[#allocation3 + $0x3d0] sm:$0xff]
    %v1752 = vld [vmem:[#allocation3 + $0x3d8] sm:$0xff]
    %v1753 = vld [vmem:[#allocation3 + $0x3e0] sm:$0xff]
    %v1754 = vpack.c.bf16 %v1731, %v1729
    %v1755 = vpack.c.bf16 %v1732, %v1730
    %v1777 = vunpack.c.l.b16 %v1733
    %v1778 = vunpack.c.h.b16 %v1733
    %v1779 = vunpack.c.l.b16 %v1734
    %v1780 = vunpack.c.h.b16 %v1734
    %v1781 = vunpack.c.l.b16 %v1735
    %v1782 = vunpack.c.h.b16 %v1735
    %v1783 = vunpack.c.l.b16 %v1736
    %v1784 = vunpack.c.h.b16 %v1736
    %v1785 = vunpack.c.l.b16 %v1737
    %v1786 = vunpack.c.h.b16 %v1737
    %v1787 = vunpack.c.l.b16 %v1738
    %v1788 = vunpack.c.h.b16 %v1738
    %v1789 = vunpack.c.l.b16 %v1739
    %v1790 = vunpack.c.h.b16 %v1739
    %v1791 = vunpack.c.l.b16 %v1740
    %v1792 = vunpack.c.h.b16 %v1740
    %v1793 = vunpack.c.l.b16 %v1741
    %v1794 = vunpack.c.h.b16 %v1741
    %v1795 = vunpack.c.l.b16 %v1742
    %v1796 = vunpack.c.h.b16 %v1742
    %v1797 = vunpack.c.l.b16 %v1743
    %v1798 = vunpack.c.h.b16 %v1743
    %v1799 = vunpack.c.l.b16 %v1744
    %v1800 = vunpack.c.h.b16 %v1744
    %v1801 = vunpack.c.l.b16 %v1745
    %v1802 = vunpack.c.h.b16 %v1745
    %v1803 = vunpack.c.l.b16 %v1746
    %v1804 = vunpack.c.h.b16 %v1746
    %v1805 = vunpack.c.l.b16 %v1747
    %v1806 = vunpack.c.h.b16 %v1747
    %v1807 = vunpack.c.l.b16 %v1748
    %v1808 = vunpack.c.h.b16 %v1748
    %v1809 = vunpack.c.l.b16 %v1749
    %v1810 = vunpack.c.h.b16 %v1749
    %v1811 = vunpack.c.l.b16 %v1750
    %v1812 = vunpack.c.h.b16 %v1750
    %v1813 = vunpack.c.l.b16 %v1751
    %v1814 = vunpack.c.h.b16 %v1751
    %v1815 = vunpack.c.l.b16 %v1752
    %v1816 = vunpack.c.h.b16 %v1752
    %v1817 = vunpack.c.l.b16 %v1753
    %v1818 = vunpack.c.h.b16 %v1753
    %v1819 = vpack.c.b16 %v1779, %v1777
    %v1820 = vpack.c.b16 %v1780, %v1778
    %v1821 = vpack.c.b16 %v1783, %v1781
    %v1822 = vpack.c.b16 %v1784, %v1782
    %v1823 = vpack.c.b16 %v1787, %v1785
    %v1824 = vpack.c.b16 %v1788, %v1786
    %v1825 = vpack.c.b16 %v1791, %v1789
    %v1826 = vpack.c.b16 %v1792, %v1790
    %v1827 = vpack.c.b16 %v1795, %v1793
    %v1828 = vpack.c.b16 %v1796, %v1794
    %v1829 = vpack.c.b16 %v1799, %v1797
    %v1830 = vpack.c.b16 %v1800, %v1798
    %v1831 = vpack.c.b16 %v1803, %v1801
    %v1832 = vpack.c.b16 %v1804, %v1802
    %v1833 = vpack.c.b16 %v1807, %v1805
    %v1834 = vpack.c.b16 %v1808, %v1806
    %v1835 = vpack.c.b16 %v1811, %v1809
    %v1836 = vpack.c.b16 %v1812, %v1810
    %v1837 = vpack.c.b16 %v1815, %v1813
    %v1838 = vpack.c.b16 %v1816, %v1814
    %v1839 = vpack.c.b16 %v1817, %v1817
    %v1840 = vpack.c.b16 %v1818, %v1818
    %v1862 = vsel %vm487, %v1755, 0
    %v1865 = vsel %vm491, %v1839, 0
    %v1868 = vsel %vm491, %v1840, 0
    %1870 = vmatprep.subr.bf16.mxu0 %v1834
    %1871 = vmatpush1.bf16.msra.mxu0 %v1833
    %1872 = vmatprep.subr.bf16.mxu0 %v1832
    %1873 = vmatpush1.bf16.msra.mxu0 %v1831
    %1874 = vmatprep.subr.bf16.mxu0 %v1830
    %1875 = vmatpush1.bf16.msra.mxu0 %v1829
    %1876 = vmatprep.subr.bf16.mxu0 %v1828
    %1877 = vmatpush1.bf16.msra.mxu0 %v1827
    %1878 = vmatprep.subr.bf16.mxu0 %v1826
    %1879 = vmatpush1.bf16.msra.mxu0 %v1825
    %1880 = vmatprep.subr.bf16.mxu0 %v1824
    %1881 = vmatpush1.bf16.msra.mxu0 %v1823
    %1882 = vmatprep.subr.bf16.mxu0 %v1822
    %1883 = vmatpush1.bf16.msra.mxu0 %v1821
    %1884 = vmatprep.subr.bf16.mxu0 %v1820
    %1885 = vmatpush1.bf16.msra.mxu0 %v1819
    %1886 = vmatprep.subr.bf16.mxu0 0
    %1887 = vmatpush2.bf16.msra.mxu0 0
    %1888 = vmatprep.subr.bf16.mxu0 0
    %1889 = vmatpush2.bf16.msra.mxu0 0
    %1890 = vmatprep.subr.bf16.mxu0 0
    %1891 = vmatpush2.bf16.msra.mxu0 0
    %1892 = vmatprep.subr.bf16.mxu0 0
    %1893 = vmatpush2.bf16.msra.mxu0 0
    %1894 = vmatprep.subr.bf16.mxu0 0
    %1895 = vmatpush2.bf16.msra.mxu0 0
    %1896 = vmatprep.subr.bf16.mxu0 %v1868
    %1897 = vmatpush2.bf16.msra.mxu0 %v1865
    %1898 = vmatprep.subr.bf16.mxu0 %v1838
    %1899 = vmatpush2.bf16.msra.mxu0 %v1837
    %1900 = vmatprep.subr.bf16.mxu0 %v1836
    %1901 = vmatpush2.bf16.msra.mxu0 %v1835
    %1902 = vmatprep.mubr.bf16.mxu0 %v1862
    %1903 = vmatmul.mubr.bf16.gmra.mxu0 %v1754
    %v1904 = vpop.f32.mrf.mxu0
    %v1905 = vadd.f32 0.0, %v1904
    %v1906 = vpop.f32.mrf.mxu0
    %v1907 = vadd.f32 0.0, %v1906
    %v1908 = vpop.f32.mrf.mxu0
    %v1909 = vadd.f32 0.0, %v1908
    %v1910 = vpop.f32.mrf.mxu0
    %v1911 = vadd.f32 0.0, %v1910
    %1912 = vdwg.mxu0
    %v1913 = vmax.f32 %v1905, %v1907
    %v1914 = vmax.f32 %v1909, %v1911
    %v1917 = vrot.slane %v1913, 1
    %v1918 = vrot.slane %v1914, 1
    %v1919 = vsel %vm545, %v1917, %v1918
    %v1922 = vrot.slane %v1913, 2
    %v1923 = vrot.slane %v1914, 2
    %v1924 = vsel %vm295, %v1922, %v1923
    %v1927 = vrot.slane %v1913, 3
    %v1928 = vrot.slane %v1914, 3
    %v1929 = vsel %vm556, %v1927, %v1928
    %v1932 = vrot.slane %v1913, 4
    %v1933 = vrot.slane %v1914, 4
    %v1934 = vsel %vm491, %v1932, %v1933
    %v1937 = vld [vmem:[#allocation3 + $0xa0] sm:$0xff]
    %v1938 = vld [vmem:[#allocation3 + $0xa8] sm:$0xff]
    %v1939 = vld [vmem:[#allocation3 + $0xb0] sm:$0xff]
    %v1940 = vld [vmem:[#allocation3 + $0xb8] sm:$0xff]
    %v1941 = vld [vmem:[#allocation3 + $0xc0] sm:$0xff]
    %v1942 = vld [vmem:[#allocation3 + $0xc8] sm:$0xff]
    %v1943 = vld [vmem:[#allocation3 + $0xd0] sm:$0xff]
    %v1944 = vld [vmem:[#allocation3 + $0xd8] sm:$0xff]
    %v1945 = vld [vmem:[#allocation3 + $0xe0] sm:$0xff]
    %v1946 = vld [vmem:[#allocation3 + $0xe8] sm:$0xff]
    %v1947 = vld [vmem:[#allocation3 + $0xf0] sm:$0xff]
    %v1948 = vld [vmem:[#allocation3 + $0xf8] sm:$0xff]
    %v1949 = vld [vmem:[#allocation3 + $0x100] sm:$0xff]
    %v1950 = vld [vmem:[#allocation3 + $0x108] sm:$0xff]
    %v1951 = vld [vmem:[#allocation3 + $0x110] sm:$0xff]
    %v1952 = vld [vmem:[#allocation3 + $0x118] sm:$0xff]
    %v1953 = vld [vmem:[#allocation3 + $0x120] sm:$0xff]
    %v1954 = vld [vmem:[#allocation3 + $0x128] sm:$0xff]
    %v1955 = vld [vmem:[#allocation3 + $0x130] sm:$0xff]
    %v1956 = vld [vmem:[#allocation3 + $0x138] sm:$0xff]
    %v1957 = vld [vmem:[#allocation3 + $0x140] sm:$0xff]
    %v1958 = vld [vmem:[#allocation3 + $0x148] sm:$0xff]
    %v1959 = vld [vmem:[#allocation3 + $0x150] sm:$0xff]
    %v1960 = vld [vmem:[#allocation3 + $0x158] sm:$0xff]
    %v1961 = vld [vmem:[#allocation3 + $0x160] sm:$0xff]
    %v1962 = vld [vmem:[#allocation3 + $0x168] sm:$0xff]
    %v1963 = vld [vmem:[#allocation3 + $0x170] sm:$0xff]
    %v1964 = vld [vmem:[#allocation3 + $0x178] sm:$0xff]
    %v1965 = vld [vmem:[#allocation3 + $0x180] sm:$0xff]
    %v1966 = vld [vmem:[#allocation3 + $0x188] sm:$0xff]
    %v1967 = vld [vmem:[#allocation3 + $0x190] sm:$0xff]
    %v1968 = vld [vmem:[#allocation3 + $0x198] sm:$0xff]
    %v1969 = vld [vmem:[#allocation3 + $0x1a0] sm:$0xff]
    %v1970 = vld [vmem:[#allocation3 + $0x1a8] sm:$0xff]
    %v1971 = vld [vmem:[#allocation3 + $0x1b0] sm:$0xff]
    %v1972 = vld [vmem:[#allocation3 + $0x1b8] sm:$0xff]
    %v1973 = vld [vmem:[#allocation3 + $0x1c0] sm:$0xff]
    %v1974 = vld [vmem:[#allocation3 + $0x1c8] sm:$0xff]
    %v1975 = vld [vmem:[#allocation3 + $0x1d0] sm:$0xff]
    %v1976 = vld [vmem:[#allocation3 + $0x1d8] sm:$0xff]
    %v1977 = vld [vmem:[#allocation3 + $0x1e0] sm:$0xff]
    %v1978 = vld [vmem:[#allocation3 + $0x1e8] sm:$0xff]
    %v1979 = vld [vmem:[#allocation3 + $0x1f0] sm:$0xff]
    %v1980 = vld [vmem:[#allocation3 + $0x1f8] sm:$0xff]
    %v1981 = vld [vmem:[#allocation3 + $0x200] sm:$0xff]
    %v1982 = vld [vmem:[#allocation3 + $0x208] sm:$0xff]
    %v1983 = vld [vmem:[#allocation3 + $0x210] sm:$0xff]
    %v1984 = vld [vmem:[#allocation3 + $0x218] sm:$0xff]
    %v1985 = vld [vmem:[#allocation3 + $0x220] sm:$0xff]
    %v1986 = vld [vmem:[#allocation3 + $0x228] sm:$0xff]
    %v1987 = vld [vmem:[#allocation3 + $0x230] sm:$0xff]
    %v1988 = vld [vmem:[#allocation3 + $0x238] sm:$0xff]
    %v1989 = vld [vmem:[#allocation3 + $0x240] sm:$0xff]
    %v1990 = vld [vmem:[#allocation3 + $0x248] sm:$0xff]
    %v1991 = vld [vmem:[#allocation3 + $0x250] sm:$0xff]
    %v1992 = vld [vmem:[#allocation3 + $0x258] sm:$0xff]
    %v1993 = vld [vmem:[#allocation3 + $0x260] sm:$0xff]
    %v1994 = vld [vmem:[#allocation3 + $0x268] sm:$0xff]
    %v1995 = vld [vmem:[#allocation3 + $0x270] sm:$0xff]
    %v1996 = vld [vmem:[#allocation3 + $0x278] sm:$0xff]
    %v1997 = vld [vmem:[#allocation3 + $0x280] sm:$0xff]
    %v1998 = vld [vmem:[#allocation3 + $0x288] sm:$0xff]
    %v1999 = vld [vmem:[#allocation3 + $0x290] sm:$0xff]
    %v2000 = vld [vmem:[#allocation3 + $0x298] sm:$0xff]
    %v2001 = vld [vmem:[#allocation3 + $0x2a0] sm:$0xff]
    %v2002 = vld [vmem:[#allocation3 + $0x2a8] sm:$0xff]
    %v2003 = vld [vmem:[#allocation3 + $0x2b0] sm:$0xff]
    %v2004 = vld [vmem:[#allocation3 + $0x2b8] sm:$0xff]
    %v2005 = vld [vmem:[#allocation3 + $0x2c0] sm:$0xff]
    %v2006 = vld [vmem:[#allocation3 + $0x2c8] sm:$0xff]
    %v2007 = vld [vmem:[#allocation3 + $0x2d0] sm:$0xff]
    %v2008 = vld [vmem:[#allocation3 + $0x2d8] sm:$0xff]
    %v2009 = vld [vmem:[#allocation3 + $0x2e0] sm:$0xff]
    %v2010 = vld [vmem:[#allocation3 + $0x2e8] sm:$0xff]
    %v2011 = vld [vmem:[#allocation3 + $0x2f0] sm:$0xff]
    %v2012 = vld [vmem:[#allocation3 + $0x2f8] sm:$0xff]
    %v2013 = vld [vmem:[#allocation3 + $0x300] sm:$0xff]
    %v2014 = vld [vmem:[#allocation3 + $0x308] sm:$0xff]
    %v2015 = vld [vmem:[#allocation3 + $0x310] sm:$0xff]
    %v2016 = vld [vmem:[#allocation3 + $0x318] sm:$0xff]
    %v2017 = vpack.c.bf16 %v1914, %v1913
    %v2018 = vpack.c.bf16 %v1918, %v1919
    %v2019 = vpack.c.bf16 %v1923, %v1924
    %v2020 = vpack.c.bf16 %v1928, %v1929
    %v2021 = vpack.c.bf16 %v1933, %v1934
    %v2102 = vunpack.c.l.b16 %v1937
    %v2103 = vunpack.c.h.b16 %v1937
    %v2104 = vunpack.c.l.b16 %v1938
    %v2105 = vunpack.c.h.b16 %v1938
    %v2106 = vunpack.c.l.b16 %v1939
    %v2107 = vunpack.c.h.b16 %v1939
    %v2108 = vunpack.c.l.b16 %v1940
    %v2109 = vunpack.c.h.b16 %v1940
    %v2110 = vunpack.c.l.b16 %v1941
    %v2111 = vunpack.c.h.b16 %v1941
    %v2112 = vunpack.c.l.b16 %v1942
    %v2113 = vunpack.c.h.b16 %v1942
    %v2114 = vunpack.c.l.b16 %v1943
    %v2115 = vunpack.c.h.b16 %v1943
    %v2116 = vunpack.c.l.b16 %v1944
    %v2117 = vunpack.c.h.b16 %v1944
    %v2118 = vunpack.c.l.b16 %v1945
    %v2119 = vunpack.c.h.b16 %v1945
    %v2120 = vunpack.c.l.b16 %v1946
    %v2121 = vunpack.c.h.b16 %v1946
    %v2122 = vunpack.c.l.b16 %v1947
    %v2123 = vunpack.c.h.b16 %v1947
    %v2124 = vunpack.c.l.b16 %v1948
    %v2125 = vunpack.c.h.b16 %v1948
    %v2126 = vunpack.c.l.b16 %v1949
    %v2127 = vunpack.c.h.b16 %v1949
    %v2128 = vunpack.c.l.b16 %v1950
    %v2129 = vunpack.c.h.b16 %v1950
    %v2130 = vunpack.c.l.b16 %v1951
    %v2131 = vunpack.c.h.b16 %v1951
    %v2132 = vunpack.c.l.b16 %v1952
    %v2133 = vunpack.c.h.b16 %v1952
    %v2134 = vunpack.c.l.b16 %v1953
    %v2135 = vunpack.c.h.b16 %v1953
    %v2136 = vunpack.c.l.b16 %v1954
    %v2137 = vunpack.c.h.b16 %v1954
    %v2138 = vunpack.c.l.b16 %v1955
    %v2139 = vunpack.c.h.b16 %v1955
    %v2140 = vunpack.c.l.b16 %v1956
    %v2141 = vunpack.c.h.b16 %v1956
    %v2142 = vunpack.c.l.b16 %v1957
    %v2143 = vunpack.c.h.b16 %v1957
    %v2144 = vunpack.c.l.b16 %v1958
    %v2145 = vunpack.c.h.b16 %v1958
    %v2146 = vunpack.c.l.b16 %v1959
    %v2147 = vunpack.c.h.b16 %v1959
    %v2148 = vunpack.c.l.b16 %v1960
    %v2149 = vunpack.c.h.b16 %v1960
    %v2150 = vunpack.c.l.b16 %v1961
    %v2151 = vunpack.c.h.b16 %v1961
    %v2152 = vunpack.c.l.b16 %v1962
    %v2153 = vunpack.c.h.b16 %v1962
    %v2154 = vunpack.c.l.b16 %v1963
    %v2155 = vunpack.c.h.b16 %v1963
    %v2156 = vunpack.c.l.b16 %v1964
    %v2157 = vunpack.c.h.b16 %v1964
    %v2158 = vunpack.c.l.b16 %v1965
    %v2159 = vunpack.c.h.b16 %v1965
    %v2160 = vunpack.c.l.b16 %v1966
    %v2161 = vunpack.c.h.b16 %v1966
    %v2162 = vunpack.c.l.b16 %v1967
    %v2163 = vunpack.c.h.b16 %v1967
    %v2164 = vunpack.c.l.b16 %v1968
    %v2165 = vunpack.c.h.b16 %v1968
    %v2166 = vunpack.c.l.b16 %v1969
    %v2167 = vunpack.c.h.b16 %v1969
    %v2168 = vunpack.c.l.b16 %v1970
    %v2169 = vunpack.c.h.b16 %v1970
    %v2170 = vunpack.c.l.b16 %v1971
    %v2171 = vunpack.c.h.b16 %v1971
    %v2172 = vunpack.c.l.b16 %v1972
    %v2173 = vunpack.c.h.b16 %v1972
    %v2174 = vunpack.c.l.b16 %v1973
    %v2175 = vunpack.c.h.b16 %v1973
    %v2176 = vunpack.c.l.b16 %v1974
    %v2177 = vunpack.c.h.b16 %v1974
    %v2178 = vunpack.c.l.b16 %v1975
    %v2179 = vunpack.c.h.b16 %v1975
    %v2180 = vunpack.c.l.b16 %v1976
    %v2181 = vunpack.c.h.b16 %v1976
    %v2182 = vunpack.c.l.b16 %v1977
    %v2183 = vunpack.c.h.b16 %v1977
    %v2184 = vunpack.c.l.b16 %v1978
    %v2185 = vunpack.c.h.b16 %v1978
    %v2186 = vunpack.c.l.b16 %v1979
    %v2187 = vunpack.c.h.b16 %v1979
    %v2188 = vunpack.c.l.b16 %v1980
    %v2189 = vunpack.c.h.b16 %v1980
    %v2190 = vunpack.c.l.b16 %v1981
    %v2191 = vunpack.c.h.b16 %v1981
    %v2192 = vunpack.c.l.b16 %v1982
    %v2193 = vunpack.c.h.b16 %v1982
    %v2194 = vunpack.c.l.b16 %v1983
    %v2195 = vunpack.c.h.b16 %v1983
    %v2196 = vunpack.c.l.b16 %v1984
    %v2197 = vunpack.c.h.b16 %v1984
    %v2198 = vunpack.c.l.b16 %v1985
    %v2199 = vunpack.c.h.b16 %v1985
    %v2200 = vunpack.c.l.b16 %v1986
    %v2201 = vunpack.c.h.b16 %v1986
    %v2202 = vunpack.c.l.b16 %v1987
    %v2203 = vunpack.c.h.b16 %v1987
    %v2204 = vunpack.c.l.b16 %v1988
    %v2205 = vunpack.c.h.b16 %v1988
    %v2206 = vunpack.c.l.b16 %v1989
    %v2207 = vunpack.c.h.b16 %v1989
    %v2208 = vunpack.c.l.b16 %v1990
    %v2209 = vunpack.c.h.b16 %v1990
    %v2210 = vunpack.c.l.b16 %v1991
    %v2211 = vunpack.c.h.b16 %v1991
    %v2212 = vunpack.c.l.b16 %v1992
    %v2213 = vunpack.c.h.b16 %v1992
    %v2214 = vunpack.c.l.b16 %v1993
    %v2215 = vunpack.c.h.b16 %v1993
    %v2216 = vunpack.c.l.b16 %v1994
    %v2217 = vunpack.c.h.b16 %v1994
    %v2218 = vunpack.c.l.b16 %v1995
    %v2219 = vunpack.c.h.b16 %v1995
    %v2220 = vunpack.c.l.b16 %v1996
    %v2221 = vunpack.c.h.b16 %v1996
    %v2222 = vunpack.c.l.b16 %v1997
    %v2223 = vunpack.c.h.b16 %v1997
    %v2224 = vunpack.c.l.b16 %v1998
    %v2225 = vunpack.c.h.b16 %v1998
    %v2226 = vunpack.c.l.b16 %v1999
    %v2227 = vunpack.c.h.b16 %v1999
    %v2228 = vunpack.c.l.b16 %v2000
    %v2229 = vunpack.c.h.b16 %v2000
    %v2230 = vunpack.c.l.b16 %v2001
    %v2231 = vunpack.c.h.b16 %v2001
    %v2232 = vunpack.c.l.b16 %v2002
    %v2233 = vunpack.c.h.b16 %v2002
    %v2234 = vunpack.c.l.b16 %v2003
    %v2235 = vunpack.c.h.b16 %v2003
    %v2236 = vunpack.c.l.b16 %v2004
    %v2237 = vunpack.c.h.b16 %v2004
    %v2238 = vunpack.c.l.b16 %v2005
    %v2239 = vunpack.c.h.b16 %v2005
    %v2240 = vunpack.c.l.b16 %v2006
    %v2241 = vunpack.c.h.b16 %v2006
    %v2242 = vunpack.c.l.b16 %v2007
    %v2243 = vunpack.c.h.b16 %v2007
    %v2244 = vunpack.c.l.b16 %v2008
    %v2245 = vunpack.c.h.b16 %v2008
    %v2246 = vunpack.c.l.b16 %v2009
    %v2247 = vunpack.c.h.b16 %v2009
    %v2248 = vunpack.c.l.b16 %v2010
    %v2249 = vunpack.c.h.b16 %v2010
    %v2250 = vunpack.c.l.b16 %v2011
    %v2251 = vunpack.c.h.b16 %v2011
    %v2252 = vunpack.c.l.b16 %v2012
    %v2253 = vunpack.c.h.b16 %v2012
    %v2254 = vunpack.c.l.b16 %v2013
    %v2255 = vunpack.c.h.b16 %v2013
    %v2256 = vunpack.c.l.b16 %v2014
    %v2257 = vunpack.c.h.b16 %v2014
    %v2258 = vunpack.c.l.b16 %v2015
    %v2259 = vunpack.c.h.b16 %v2015
    %v2260 = vunpack.c.l.b16 %v2016
    %v2261 = vunpack.c.h.b16 %v2016
    %v2262 = vpack.c.b16 %v2104, %v2102
    %v2263 = vpack.c.b16 %v2105, %v2103
    %v2264 = vpack.c.b16 %v2108, %v2106
    %v2265 = vpack.c.b16 %v2109, %v2107
    %v2266 = vpack.c.b16 %v2112, %v2110
    %v2267 = vpack.c.b16 %v2113, %v2111
    %v2268 = vpack.c.b16 %v2116, %v2114
    %v2269 = vpack.c.b16 %v2117, %v2115
    %v2270 = vpack.c.b16 %v2120, %v2118
    %v2271 = vpack.c.b16 %v2121, %v2119
    %v2272 = vpack.c.b16 %v2124, %v2122
    %v2273 = vpack.c.b16 %v2125, %v2123
    %v2274 = vpack.c.b16 %v2128, %v2126
    %v2275 = vpack.c.b16 %v2129, %v2127
    %v2276 = vpack.c.b16 %v2132, %v2130
    %v2277 = vpack.c.b16 %v2133, %v2131
    %v2278 = vpack.c.b16 %v2136, %v2134
    %v2279 = vpack.c.b16 %v2137, %v2135
    %v2280 = vpack.c.b16 %v2140, %v2138
    %v2281 = vpack.c.b16 %v2141, %v2139
    %v2282 = vpack.c.b16 %v2144, %v2142
    %v2283 = vpack.c.b16 %v2145, %v2143
    %v2284 = vpack.c.b16 %v2148, %v2146
    %v2285 = vpack.c.b16 %v2149, %v2147
    %v2286 = vpack.c.b16 %v2152, %v2150
    %v2287 = vpack.c.b16 %v2153, %v2151
    %v2288 = vpack.c.b16 %v2156, %v2154
    %v2289 = vpack.c.b16 %v2157, %v2155
    %v2290 = vpack.c.b16 %v2160, %v2158
    %v2291 = vpack.c.b16 %v2161, %v2159
    %v2292 = vpack.c.b16 %v2164, %v2162
    %v2293 = vpack.c.b16 %v2165, %v2163
    %v2294 = vpack.c.b16 %v2168, %v2166
    %v2295 = vpack.c.b16 %v2169, %v2167
    %v2296 = vpack.c.b16 %v2172, %v2170
    %v2297 = vpack.c.b16 %v2173, %v2171
    %v2298 = vpack.c.b16 %v2176, %v2174
    %v2299 = vpack.c.b16 %v2177, %v2175
    %v2300 = vpack.c.b16 %v2180, %v2178
    %v2301 = vpack.c.b16 %v2181, %v2179
    %v2302 = vpack.c.b16 %v2184, %v2182
    %v2303 = vpack.c.b16 %v2185, %v2183
    %v2304 = vpack.c.b16 %v2188, %v2186
    %v2305 = vpack.c.b16 %v2189, %v2187
    %v2306 = vpack.c.b16 %v2192, %v2190
    %v2307 = vpack.c.b16 %v2193, %v2191
    %v2308 = vpack.c.b16 %v2196, %v2194
    %v2309 = vpack.c.b16 %v2197, %v2195
    %v2310 = vpack.c.b16 %v2200, %v2198
    %v2311 = vpack.c.b16 %v2201, %v2199
    %v2312 = vpack.c.b16 %v2204, %v2202
    %v2313 = vpack.c.b16 %v2205, %v2203
    %v2314 = vpack.c.b16 %v2208, %v2206
    %v2315 = vpack.c.b16 %v2209, %v2207
    %v2316 = vpack.c.b16 %v2212, %v2210
    %v2317 = vpack.c.b16 %v2213, %v2211
    %v2318 = vpack.c.b16 %v2216, %v2214
    %v2319 = vpack.c.b16 %v2217, %v2215
    %v2320 = vpack.c.b16 %v2220, %v2218
    %v2321 = vpack.c.b16 %v2221, %v2219
    %v2322 = vpack.c.b16 %v2224, %v2222
    %v2323 = vpack.c.b16 %v2225, %v2223
    %v2324 = vpack.c.b16 %v2228, %v2226
    %v2325 = vpack.c.b16 %v2229, %v2227
    %v2326 = vpack.c.b16 %v2232, %v2230
    %v2327 = vpack.c.b16 %v2233, %v2231
    %v2328 = vpack.c.b16 %v2236, %v2234
    %v2329 = vpack.c.b16 %v2237, %v2235
    %v2330 = vpack.c.b16 %v2240, %v2238
    %v2331 = vpack.c.b16 %v2241, %v2239
    %v2332 = vpack.c.b16 %v2244, %v2242
    %v2333 = vpack.c.b16 %v2245, %v2243
    %v2334 = vpack.c.b16 %v2248, %v2246
    %v2335 = vpack.c.b16 %v2249, %v2247
    %v2336 = vpack.c.b16 %v2252, %v2250
    %v2337 = vpack.c.b16 %v2253, %v2251
    %v2338 = vpack.c.b16 %v2256, %v2254
    %v2339 = vpack.c.b16 %v2257, %v2255
    %v2340 = vpack.c.b16 %v2260, %v2258
    %v2341 = vpack.c.b16 %v2261, %v2259
    %2422 = vmatprep.subr.bf16.mxu0 %v2277
    %2423 = vmatpush1.bf16.msra.mxu0 %v2276
    %2424 = vmatprep.subr.bf16.mxu0 %v2275
    %2425 = vmatpush1.bf16.msra.mxu0 %v2274
    %2426 = vmatprep.subr.bf16.mxu0 %v2273
    %2427 = vmatpush1.bf16.msra.mxu0 %v2272
    %2428 = vmatprep.subr.bf16.mxu0 %v2271
    %2429 = vmatpush1.bf16.msra.mxu0 %v2270
    %2430 = vmatprep.subr.bf16.mxu0 %v2269
    %2431 = vmatpush1.bf16.msra.mxu0 %v2268
    %2432 = vmatprep.subr.bf16.mxu0 %v2267
    %2433 = vmatpush1.bf16.msra.mxu0 %v2266
    %2434 = vmatprep.subr.bf16.mxu0 %v2265
    %2435 = vmatpush1.bf16.msra.mxu0 %v2264
    %2436 = vmatprep.subr.bf16.mxu0 %v2263
    %2437 = vmatpush1.bf16.msra.mxu0 %v2262
    %2438 = vmatprep.subr.bf16.mxu0 %v2293
    %2439 = vmatpush2.bf16.msra.mxu0 %v2292
    %2440 = vmatprep.subr.bf16.mxu0 %v2291
    %2441 = vmatpush2.bf16.msra.mxu0 %v2290
    %2442 = vmatprep.subr.bf16.mxu0 %v2289
    %2443 = vmatpush2.bf16.msra.mxu0 %v2288
    %2444 = vmatprep.subr.bf16.mxu0 %v2287
    %2445 = vmatpush2.bf16.msra.mxu0 %v2286
    %2446 = vmatprep.subr.bf16.mxu0 %v2285
    %2447 = vmatpush2.bf16.msra.mxu0 %v2284
    %2448 = vmatprep.subr.bf16.mxu0 %v2283
    %2449 = vmatpush2.bf16.msra.mxu0 %v2282
    %2450 = vmatprep.subr.bf16.mxu0 %v2281
    %2451 = vmatpush2.bf16.msra.mxu0 %v2280
    %2452 = vmatprep.subr.bf16.mxu0 %v2279
    %2453 = vmatpush2.bf16.msra.mxu0 %v2278
    %2454 = vmatprep.mubr.bf16.mxu0 %v2018
    %2455 = vmatmul.mubr.bf16.gmra.mxu0 %v2017
    %v2456 = vpop.f32.mrf.mxu0
    %v2457 = vadd.f32 %v60, %v2456
    %v2458 = vpop.f32.mrf.mxu0
    %v2459 = vadd.f32 %v64, %v2458
    %v2460 = vpop.f32.mrf.mxu0
    %v2461 = vadd.f32 %v60, %v2460
    %v2462 = vpop.f32.mrf.mxu0
    %v2463 = vadd.f32 %v64, %v2462
    %2464 = vdwg.mxu0
    %2465 = vmatprep.subr.bf16.mxu0 %v2309
    %2466 = vmatpush1.bf16.msra.mxu0 %v2308
    %2467 = vmatprep.subr.bf16.mxu0 %v2307
    %2468 = vmatpush1.bf16.msra.mxu0 %v2306
    %2469 = vmatprep.subr.bf16.mxu0 %v2305
    %2470 = vmatpush1.bf16.msra.mxu0 %v2304
    %2471 = vmatprep.subr.bf16.mxu0 %v2303
    %2472 = vmatpush1.bf16.msra.mxu0 %v2302
    %2473 = vmatprep.subr.bf16.mxu0 %v2301
    %2474 = vmatpush1.bf16.msra.mxu0 %v2300
    %2475 = vmatprep.subr.bf16.mxu0 %v2299
    %2476 = vmatpush1.bf16.msra.mxu0 %v2298
    %2477 = vmatprep.subr.bf16.mxu0 %v2297
    %2478 = vmatpush1.bf16.msra.mxu0 %v2296
    %2479 = vmatprep.subr.bf16.mxu0 %v2295
    %2480 = vmatpush1.bf16.msra.mxu0 %v2294
    %2481 = vmatprep.subr.bf16.mxu0 %v2325
    %2482 = vmatpush2.bf16.msra.mxu0 %v2324
    %2483 = vmatprep.subr.bf16.mxu0 %v2323
    %2484 = vmatpush2.bf16.msra.mxu0 %v2322
    %2485 = vmatprep.subr.bf16.mxu0 %v2321
    %2486 = vmatpush2.bf16.msra.mxu0 %v2320
    %2487 = vmatprep.subr.bf16.mxu0 %v2319
    %2488 = vmatpush2.bf16.msra.mxu0 %v2318
    %2489 = vmatprep.subr.bf16.mxu0 %v2317
    %2490 = vmatpush2.bf16.msra.mxu0 %v2316
    %2491 = vmatprep.subr.bf16.mxu0 %v2315
    %2492 = vmatpush2.bf16.msra.mxu0 %v2314
    %2493 = vmatprep.subr.bf16.mxu0 %v2313
    %2494 = vmatpush2.bf16.msra.mxu0 %v2312
    %2495 = vmatprep.subr.bf16.mxu0 %v2311
    %2496 = vmatpush2.bf16.msra.mxu0 %v2310
    %2497 = vmatprep.mubr.bf16.mxu0 %v2020
    %2498 = vmatmul.mubr.bf16.gmra.mxu0 %v2019
    %v2499 = vpop.f32.mrf.mxu0
    %v2500 = vadd.f32 %v2457, %v2499
    %v2501 = vpop.f32.mrf.mxu0
    %v2502 = vadd.f32 %v2459, %v2501
    %v2503 = vpop.f32.mrf.mxu0
    %v2504 = vadd.f32 %v2461, %v2503
    %v2505 = vpop.f32.mrf.mxu0
    %v2506 = vadd.f32 %v2463, %v2505
    %2507 = vdwg.mxu0
    %2508 = vmatprep.subr.bf16.mxu0 %v2341
    %2509 = vmatpush1.bf16.msra.mxu0 %v2340
    %2510 = vmatprep.subr.bf16.mxu0 %v2339
    %2511 = vmatpush1.bf16.msra.mxu0 %v2338
    %2512 = vmatprep.subr.bf16.mxu0 %v2337
    %2513 = vmatpush1.bf16.msra.mxu0 %v2336
    %2514 = vmatprep.subr.bf16.mxu0 %v2335
    %2515 = vmatpush1.bf16.msra.mxu0 %v2334
    %2516 = vmatprep.subr.bf16.mxu0 %v2333
    %2517 = vmatpush1.bf16.msra.mxu0 %v2332
    %2518 = vmatprep.subr.bf16.mxu0 %v2331
    %2519 = vmatpush1.bf16.msra.mxu0 %v2330
    %2520 = vmatprep.subr.bf16.mxu0 %v2329
    %2521 = vmatpush1.bf16.msra.mxu0 %v2328
    %2522 = vmatprep.subr.bf16.mxu0 %v2327
    %2523 = vmatpush1.bf16.msra.mxu0 %v2326
    %2524 = vmatprep.subr.bf16.mxu0 0
    %2525 = vmatpush2.bf16.msra.mxu0 0
    %2526 = vmatprep.subr.bf16.mxu0 0
    %2527 = vmatpush2.bf16.msra.mxu0 0
    %2528 = vmatprep.subr.bf16.mxu0 0
    %2529 = vmatpush2.bf16.msra.mxu0 0
    %2530 = vmatprep.subr.bf16.mxu0 0
    %2531 = vmatpush2.bf16.msra.mxu0 0
    %2532 = vmatprep.subr.bf16.mxu0 0
    %2533 = vmatpush2.bf16.msra.mxu0 0
    %2534 = vmatprep.subr.bf16.mxu0 0
    %2535 = vmatpush2.bf16.msra.mxu0 0
    %2536 = vmatprep.subr.bf16.mxu0 0
    %2537 = vmatpush2.bf16.msra.mxu0 0
    %2538 = vmatprep.subr.bf16.mxu0 0
    %2539 = vmatpush2.bf16.msra.mxu0 0
    %2540 = vmatprep.mubr.bf16.mxu0 0
    %2541 = vmatmul.mubr.bf16.gmra.mxu0 %v2021
    %v2542 = vpop.f32.mrf.mxu0
    %v2543 = vadd.f32 %v2500, %v2542
    %v2544 = vpop.f32.mrf.mxu0
    %v2545 = vadd.f32 %v2502, %v2544
    %v2546 = vpop.f32.mrf.mxu0
    %v2547 = vadd.f32 %v2504, %v2546
    %v2548 = vpop.f32.mrf.mxu0
    %v2549 = vadd.f32 %v2506, %v2548
    %2550 = vdwg.mxu0
    %v2551 = vmax.f32 %v2543, 0.0
    %v2552 = vmax.f32 %v2545, 0.0
    %v2553 = vmax.f32 %v2547, 0.0
    %v2554 = vmax.f32 %v2549, 0.0
    %v2555 = vld [vmem:[#allocation3 + $0x3f0] sm:$0xf]
    %v2556 = vld [vmem:[#allocation3 + $0x3f8] sm:$0xf]
    %v2557 = vpack.c.bf16 %v2553, %v2551
    %v2558 = vpack.c.bf16 %v2554, %v2552
    %v2561 = vunpack.c.l.b16 %v2555
    %v2562 = vunpack.c.l.b16 %v2556
    %v2563 = vpack.c.b16 %v2562, %v2561
    %v2565 = vsel %vm1194, %v2563, 0
    %v2568 = vsel %vm556, %v2557, 0
    %v2571 = vsel %vm556, %v2558, 0
    %2573 = vmatprep.subr.bf16.mxu0 0
    %2574 = vmatpush1.bf16.msra.mxu0 0
    %2575 = vmatprep.subr.bf16.mxu0 0
    %2576 = vmatpush1.bf16.msra.mxu0 0
    %2577 = vmatprep.subr.bf16.mxu0 0
    %2578 = vmatpush1.bf16.msra.mxu0 0
    %2579 = vmatprep.subr.bf16.mxu0 0
    %2580 = vmatpush1.bf16.msra.mxu0 0
    %2581 = vmatprep.subr.bf16.mxu0 0
    %2582 = vmatpush1.bf16.msra.mxu0 0
    %2583 = vmatprep.subr.bf16.mxu0 0
    %2584 = vmatpush1.bf16.msra.mxu0 0
    %2585 = vmatprep.subr.bf16.mxu0 0
    %2586 = vmatpush1.bf16.msra.mxu0 0
    %2587 = vmatprep.subr.bf16.mxu0 %v2571
    %2588 = vmatpush1.bf16.msra.mxu0 %v2568
    %2589 = vmatprep.subr.bf16.mxu0 0
    %2590 = vmatpush2.bf16.msra.mxu0 0
    %2591 = vmatprep.subr.bf16.mxu0 0
    %2592 = vmatpush2.bf16.msra.mxu0 0
    %2593 = vmatprep.subr.bf16.mxu0 0
    %2594 = vmatpush2.bf16.msra.mxu0 0
    %2595 = vmatprep.subr.bf16.mxu0 0
    %2596 = vmatpush2.bf16.msra.mxu0 0
    %2597 = vmatprep.subr.bf16.mxu0 0
    %2598 = vmatpush2.bf16.msra.mxu0 0
    %2599 = vmatprep.subr.bf16.mxu0 0
    %2600 = vmatpush2.bf16.msra.mxu0 0
    %2601 = vmatprep.subr.bf16.mxu0 0
    %2602 = vmatpush2.bf16.msra.mxu0 0
    %2603 = vmatprep.subr.bf16.mxu0 0
    %2604 = vmatpush2.bf16.msra.mxu0 0
    %2605 = vmatprep.mubr.bf16.mxu0 0
    %2606 = vmatmul.mubr.bf16.gmra.mxu0 %v2565
    %v2607 = vpop.f32.mrf.mxu0
    %v2608 = vadd.f32 0.0, %v2607
    %v2609 = vpop.f32.mrf.mxu0
    %v2610 = vadd.f32 0.0, %v2609
    %v2611 = vpop.f32.mrf.mxu0
    %v2612 = vadd.f32 0.0, %v2611
    %v2613 = vpop.f32.mrf.mxu0
    %v2614 = vadd.f32 0.0, %v2613
    %2615 = vdwg.mxu0
    %v2616 = vmax.f32 %v2608, %v2612
    %v2617 = vmax.f32 %v2610, %v2614
    %v2618 = vld [vmem:[#allocation3 + $0x400] sm:$0xff]
    %v2619 = vld [vmem:[#allocation3 + $0x408] sm:$0xff]
    %v2620 = vld [vmem:[#allocation3 + $0x410] sm:$0xff]
    %v2621 = vld [vmem:[#allocation3 + $0x418] sm:$0xff]
    %v2622 = vld [vmem:[#allocation3 + $0x420] sm:$0xff]
    %v2623 = vld [vmem:[#allocation3 + $0x428] sm:$0xff]
    %v2624 = vld [vmem:[#allocation3 + $0x430] sm:$0xff]
    %v2625 = vld [vmem:[#allocation3 + $0x438] sm:$0xff]
    %v2626 = vld [vmem:[#allocation3 + $0x440] sm:$0xff]
    %v2627 = vld [vmem:[#allocation3 + $0x448] sm:$0xff]
    %v2628 = vld [vmem:[#allocation3 + $0x450] sm:$0xff]
    %v2629 = vld [vmem:[#allocation3 + $0x458] sm:$0xff]
    %v2630 = vld [vmem:[#allocation3 + $0x460] sm:$0xff]
    %v2631 = vld [vmem:[#allocation3 + $0x468] sm:$0xff]
    %v2632 = vld [vmem:[#allocation3 + $0x470] sm:$0xff]
    %v2633 = vld [vmem:[#allocation3 + $0x478] sm:$0xff]
    %v2634 = vld [vmem:[#allocation3 + $0x480] sm:$0xff]
    %v2635 = vld [vmem:[#allocation3 + $0x488] sm:$0xff]
    %v2636 = vld [vmem:[#allocation3 + $0x490] sm:$0xff]
    %v2637 = vld [vmem:[#allocation3 + $0x498] sm:$0xff]
    %v2638 = vpack.c.bf16 %v2616, %v2616
    %v2639 = vpack.c.bf16 %v2617, %v2617
    %v2660 = vunpack.c.l.b16 %v2618
    %v2661 = vunpack.c.h.b16 %v2618
    %v2662 = vunpack.c.l.b16 %v2619
    %v2663 = vunpack.c.h.b16 %v2619
    %v2664 = vunpack.c.l.b16 %v2620
    %v2665 = vunpack.c.h.b16 %v2620
    %v2666 = vunpack.c.l.b16 %v2621
    %v2667 = vunpack.c.h.b16 %v2621
    %v2668 = vunpack.c.l.b16 %v2622
    %v2669 = vunpack.c.h.b16 %v2622
    %v2670 = vunpack.c.l.b16 %v2623
    %v2671 = vunpack.c.h.b16 %v2623
    %v2672 = vunpack.c.l.b16 %v2624
    %v2673 = vunpack.c.h.b16 %v2624
    %v2674 = vunpack.c.l.b16 %v2625
    %v2675 = vunpack.c.h.b16 %v2625
    %v2676 = vunpack.c.l.b16 %v2626
    %v2677 = vunpack.c.h.b16 %v2626
    %v2678 = vunpack.c.l.b16 %v2627
    %v2679 = vunpack.c.h.b16 %v2627
    %v2680 = vunpack.c.l.b16 %v2628
    %v2681 = vunpack.c.h.b16 %v2628
    %v2682 = vunpack.c.l.b16 %v2629
    %v2683 = vunpack.c.h.b16 %v2629
    %v2684 = vunpack.c.l.b16 %v2630
    %v2685 = vunpack.c.h.b16 %v2630
    %v2686 = vunpack.c.l.b16 %v2631
    %v2687 = vunpack.c.h.b16 %v2631
    %v2688 = vunpack.c.l.b16 %v2632
    %v2689 = vunpack.c.h.b16 %v2632
    %v2690 = vunpack.c.l.b16 %v2633
    %v2691 = vunpack.c.h.b16 %v2633
    %v2692 = vunpack.c.l.b16 %v2634
    %v2693 = vunpack.c.h.b16 %v2634
    %v2694 = vunpack.c.l.b16 %v2635
    %v2695 = vunpack.c.h.b16 %v2635
    %v2696 = vunpack.c.l.b16 %v2636
    %v2697 = vunpack.c.h.b16 %v2636
    %v2698 = vunpack.c.l.b16 %v2637
    %v2699 = vunpack.c.h.b16 %v2637
    %v2700 = vpack.c.b16 %v2662, %v2660
    %v2701 = vpack.c.b16 %v2663, %v2661
    %v2702 = vpack.c.b16 %v2666, %v2664
    %v2703 = vpack.c.b16 %v2667, %v2665
    %v2704 = vpack.c.b16 %v2670, %v2668
    %v2705 = vpack.c.b16 %v2671, %v2669
    %v2706 = vpack.c.b16 %v2674, %v2672
    %v2707 = vpack.c.b16 %v2675, %v2673
    %v2708 = vpack.c.b16 %v2678, %v2676
    %v2709 = vpack.c.b16 %v2679, %v2677
    %v2710 = vpack.c.b16 %v2682, %v2680
    %v2711 = vpack.c.b16 %v2683, %v2681
    %v2712 = vpack.c.b16 %v2686, %v2684
    %v2713 = vpack.c.b16 %v2687, %v2685
    %v2714 = vpack.c.b16 %v2690, %v2688
    %v2715 = vpack.c.b16 %v2691, %v2689
    %v2716 = vpack.c.b16 %v2694, %v2692
    %v2717 = vpack.c.b16 %v2695, %v2693
    %v2718 = vpack.c.b16 %v2698, %v2696
    %v2719 = vpack.c.b16 %v2699, %v2697
    %v2741 = vsel %vm202, %v2639, 0
    %2743 = vmatprep.subr.bf16.mxu0 %v2715
    %2744 = vmatpush1.bf16.msra.mxu0 %v2714
    %2745 = vmatprep.subr.bf16.mxu0 %v2713
    %2746 = vmatpush1.bf16.msra.mxu0 %v2712
    %2747 = vmatprep.subr.bf16.mxu0 %v2711
    %2748 = vmatpush1.bf16.msra.mxu0 %v2710
    %2749 = vmatprep.subr.bf16.mxu0 %v2709
    %2750 = vmatpush1.bf16.msra.mxu0 %v2708
    %2751 = vmatprep.subr.bf16.mxu0 %v2707
    %2752 = vmatpush1.bf16.msra.mxu0 %v2706
    %2753 = vmatprep.subr.bf16.mxu0 %v2705
    %2754 = vmatpush1.bf16.msra.mxu0 %v2704
    %2755 = vmatprep.subr.bf16.mxu0 %v2703
    %2756 = vmatpush1.bf16.msra.mxu0 %v2702
    %2757 = vmatprep.subr.bf16.mxu0 %v2701
    %2758 = vmatpush1.bf16.msra.mxu0 %v2700
    %2759 = vmatprep.subr.bf16.mxu0 0
    %2760 = vmatpush2.bf16.msra.mxu0 0
    %2761 = vmatprep.subr.bf16.mxu0 0
    %2762 = vmatpush2.bf16.msra.mxu0 0
    %2763 = vmatprep.subr.bf16.mxu0 0
    %2764 = vmatpush2.bf16.msra.mxu0 0
    %2765 = vmatprep.subr.bf16.mxu0 0
    %2766 = vmatpush2.bf16.msra.mxu0 0
    %2767 = vmatprep.subr.bf16.mxu0 0
    %2768 = vmatpush2.bf16.msra.mxu0 0
    %2769 = vmatprep.subr.bf16.mxu0 0
    %2770 = vmatpush2.bf16.msra.mxu0 0
    %2771 = vmatprep.subr.bf16.mxu0 %v2719
    %2772 = vmatpush2.bf16.msra.mxu0 %v2718
    %2773 = vmatprep.subr.bf16.mxu0 %v2717
    %2774 = vmatpush2.bf16.msra.mxu0 %v2716
    %2775 = vmatprep.mubr.bf16.mxu0 %v2741
    %2776 = vmatmul.mubr.bf16.gmra.mxu0 %v2638
    %v2777 = vpop.f32.mrf.mxu0
    %v2778 = vadd.f32 0.0, %v2777
    %v2779 = vpop.f32.mrf.mxu0
    %v2780 = vadd.f32 0.0, %v2779
    %v2781 = vpop.f32.mrf.mxu0
    %v2782 = vpop.f32.mrf.mxu0
    %2783 = vdwg.mxu0
    %v2784 = vmax.f32 %v2778, %v2780
    %2785 = vst [vmem:[#allocation2 + $0x1] sm:$0x1] %v2784
    %v2788 = vunpack.c.l.s4 1983009808
    %v2789 = vunpack.c.0.s8 %v2788
    %v2790 = vlaneseq
    %v2791 = vshrl.u32 %v2790, 7
    %v2792 = vsub.s32 %v2789, %v2791
    %v2793 = vrot.slane %v2784, %v2792
    %v2794 = vrot.slane %v2793, 7
    %v2795 = vrot.slane %v2794, 2
    %2797 = vst [vmem:[#allocation2 + $0x3] sm:$0x1] %v2795
    %v2798 = vcombine.high %v2793, %v2793
    %2800 = vst [vmem:[#allocation2 + $0x5] sm:$0x1] %v2798
    %v2801 = vrot.slane %v2798, 7
    %v2802 = vrot.slane %v2801, 2
    %2804 = vst [vmem:[#allocation2 + $0x7] sm:$0x1] %v2802
    %v2805 = vcombine.high %v2784, %v2784
    %v2807 = vunpack.c.l.s4 1983009808
    %v2808 = vunpack.c.0.s8 %v2807
    %v2809 = vlaneseq
    %v2810 = vshrl.u32 %v2809, 7
    %v2811 = vsub.s32 %v2808, %v2810
    %v2812 = vrot.slane %v2805, %v2811
    %2814 = vst [vmem:[#allocation2 + $0x9] sm:$0x1] %v2812
    %v2815 = vld [vmem:[#allocation2] sm:$0xff]
    %v2816 = vld [vmem:[#allocation2 + $0x8] sm:$0x3]
    %v2817 = vld [vmem:[#allocation3 + $0x4a0] sm:$0xf]
    %v2818 = vld [vmem:[#allocation3 + $0x4a8] sm:$0xf]
    %v2819 = vld [vmem:[#allocation3 + $0x4b0] sm:$0xf]
    %v2820 = vld [vmem:[#allocation3 + $0x4b8] sm:$0xf]
    %v2821 = vld [vmem:[#allocation3 + $0x4c0] sm:$0xf]
    %v2822 = vld [vmem:[#allocation3 + $0x4c8] sm:$0xf]
    %v2823 = vld [vmem:[#allocation3 + $0x4d0] sm:$0xf]
    %v2824 = vld [vmem:[#allocation3 + $0x4d8] sm:$0xf]
    %v2825 = vld [vmem:[#allocation3 + $0x4e0] sm:$0xf]
    %v2826 = vld [vmem:[#allocation3 + $0x4e8] sm:$0xf]
    %v2827 = vld [vmem:[#allocation3 + $0x4f0] sm:$0xf]
    %v2828 = vld [vmem:[#allocation3 + $0x4f8] sm:$0xf]
    %v2829 = vld [vmem:[#allocation3 + $0x500] sm:$0xf]
    %v2830 = vld [vmem:[#allocation3 + $0x508] sm:$0xf]
    %v2831 = vld [vmem:[#allocation3 + $0x510] sm:$0xf]
    %v2832 = vld [vmem:[#allocation3 + $0x518] sm:$0xf]
    %v2833 = vld [vmem:[#allocation3 + $0x520] sm:$0xf]
    %v2834 = vld [vmem:[#allocation3 + $0x528] sm:$0xf]
    %v2835 = vld [vmem:[#allocation3 + $0x530] sm:$0xf]
    %v2836 = vld [vmem:[#allocation3 + $0x538] sm:$0xf]
    %v2837 = vld [vmem:[#allocation3 + $0x540] sm:$0xf]
    %v2838 = vld [vmem:[#allocation3 + $0x548] sm:$0xf]
    %v2839 = vld [vmem:[#allocation3 + $0x550] sm:$0xf]
    %v2840 = vld [vmem:[#allocation3 + $0x558] sm:$0xf]
    %v2841 = vld [vmem:[#allocation3 + $0x560] sm:$0xf]
    %v2842 = vld [vmem:[#allocation3 + $0x568] sm:$0xf]
    %v2843 = vld [vmem:[#allocation3 + $0x570] sm:$0xf]
    %v2844 = vld [vmem:[#allocation3 + $0x578] sm:$0xf]
    %v2845 = vld [vmem:[#allocation3 + $0x580] sm:$0xf]
    %v2846 = vld [vmem:[#allocation3 + $0x588] sm:$0xf]
    %v2847 = vld [vmem:[#allocation3 + $0x590] sm:$0xf]
    %v2848 = vld [vmem:[#allocation3 + $0x598] sm:$0xf]
    %v2849 = vld [vmem:[#allocation3 + $0x5a0] sm:$0xf]
    %v2850 = vld [vmem:[#allocation3 + $0x5a8] sm:$0xf]
    %v2851 = vld [vmem:[#allocation3 + $0x5b0] sm:$0xf]
    %v2852 = vld [vmem:[#allocation3 + $0x5b8] sm:$0xf]
    %v2853 = vld [vmem:[#allocation3 + $0x5c0] sm:$0xf]
    %v2854 = vld [vmem:[#allocation3 + $0x5c8] sm:$0xf]
    %v2855 = vld [vmem:[#allocation3 + $0x5d0] sm:$0xf]
    %v2856 = vld [vmem:[#allocation3 + $0x5d8] sm:$0xf]
    %v2857 = vld [vmem:[#allocation3 + $0x5e0] sm:$0xf]
    %v2858 = vld [vmem:[#allocation3 + $0x5e8] sm:$0xf]
    %v2859 = vld [vmem:[#allocation3 + $0x5f0] sm:$0xf]
    %v2860 = vld [vmem:[#allocation3 + $0x5f8] sm:$0xf]
    %v2861 = vld [vmem:[#allocation3 + $0x600] sm:$0xf]
    %v2862 = vld [vmem:[#allocation3 + $0x608] sm:$0xf]
    %v2863 = vld [vmem:[#allocation3 + $0x610] sm:$0xf]
    %v2864 = vld [vmem:[#allocation3 + $0x618] sm:$0xf]
    %v2865 = vld [vmem:[#allocation3 + $0x620] sm:$0xf]
    %v2866 = vld [vmem:[#allocation3 + $0x628] sm:$0xf]
    %v2867 = vld [vmem:[#allocation3 + $0x630] sm:$0xf]
    %v2868 = vld [vmem:[#allocation3 + $0x638] sm:$0xf]
    %v2869 = vld [vmem:[#allocation3 + $0x640] sm:$0xf]
    %v2870 = vld [vmem:[#allocation3 + $0x648] sm:$0xf]
    %v2871 = vld [vmem:[#allocation3 + $0x650] sm:$0xf]
    %v2872 = vld [vmem:[#allocation3 + $0x658] sm:$0xf]
    %v2873 = vld [vmem:[#allocation3 + $0x660] sm:$0xf]
    %v2874 = vld [vmem:[#allocation3 + $0x668] sm:$0xf]
    %v2875 = vld [vmem:[#allocation3 + $0x670] sm:$0xf]
    %v2876 = vld [vmem:[#allocation3 + $0x678] sm:$0xf]
    %v2877 = vld [vmem:[#allocation3 + $0x680] sm:$0xf]
    %v2878 = vld [vmem:[#allocation3 + $0x688] sm:$0xf]
    %v2879 = vld [vmem:[#allocation3 + $0x690] sm:$0xf]
    %v2880 = vld [vmem:[#allocation3 + $0x698] sm:$0xf]
    %v2881 = vld [vmem:[#allocation3 + $0x6a0] sm:$0xf]
    %v2882 = vld [vmem:[#allocation3 + $0x6a8] sm:$0xf]
    %v2883 = vld [vmem:[#allocation3 + $0x6b0] sm:$0xf]
    %v2884 = vld [vmem:[#allocation3 + $0x6b8] sm:$0xf]
    %v2885 = vld [vmem:[#allocation3 + $0x6c0] sm:$0xf]
    %v2886 = vld [vmem:[#allocation3 + $0x6c8] sm:$0xf]
    %v2887 = vld [vmem:[#allocation3 + $0x6d0] sm:$0xf]
    %v2888 = vld [vmem:[#allocation3 + $0x6d8] sm:$0xf]
    %v2889 = vld [vmem:[#allocation3 + $0x6e0] sm:$0xf]
    %v2890 = vld [vmem:[#allocation3 + $0x6e8] sm:$0xf]
    %v2891 = vld [vmem:[#allocation3 + $0x6f0] sm:$0xf]
    %v2892 = vld [vmem:[#allocation3 + $0x6f8] sm:$0xf]
    %v2893 = vld [vmem:[#allocation3 + $0x700] sm:$0xf]
    %v2894 = vld [vmem:[#allocation3 + $0x708] sm:$0xf]
    %v2895 = vld [vmem:[#allocation3 + $0x710] sm:$0xf]
    %v2896 = vld [vmem:[#allocation3 + $0x718] sm:$0xf]
    %v2899 = vcombine.high %v2815, %v2815
    %v2901 = vunpack.c.l.s4 1983009808
    %v2902 = vunpack.c.0.s8 %v2901
    %v2903 = vlaneseq
    %v2904 = vshrl.u32 %v2903, 7
    %v2905 = vsub.s32 %v2902, %v2904
    %v2906 = vrot.slane %v2815, %v2905
    %v2908 = vunpack.c.l.s4 1983009808
    %v2909 = vunpack.c.0.s8 %v2908
    %v2910 = vlaneseq
    %v2911 = vshrl.u32 %v2910, 7
    %v2912 = vsub.s32 %v2909, %v2911
    %v2913 = vrot.slane %v2899, %v2912
    %v2914 = vcombine.high %v2906, %v2906
    %v2915 = vcombine.high %v2913, %v2913
    %v2917 = vunpack.c.l.s4 1983009808
    %v2918 = vunpack.c.0.s8 %v2917
    %v2919 = vlaneseq
    %v2920 = vshrl.u32 %v2919, 7
    %v2921 = vsub.s32 %v2918, %v2920
    %v2922 = vrot.slane %v2816, %v2921
    %v2928 = vpack.c.bf16 %v2906, %v2906
    %v2929 = vpack.c.bf16 %v2914, %v2914
    %v2930 = vpack.c.bf16 %v2913, %v2913
    %v2931 = vpack.c.bf16 %v2915, %v2915
    %v2932 = vpack.c.bf16 %v2922, %v2922
    %v3013 = vunpack.c.l.b16 %v2817
    %v3014 = vunpack.c.l.b16 %v2818
    %v3015 = vunpack.c.l.b16 %v2819
    %v3016 = vunpack.c.l.b16 %v2820
    %v3017 = vunpack.c.l.b16 %v2821
    %v3018 = vunpack.c.l.b16 %v2822
    %v3019 = vunpack.c.l.b16 %v2823
    %v3020 = vunpack.c.l.b16 %v2824
    %v3021 = vunpack.c.l.b16 %v2825
    %v3022 = vunpack.c.l.b16 %v2826
    %v3023 = vunpack.c.l.b16 %v2827
    %v3024 = vunpack.c.l.b16 %v2828
    %v3025 = vunpack.c.l.b16 %v2829
    %v3026 = vunpack.c.l.b16 %v2830
    %v3027 = vunpack.c.l.b16 %v2831
    %v3028 = vunpack.c.l.b16 %v2832
    %v3029 = vunpack.c.l.b16 %v2833
    %v3030 = vunpack.c.l.b16 %v2834
    %v3031 = vunpack.c.l.b16 %v2835
    %v3032 = vunpack.c.l.b16 %v2836
    %v3033 = vunpack.c.l.b16 %v2837
    %v3034 = vunpack.c.l.b16 %v2838
    %v3035 = vunpack.c.l.b16 %v2839
    %v3036 = vunpack.c.l.b16 %v2840
    %v3037 = vunpack.c.l.b16 %v2841
    %v3038 = vunpack.c.l.b16 %v2842
    %v3039 = vunpack.c.l.b16 %v2843
    %v3040 = vunpack.c.l.b16 %v2844
    %v3041 = vunpack.c.l.b16 %v2845
    %v3042 = vunpack.c.l.b16 %v2846
    %v3043 = vunpack.c.l.b16 %v2847
    %v3044 = vunpack.c.l.b16 %v2848
    %v3045 = vunpack.c.l.b16 %v2849
    %v3046 = vunpack.c.l.b16 %v2850
    %v3047 = vunpack.c.l.b16 %v2851
    %v3048 = vunpack.c.l.b16 %v2852
    %v3049 = vunpack.c.l.b16 %v2853
    %v3050 = vunpack.c.l.b16 %v2854
    %v3051 = vunpack.c.l.b16 %v2855
    %v3052 = vunpack.c.l.b16 %v2856
    %v3053 = vunpack.c.l.b16 %v2857
    %v3054 = vunpack.c.l.b16 %v2858
    %v3055 = vunpack.c.l.b16 %v2859
    %v3056 = vunpack.c.l.b16 %v2860
    %v3057 = vunpack.c.l.b16 %v2861
    %v3058 = vunpack.c.l.b16 %v2862
    %v3059 = vunpack.c.l.b16 %v2863
    %v3060 = vunpack.c.l.b16 %v2864
    %v3061 = vunpack.c.l.b16 %v2865
    %v3062 = vunpack.c.l.b16 %v2866
    %v3063 = vunpack.c.l.b16 %v2867
    %v3064 = vunpack.c.l.b16 %v2868
    %v3065 = vunpack.c.l.b16 %v2869
    %v3066 = vunpack.c.l.b16 %v2870
    %v3067 = vunpack.c.l.b16 %v2871
    %v3068 = vunpack.c.l.b16 %v2872
    %v3069 = vunpack.c.l.b16 %v2873
    %v3070 = vunpack.c.l.b16 %v2874
    %v3071 = vunpack.c.l.b16 %v2875
    %v3072 = vunpack.c.l.b16 %v2876
    %v3073 = vunpack.c.l.b16 %v2877
    %v3074 = vunpack.c.l.b16 %v2878
    %v3075 = vunpack.c.l.b16 %v2879
    %v3076 = vunpack.c.l.b16 %v2880
    %v3077 = vunpack.c.l.b16 %v2881
    %v3078 = vunpack.c.l.b16 %v2882
    %v3079 = vunpack.c.l.b16 %v2883
    %v3080 = vunpack.c.l.b16 %v2884
    %v3081 = vunpack.c.l.b16 %v2885
    %v3082 = vunpack.c.l.b16 %v2886
    %v3083 = vunpack.c.l.b16 %v2887
    %v3084 = vunpack.c.l.b16 %v2888
    %v3085 = vunpack.c.l.b16 %v2889
    %v3086 = vunpack.c.l.b16 %v2890
    %v3087 = vunpack.c.l.b16 %v2891
    %v3088 = vunpack.c.l.b16 %v2892
    %v3089 = vunpack.c.l.b16 %v2893
    %v3090 = vunpack.c.l.b16 %v2894
    %v3091 = vunpack.c.l.b16 %v2895
    %v3092 = vunpack.c.l.b16 %v2896
    %v3093 = vpack.c.b16 %v3014, %v3013
    %v3094 = vpack.c.b16 %v3016, %v3015
    %v3095 = vpack.c.b16 %v3018, %v3017
    %v3096 = vpack.c.b16 %v3020, %v3019
    %v3097 = vpack.c.b16 %v3022, %v3021
    %v3098 = vpack.c.b16 %v3024, %v3023
    %v3099 = vpack.c.b16 %v3026, %v3025
    %v3100 = vpack.c.b16 %v3028, %v3027
    %v3101 = vpack.c.b16 %v3030, %v3029
    %v3102 = vpack.c.b16 %v3032, %v3031
    %v3103 = vpack.c.b16 %v3034, %v3033
    %v3104 = vpack.c.b16 %v3036, %v3035
    %v3105 = vpack.c.b16 %v3038, %v3037
    %v3106 = vpack.c.b16 %v3040, %v3039
    %v3107 = vpack.c.b16 %v3042, %v3041
    %v3108 = vpack.c.b16 %v3044, %v3043
    %v3109 = vpack.c.b16 %v3046, %v3045
    %v3110 = vpack.c.b16 %v3048, %v3047
    %v3111 = vpack.c.b16 %v3050, %v3049
    %v3112 = vpack.c.b16 %v3052, %v3051
    %v3113 = vpack.c.b16 %v3054, %v3053
    %v3114 = vpack.c.b16 %v3056, %v3055
    %v3115 = vpack.c.b16 %v3058, %v3057
    %v3116 = vpack.c.b16 %v3060, %v3059
    %v3117 = vpack.c.b16 %v3062, %v3061
    %v3118 = vpack.c.b16 %v3064, %v3063
    %v3119 = vpack.c.b16 %v3066, %v3065
    %v3120 = vpack.c.b16 %v3068, %v3067
    %v3121 = vpack.c.b16 %v3070, %v3069
    %v3122 = vpack.c.b16 %v3072, %v3071
    %v3123 = vpack.c.b16 %v3074, %v3073
    %v3124 = vpack.c.b16 %v3076, %v3075
    %v3125 = vpack.c.b16 %v3078, %v3077
    %v3126 = vpack.c.b16 %v3080, %v3079
    %v3127 = vpack.c.b16 %v3082, %v3081
    %v3128 = vpack.c.b16 %v3084, %v3083
    %v3129 = vpack.c.b16 %v3086, %v3085
    %v3130 = vpack.c.b16 %v3088, %v3087
    %v3131 = vpack.c.b16 %v3090, %v3089
    %v3132 = vpack.c.b16 %v3092, %v3091
    %3173 = vmatprep.subr.bf16.mxu0 0
    %3174 = vmatpush1.bf16.msra.mxu0 %v3100
    %3175 = vmatprep.subr.bf16.mxu0 0
    %3176 = vmatpush1.bf16.msra.mxu0 %v3099
    %3177 = vmatprep.subr.bf16.mxu0 0
    %3178 = vmatpush1.bf16.msra.mxu0 %v3098
    %3179 = vmatprep.subr.bf16.mxu0 0
    %3180 = vmatpush1.bf16.msra.mxu0 %v3097
    %3181 = vmatprep.subr.bf16.mxu0 0
    %3182 = vmatpush1.bf16.msra.mxu0 %v3096
    %3183 = vmatprep.subr.bf16.mxu0 0
    %3184 = vmatpush1.bf16.msra.mxu0 %v3095
    %3185 = vmatprep.subr.bf16.mxu0 0
    %3186 = vmatpush1.bf16.msra.mxu0 %v3094
    %3187 = vmatprep.subr.bf16.mxu0 0
    %3188 = vmatpush1.bf16.msra.mxu0 %v3093
    %3189 = vmatprep.subr.bf16.mxu0 0
    %3190 = vmatpush2.bf16.msra.mxu0 %v3108
    %3191 = vmatprep.subr.bf16.mxu0 0
    %3192 = vmatpush2.bf16.msra.mxu0 %v3107
    %3193 = vmatprep.subr.bf16.mxu0 0
    %3194 = vmatpush2.bf16.msra.mxu0 %v3106
    %3195 = vmatprep.subr.bf16.mxu0 0
    %3196 = vmatpush2.bf16.msra.mxu0 %v3105
    %3197 = vmatprep.subr.bf16.mxu0 0
    %3198 = vmatpush2.bf16.msra.mxu0 %v3104
    %3199 = vmatprep.subr.bf16.mxu0 0
    %3200 = vmatpush2.bf16.msra.mxu0 %v3103
    %3201 = vmatprep.subr.bf16.mxu0 0
    %3202 = vmatpush2.bf16.msra.mxu0 %v3102
    %3203 = vmatprep.subr.bf16.mxu0 0
    %3204 = vmatpush2.bf16.msra.mxu0 %v3101
    %3205 = vmatprep.mubr.bf16.mxu0 %v2929
    %3206 = vmatmul.mubr.bf16.gmra.mxu0 %v2928
    %v3207 = vpop.f32.mrf.mxu0
    %v3208 = vadd.f32 %v67, %v3207
    %v3209 = vpop.f32.mrf.mxu0
    %v3210 = vpop.f32.mrf.mxu0
    %v3211 = vpop.f32.mrf.mxu0
    %3212 = vdwg.mxu0
    %3213 = vmatprep.subr.bf16.mxu0 0
    %3214 = vmatpush1.bf16.msra.mxu0 %v3116
    %3215 = vmatprep.subr.bf16.mxu0 0
    %3216 = vmatpush1.bf16.msra.mxu0 %v3115
    %3217 = vmatprep.subr.bf16.mxu0 0
    %3218 = vmatpush1.bf16.msra.mxu0 %v3114
    %3219 = vmatprep.subr.bf16.mxu0 0
    %3220 = vmatpush1.bf16.msra.mxu0 %v3113
    %3221 = vmatprep.subr.bf16.mxu0 0
    %3222 = vmatpush1.bf16.msra.mxu0 %v3112
    %3223 = vmatprep.subr.bf16.mxu0 0
    %3224 = vmatpush1.bf16.msra.mxu0 %v3111
    %3225 = vmatprep.subr.bf16.mxu0 0
    %3226 = vmatpush1.bf16.msra.mxu0 %v3110
    %3227 = vmatprep.subr.bf16.mxu0 0
    %3228 = vmatpush1.bf16.msra.mxu0 %v3109
    %3229 = vmatprep.subr.bf16.mxu0 0
    %3230 = vmatpush2.bf16.msra.mxu0 %v3124
    %3231 = vmatprep.subr.bf16.mxu0 0
    %3232 = vmatpush2.bf16.msra.mxu0 %v3123
    %3233 = vmatprep.subr.bf16.mxu0 0
    %3234 = vmatpush2.bf16.msra.mxu0 %v3122
    %3235 = vmatprep.subr.bf16.mxu0 0
    %3236 = vmatpush2.bf16.msra.mxu0 %v3121
    %3237 = vmatprep.subr.bf16.mxu0 0
    %3238 = vmatpush2.bf16.msra.mxu0 %v3120
    %3239 = vmatprep.subr.bf16.mxu0 0
    %3240 = vmatpush2.bf16.msra.mxu0 %v3119
    %3241 = vmatprep.subr.bf16.mxu0 0
    %3242 = vmatpush2.bf16.msra.mxu0 %v3118
    %3243 = vmatprep.subr.bf16.mxu0 0
    %3244 = vmatpush2.bf16.msra.mxu0 %v3117
    %3245 = vmatprep.mubr.bf16.mxu0 %v2931
    %3246 = vmatmul.mubr.bf16.gmra.mxu0 %v2930
    %v3247 = vpop.f32.mrf.mxu0
    %v3248 = vadd.f32 %v3208, %v3247
    %v3249 = vpop.f32.mrf.mxu0
    %v3250 = vpop.f32.mrf.mxu0
    %v3251 = vpop.f32.mrf.mxu0
    %3252 = vdwg.mxu0
    %3253 = vmatprep.subr.bf16.mxu0 0
    %3254 = vmatpush1.bf16.msra.mxu0 %v3132
    %3255 = vmatprep.subr.bf16.mxu0 0
    %3256 = vmatpush1.bf16.msra.mxu0 %v3131
    %3257 = vmatprep.subr.bf16.mxu0 0
    %3258 = vmatpush1.bf16.msra.mxu0 %v3130
    %3259 = vmatprep.subr.bf16.mxu0 0
    %3260 = vmatpush1.bf16.msra.mxu0 %v3129
    %3261 = vmatprep.subr.bf16.mxu0 0
    %3262 = vmatpush1.bf16.msra.mxu0 %v3128
    %3263 = vmatprep.subr.bf16.mxu0 0
    %3264 = vmatpush1.bf16.msra.mxu0 %v3127
    %3265 = vmatprep.subr.bf16.mxu0 0
    %3266 = vmatpush1.bf16.msra.mxu0 %v3126
    %3267 = vmatprep.subr.bf16.mxu0 0
    %3268 = vmatpush1.bf16.msra.mxu0 %v3125
    %3269 = vmatprep.subr.bf16.mxu0 0
    %3270 = vmatpush2.bf16.msra.mxu0 0
    %3271 = vmatprep.subr.bf16.mxu0 0
    %3272 = vmatpush2.bf16.msra.mxu0 0
    %3273 = vmatprep.subr.bf16.mxu0 0
    %3274 = vmatpush2.bf16.msra.mxu0 0
    %3275 = vmatprep.subr.bf16.mxu0 0
    %3276 = vmatpush2.bf16.msra.mxu0 0
    %3277 = vmatprep.subr.bf16.mxu0 0
    %3278 = vmatpush2.bf16.msra.mxu0 0
    %3279 = vmatprep.subr.bf16.mxu0 0
    %3280 = vmatpush2.bf16.msra.mxu0 0
    %3281 = vmatprep.subr.bf16.mxu0 0
    %3282 = vmatpush2.bf16.msra.mxu0 0
    %3283 = vmatprep.subr.bf16.mxu0 0
    %3284 = vmatpush2.bf16.msra.mxu0 0
    %3285 = vmatprep.mubr.bf16.mxu0 0
    %3286 = vmatmul.mubr.bf16.gmra.mxu0 %v2932
    %v3287 = vpop.f32.mrf.mxu0
    %v3288 = vadd.f32 %v3248, %v3287
    %v3289 = vpop.f32.mrf.mxu0
    %v3290 = vpop.f32.mrf.mxu0
    %v3291 = vpop.f32.mrf.mxu0
    %3292 = vdwg.mxu0
    %v3293 = vmax.f32 %v3288, 0.0
    %v3294 = vld [vmem:[#allocation3 + $0x720] sm:$0xf]
    %v3295 = vld [vmem:[#allocation3 + $0x728] sm:$0xf]
    %v3296 = vld [vmem:[#allocation3 + $0x730] sm:$0xf]
    %v3297 = vld [vmem:[#allocation3 + $0x738] sm:$0xf]
    %v3298 = vld [vmem:[#allocation3 + $0x740] sm:$0xf]
    %v3299 = vld [vmem:[#allocation3 + $0x748] sm:$0xf]
    %v3300 = vld [vmem:[#allocation3 + $0x750] sm:$0xf]
    %v3301 = vld [vmem:[#allocation3 + $0x758] sm:$0xf]
    %v3302 = vld [vmem:[#allocation3 + $0x760] sm:$0xf]
    %v3303 = vld [vmem:[#allocation3 + $0x768] sm:$0xf]
    %v3304 = vld [vmem:[#allocation3 + $0x770] sm:$0xf]
    %v3305 = vld [vmem:[#allocation3 + $0x778] sm:$0xf]
    %v3306 = vld [vmem:[#allocation3 + $0x780] sm:$0xf]
    %v3307 = vld [vmem:[#allocation3 + $0x788] sm:$0xf]
    %v3308 = vld [vmem:[#allocation3 + $0x790] sm:$0xf]
    %v3309 = vld [vmem:[#allocation3 + $0x798] sm:$0xf]
    %v3310 = vpack.c.bf16 %v3293, %v3293
    %v3327 = vunpack.c.l.b16 %v3294
    %v3328 = vunpack.c.l.b16 %v3295
    %v3329 = vunpack.c.l.b16 %v3296
    %v3330 = vunpack.c.l.b16 %v3297
    %v3331 = vunpack.c.l.b16 %v3298
    %v3332 = vunpack.c.l.b16 %v3299
    %v3333 = vunpack.c.l.b16 %v3300
    %v3334 = vunpack.c.l.b16 %v3301
    %v3335 = vunpack.c.l.b16 %v3302
    %v3336 = vunpack.c.l.b16 %v3303
    %v3337 = vunpack.c.l.b16 %v3304
    %v3338 = vunpack.c.l.b16 %v3305
    %v3339 = vunpack.c.l.b16 %v3306
    %v3340 = vunpack.c.l.b16 %v3307
    %v3341 = vunpack.c.l.b16 %v3308
    %v3342 = vunpack.c.l.b16 %v3309
    %v3343 = vpack.c.b16 %v3328, %v3327
    %v3344 = vpack.c.b16 %v3330, %v3329
    %v3345 = vpack.c.b16 %v3332, %v3331
    %v3346 = vpack.c.b16 %v3334, %v3333
    %v3347 = vpack.c.b16 %v3336, %v3335
    %v3348 = vpack.c.b16 %v3338, %v3337
    %v3349 = vpack.c.b16 %v3340, %v3339
    %v3350 = vpack.c.b16 %v3342, %v3341
    %3359 = vmatprep.subr.bf16.mxu0 0
    %3360 = vmatpush1.bf16.msra.mxu0 %v3350
    %3361 = vmatprep.subr.bf16.mxu0 0
    %3362 = vmatpush1.bf16.msra.mxu0 %v3349
    %3363 = vmatprep.subr.bf16.mxu0 0
    %3364 = vmatpush1.bf16.msra.mxu0 %v3348
    %3365 = vmatprep.subr.bf16.mxu0 0
    %3366 = vmatpush1.bf16.msra.mxu0 %v3347
    %3367 = vmatprep.subr.bf16.mxu0 0
    %3368 = vmatpush1.bf16.msra.mxu0 %v3346
    %3369 = vmatprep.subr.bf16.mxu0 0
    %3370 = vmatpush1.bf16.msra.mxu0 %v3345
    %3371 = vmatprep.subr.bf16.mxu0 0
    %3372 = vmatpush1.bf16.msra.mxu0 %v3344
    %3373 = vmatprep.subr.bf16.mxu0 0
    %3374 = vmatpush1.bf16.msra.mxu0 %v3343
    %3375 = vmatprep.subr.bf16.mxu0 0
    %3376 = vmatpush2.bf16.msra.mxu0 0
    %3377 = vmatprep.subr.bf16.mxu0 0
    %3378 = vmatpush2.bf16.msra.mxu0 0
    %3379 = vmatprep.subr.bf16.mxu0 0
    %3380 = vmatpush2.bf16.msra.mxu0 0
    %3381 = vmatprep.subr.bf16.mxu0 0
    %3382 = vmatpush2.bf16.msra.mxu0 0
    %3383 = vmatprep.subr.bf16.mxu0 0
    %3384 = vmatpush2.bf16.msra.mxu0 0
    %3385 = vmatprep.subr.bf16.mxu0 0
    %3386 = vmatpush2.bf16.msra.mxu0 0
    %3387 = vmatprep.subr.bf16.mxu0 0
    %3388 = vmatpush2.bf16.msra.mxu0 0
    %3389 = vmatprep.subr.bf16.mxu0 0
    %3390 = vmatpush2.bf16.msra.mxu0 0
    %3391 = vmatprep.mubr.bf16.mxu0 0
    %3392 = vmatmul.mubr.bf16.gmra.mxu0 %v3310
    %v3393 = vpop.f32.mrf.mxu0
    %v3394 = vadd.f32 %v68, %v3393
    %v3395 = vpop.f32.mrf.mxu0
    %v3396 = vpop.f32.mrf.mxu0
    %v3397 = vpop.f32.mrf.mxu0
    %3398 = vdwg.mxu0
    %v3399 = vmax.f32 %v3394, 0.0
    %v3400 = vld [vmem:[#allocation3 + $0x7a0] sm:$0xf]
    %v3401 = vld [vmem:[#allocation3 + $0x7a8] sm:$0xf]
    %v3402 = vld [vmem:[#allocation3 + $0x7b0] sm:$0xf]
    %v3403 = vld [vmem:[#allocation3 + $0x7b8] sm:$0xf]
    %v3404 = vld [vmem:[#allocation3 + $0x7c0] sm:$0xf]
    %v3405 = vld [vmem:[#allocation3 + $0x7c8] sm:$0xf]
    %v3406 = vld [vmem:[#allocation3 + $0x7d0] sm:$0xf]
    %v3407 = vld [vmem:[#allocation3 + $0x7d8] sm:$0xf]
    %v3408 = vld [vmem:[#allocation3 + $0x7e0] sm:$0xf]
    %v3409 = vld [vmem:[#allocation3 + $0x7e8] sm:$0xf]
    %v3410 = vld [vmem:[#allocation3 + $0x7f0] sm:$0xf]
    %v3411 = vld [vmem:[#allocation3 + $0x7f8] sm:$0xf]
    %v3412 = vld [vmem:[#allocation3 + $0x800] sm:$0xf]
    %v3413 = vld [vmem:[#allocation3 + $0x808] sm:$0xf]
    %v3414 = vld [vmem:[#allocation3 + $0x810] sm:$0xf]
    %v3415 = vld [vmem:[#allocation3 + $0x818] sm:$0xf]
    %v3416 = vpack.c.bf16 %v3399, %v3399
    %v3433 = vunpack.c.l.b16 %v3400
    %v3434 = vunpack.c.l.b16 %v3401
    %v3435 = vunpack.c.l.b16 %v3402
    %v3436 = vunpack.c.l.b16 %v3403
    %v3437 = vunpack.c.l.b16 %v3404
    %v3438 = vunpack.c.l.b16 %v3405
    %v3439 = vunpack.c.l.b16 %v3406
    %v3440 = vunpack.c.l.b16 %v3407
    %v3441 = vunpack.c.l.b16 %v3408
    %v3442 = vunpack.c.l.b16 %v3409
    %v3443 = vunpack.c.l.b16 %v3410
    %v3444 = vunpack.c.l.b16 %v3411
    %v3445 = vunpack.c.l.b16 %v3412
    %v3446 = vunpack.c.l.b16 %v3413
    %v3447 = vunpack.c.l.b16 %v3414
    %v3448 = vunpack.c.l.b16 %v3415
    %v3449 = vpack.c.b16 %v3434, %v3433
    %v3450 = vpack.c.b16 %v3436, %v3435
    %v3451 = vpack.c.b16 %v3438, %v3437
    %v3452 = vpack.c.b16 %v3440, %v3439
    %v3453 = vpack.c.b16 %v3442, %v3441
    %v3454 = vpack.c.b16 %v3444, %v3443
    %v3455 = vpack.c.b16 %v3446, %v3445
    %v3456 = vpack.c.b16 %v3448, %v3447
    %3465 = vmatprep.subr.bf16.mxu0 0
    %3466 = vmatpush1.bf16.msra.mxu0 %v3456
    %3467 = vmatprep.subr.bf16.mxu0 0
    %3468 = vmatpush1.bf16.msra.mxu0 %v3455
    %3469 = vmatprep.subr.bf16.mxu0 0
    %3470 = vmatpush1.bf16.msra.mxu0 %v3454
    %3471 = vmatprep.subr.bf16.mxu0 0
    %3472 = vmatpush1.bf16.msra.mxu0 %v3453
    %3473 = vmatprep.subr.bf16.mxu0 0
    %3474 = vmatpush1.bf16.msra.mxu0 %v3452
    %3475 = vmatprep.subr.bf16.mxu0 0
    %3476 = vmatpush1.bf16.msra.mxu0 %v3451
    %3477 = vmatprep.subr.bf16.mxu0 0
    %3478 = vmatpush1.bf16.msra.mxu0 %v3450
    %3479 = vmatprep.subr.bf16.mxu0 0
    %3480 = vmatpush1.bf16.msra.mxu0 %v3449
    %3481 = vmatprep.subr.bf16.mxu0 0
    %3482 = vmatpush2.bf16.msra.mxu0 0
    %3483 = vmatprep.subr.bf16.mxu0 0
    %3484 = vmatpush2.bf16.msra.mxu0 0
    %3485 = vmatprep.subr.bf16.mxu0 0
    %3486 = vmatpush2.bf16.msra.mxu0 0
    %3487 = vmatprep.subr.bf16.mxu0 0
    %3488 = vmatpush2.bf16.msra.mxu0 0
    %3489 = vmatprep.subr.bf16.mxu0 0
    %3490 = vmatpush2.bf16.msra.mxu0 0
    %3491 = vmatprep.subr.bf16.mxu0 0
    %3492 = vmatpush2.bf16.msra.mxu0 0
    %3493 = vmatprep.subr.bf16.mxu0 0
    %3494 = vmatpush2.bf16.msra.mxu0 0
    %3495 = vmatprep.subr.bf16.mxu0 0
    %3496 = vmatpush2.bf16.msra.mxu0 0
    %3497 = vmatprep.mubr.bf16.mxu0 0
    %3498 = vmatmul.mubr.bf16.gmra.mxu0 %v3416
    %v3499 = vpop.f32.mrf.mxu0
    %v3500 = vadd.f32 %v69, %v3499
    %v3501 = vpop.f32.mrf.mxu0
    %v3502 = vpop.f32.mrf.mxu0
    %v3503 = vpop.f32.mrf.mxu0
    %3504 = vdwg.mxu0
    %3505 = vst [vmem:[#allocation8] sm:$0x3] %v3500
    // Predicated region
    $region22: #{net_forward.1} parent=1 // pred_check
      _
    $region23: #{net_forward.1} parent=1 // pred_check_branch
      %3507 = sbr.rel (0) target = $region25
    $region24: #{net_forward.1} parent=1 // pred_region
      %s3509 = ssub.s32 32, 32
      %3510 = vsyncadd [#allocation5], %s3509
      %s3512 = sshll.u32 [#allocation8], 4
      %s3513 = int_to_ptr.vmem [resolvable:$true] %s3512
      %3515 = dma.vmem_to_hbm [thread:$0]  %s3513, 32, %s3, [#allocation5]
    $region25: #{net_forward.1} parent=1 // pred_fallthru
      _
    // Predicated region
    $region26: #{net_forward.1} parent=1 // pred_check
      _
    $region27: #{net_forward.1} parent=1 // pred_check_branch
      %3517 = sbr.rel (0) target = $region29
    $region28: #{net_forward.1} parent=1 // pred_region
      %3518 = dma.done [#allocation5], 32
    $region29: #{net_forward.1} parent=1 // pred_fallthru
      _
    %3519 = vsyncpa [#allocation4], 1
    %3520 = vsyncpa [#allocation7], 1
    %3521 = vsyncpa [#allocation5], 1

</llo_original>
